<compile_context>
chip_gen: v7x
topology: tpu7x:2x2x1
jax: 0.10.0
libtpu: 0.0.40
codegen_flags: <defaults>
</compile_context>

<pallas_src>
import jax
import jax.numpy as jnp
from jax import lax
from jax.experimental import pallas as pl
from jax.experimental.pallas import tpu as pltpu


def _write_circular_pad(pad_ref, src_hwc):
    """Write src (H, W, C) into pad_ref (H+2, W+2, C) with wrap (circular) borders."""
    H = pad_ref.shape[0] - 2
    W = pad_ref.shape[1] - 2
    # interior
    pad_ref[1:H + 1, 1:W + 1, :] = src_hwc
    # wrap rows: top border <- last row, bottom border <- first row
    pad_ref[0:1, 1:W + 1, :] = src_hwc[H - 1:H, :, :]
    pad_ref[H + 1:H + 2, 1:W + 1, :] = src_hwc[0:1, :, :]
    # wrap cols; reading back from pad_ref also fills the 4 corners correctly
    pad_ref[:, 0:1, :] = pad_ref[:, W:W + 1, :]
    pad_ref[:, W + 1:W + 2, :] = pad_ref[:, 1:2, :]


def _conv3x3_bias_relu(pad_ref, w_ref, b_ref):
    """3x3 'valid' conv on a circularly padded VMEM scratch, bias + ReLU.

    pad_ref: (H+2, W+2, C) f32 padded activation (VMEM scratch)
    w_ref:   (9, C, Cout)  bf16 weight taps, tap index = dy*3 + dx
    b_ref:   (1, Cout)     f32 bias
    returns  (H, W, Cout)  f32

    Nine accumulated MXU matmuls (bf16 operands, f32 accumulation) into one
    accumulator -- no im2col patches buffer, no lane-axis concatenate.  The
    bias is the accumulator's initial value, so ReLU is the only post-matmul
    VPU pass.
    """
    H = pad_ref.shape[0] - 2
    W = pad_ref.shape[1] - 2
    C = pad_ref.shape[2]
    Cout = w_ref.shape[2]
    HW = H * W

    acc = jnp.broadcast_to(b_ref[...], (HW, Cout))            # f32, bias-initialized
    for dx in range(3):
        # One sublane-realigning load + one f32->bf16 cast per column tap;
        # the three row taps below slice the untiled leading dim (cheap).
        col = pad_ref[:, dx:dx + W, :].astype(jnp.bfloat16)   # (H+2, W, C) bf16
        for dy in range(3):
            lhs = col[dy:dy + H].reshape(HW, C)               # (H*W, C) bf16
            acc = acc + jnp.dot(lhs, w_ref[dy * 3 + dx],
                                preferred_element_type=jnp.float32)
    return jnp.maximum(acc, 0.0).reshape(H, W, Cout)


def _conv_block_kernel(x_ref, w1_ref, b1_ref, w2_ref, b2_ref, o_ref,
                       xpad_ref, ypad_ref):
    """One batch element of the fused ConvBlock.

    x_ref:  (1, H, W, Cin) bf16     w1_ref: (9, Cin, Cout) bf16   b1_ref: (1, Cout) f32
    o_ref:  (1, H, W, Cout) f32     w2_ref: (9, Cout, Cout) bf16  b2_ref: (1, Cout) f32
    xpad_ref: VMEM (H+2, W+2, Cin) f32   ypad_ref: VMEM (H+2, W+2, Cout) f32
    """
    H = o_ref.shape[1]
    W = o_ref.shape[2]
    Cout = o_ref.shape[3]

    # conv1: circular-pad the (bf16) input into the f32 VMEM scratch
    _write_circular_pad(xpad_ref, x_ref[0].astype(jnp.float32))
    y1 = _conv3x3_bias_relu(xpad_ref, w1_ref, b1_ref)         # (H, W, Cout) f32

    # conv2: the intermediate activation never leaves VMEM
    _write_circular_pad(ypad_ref, y1)
    y2 = _conv3x3_bias_relu(ypad_ref, w2_ref, b2_ref)         # (H, W, Cout) f32

    o_ref[...] = y2.reshape(1, H, W, Cout).astype(o_ref.dtype)


def conv_block_forward_nhwc(x_nhwc, params):
    """Fused ConvBlock forward in NHWC: (N, H, W, Cin) -> (N, H, W, Cout)."""
    w1, b1, w2, b2 = params
    N, H, W, Cin = x_nhwc.shape
    Cout = w1.shape[-1]

    # bf16 operands (f32 accumulation in-kernel): halves x/weight HBM traffic
    # and runs the v6e/v7x MXUs at full bf16 rate.
    x_bf16 = x_nhwc.astype(jnp.bfloat16)
    # Tap-major weight layout (9, C, Cout); tap = dy*3 + dx matches the kernel.
    w1_taps = w1.reshape(9, Cin, Cout).astype(jnp.bfloat16)
    w2_taps = w2.reshape(9, Cout, Cout).astype(jnp.bfloat16)
    b1_2d = b1.reshape(1, Cout).astype(jnp.float32)
    b2_2d = b2.reshape(1, Cout).astype(jnp.float32)

    flops = 2 * N * H * W * 9 * Cout * (Cin + Cout)
    bytes_accessed = (2 * x_bf16.size + 4 * N * H * W * Cout
                      + 2 * (w1_taps.size + w2_taps.size)
                      + 4 * (b1.size + b2.size))

    return pl.pallas_call(
        _conv_block_kernel,
        out_shape=jax.ShapeDtypeStruct((N, H, W, Cout), jnp.float32),
        grid_spec=pltpu.PrefetchScalarGridSpec(
            num_scalar_prefetch=0,
            grid=(N,),
            in_specs=[
                pl.BlockSpec((1, H, W, Cin), lambda n: (n, 0, 0, 0)),
                # constant index maps -> weights/bias DMA'd once, stay resident
                pl.BlockSpec((9, Cin, Cout), lambda n: (0, 0, 0)),
                pl.BlockSpec((1, Cout), lambda n: (0, 0)),
                pl.BlockSpec((9, Cout, Cout), lambda n: (0, 0, 0)),
                pl.BlockSpec((1, Cout), lambda n: (0, 0)),
            ],
            out_specs=pl.BlockSpec((1, H, W, Cout), lambda n: (n, 0, 0, 0)),
            scratch_shapes=[
                pltpu.VMEM((H + 2, W + 2, Cin), jnp.float32),    # padded input
                pltpu.VMEM((H + 2, W + 2, Cout), jnp.float32),   # padded conv1 act
            ],
        ),
        compiler_params=pltpu.CompilerParams(
            dimension_semantics=("parallel",),       # batch axis across cores
            vmem_limit_bytes=64 * 1024 * 1024),      # >= default scoped limit everywhere
        cost_estimate=pl.CostEstimate(
            flops=flops, transcendentals=0, bytes_accessed=bytes_accessed),
    )(x_bf16, w1_taps, b1_2d, w2_taps, b2_2d)


def conv_block_forward(x_nchw, params):
    """PyTorch-convention entry point: (N, Cin, H, W) -> (N, Cout, H, W)."""
    # In a full UNet, keep activations NHWC end-to-end and call
    # conv_block_forward_nhwc directly to avoid these two HBM transposes.
    x = jnp.transpose(x_nchw, (0, 2, 3, 1))       # NCHW -> NHWC
    y = conv_block_forward_nhwc(x, params)
    return jnp.transpose(y, (0, 3, 1, 2))         # NHWC -> NCHW


def init_params(key, in_channels, out_channels):
    """Deterministic parameter init (shapes match nn.Conv2d(k=3))."""
    k1, k2, k3, k4 = jax.random.split(key, 4)
    # PyTorch weight layout is (Cout, Cin, 3, 3); we store (3, 3, Cin, Cout).
    fan1 = in_channels * 9
    fan2 = out_channels * 9
    w1 = jax.random.uniform(k1, (3, 3, in_channels, out_channels),
                            jnp.float32, -1.0, 1.0) / jnp.sqrt(fan1)
    b1 = jax.random.uniform(k2, (out_channels,), jnp.float32, -1.0, 1.0) / jnp.sqrt(fan1)
    w2 = jax.random.uniform(k3, (3, 3, out_channels, out_channels),
                            jnp.float32, -1.0, 1.0) / jnp.sqrt(fan2)
    b2 = jax.random.uniform(k4, (out_channels,), jnp.float32, -1.0, 1.0) / jnp.sqrt(fan2)
    return (w1, b1, w2, b2)


def _reference_forward(x_nchw, params):
    """Pure-JAX reference (lax.conv, precision=HIGHEST).

    Matches the kernel's numerics: operands (activations and weights) are
    quantized to bf16, products/accumulation are f32.
    """
    w1, b1, w2, b2 = params
    q = lambda a: a.astype(jnp.bfloat16).astype(jnp.float32)

    def conv(x, w, b):
        xp = jnp.pad(q(x), ((0, 0), (0, 0), (1, 1), (1, 1)), mode="wrap")
        w_oihw = jnp.transpose(q(w), (3, 2, 0, 1))   # (3,3,Cin,Cout) -> (Cout,Cin,3,3)
        y = lax.conv_general_dilated(
            xp, w_oihw, window_strides=(1, 1), padding="VALID",
            dimension_numbers=("NCHW", "OIHW", "NCHW"),
            precision=lax.Precision.HIGHEST)
        return jnp.maximum(y + b[None, :, None, None], 0.0)

    return conv(conv(x_nchw, w1, b1), w2, b2)


if __name__ == "__main__":
    N, Cin, Cout, H, W = 2, 4, 8, 16, 16
    key = jax.random.PRNGKey(0)
    kx, kp = jax.random.split(key)
    x = jax.random.normal(kx, (N, Cin, H, W), dtype=jnp.float32)
    params = init_params(kp, Cin, Cout)

    out = jax.block_until_ready(conv_block_forward(x, params))
    ref = jax.block_until_ready(_reference_forward(x, params))

    assert out.shape == (N, Cout, H, W)
    max_err = float(jnp.max(jnp.abs(out - ref)))
    assert jnp.allclose(out, ref, atol=1e-3, rtol=1e-3), (
        "max abs err = %g" % max_err)

    print("KERNEL_OK")
</pallas_src>

<mosaic_0001>
module attributes {stable_mosaic.version = 11 : i64} {
  func.func @_conv_block_kernel(%arg0: i32, %arg1: memref<1x16x16x4xbf16, #tpu.memory_space<vmem>>, %arg2: memref<9x4x8xbf16, #tpu.memory_space<vmem>>, %arg3: memref<1x8xf32, #tpu.memory_space<vmem>>, %arg4: memref<9x8x8xbf16, #tpu.memory_space<vmem>>, %arg5: memref<1x8xf32, #tpu.memory_space<vmem>>, %arg6: memref<1x16x16x8xf32, #tpu.memory_space<vmem>>, %arg7: memref<18x18x4xf32, #tpu.memory_space<vmem>>, %arg8: memref<18x18x8xf32, #tpu.memory_space<vmem>>) attributes {dimension_semantics = [#tpu.dimension_semantics<parallel>], iteration_bounds = array<i64: 2>, scalar_prefetch = 0 : i64, scratch_operands = 2 : i64, tpu.core_type = #tpu.core_type<tc>, window_params = [{transform_indices = @transform_0, window_bounds = array<i64: 1, 16, 16, 4>}, {pipeline_mode = #tpu.pipeline_mode<synchronous>, transform_indices = @transform_1, window_bounds = array<i64: 9, 4, 8>}, {pipeline_mode = #tpu.pipeline_mode<synchronous>, transform_indices = @transform_2, window_bounds = array<i64: 1, 8>}, {pipeline_mode = #tpu.pipeline_mode<synchronous>, transform_indices = @transform_3, window_bounds = array<i64: 9, 8, 8>}, {pipeline_mode = #tpu.pipeline_mode<synchronous>, transform_indices = @transform_4, window_bounds = array<i64: 1, 8>}, {transform_indices = @transform_5, window_bounds = array<i64: 1, 16, 16, 8>}]} {
    %c0 = arith.constant 0 : index
    %c0_0 = arith.constant 0 : index
    %c0_1 = arith.constant 0 : index
    %c0_2 = arith.constant 0 : index
    %0 = vector.load %arg1[%c0, %c0_0, %c0_1, %c0_2] : memref<1x16x16x4xbf16, #tpu.memory_space<vmem>>, vector<1x16x16x4xbf16>
    %1 = vector.shape_cast %0 : vector<1x16x16x4xbf16> to vector<16x16x4xbf16>
    %2 = arith.extf %1 : vector<16x16x4xbf16> to vector<16x16x4xf32>
    %c1 = arith.constant 1 : index
    %c1_3 = arith.constant 1 : index
    %c0_4 = arith.constant 0 : index
    %3 = vector.load %arg7[%c1, %c1_3, %c0_4] : memref<18x18x4xf32, #tpu.memory_space<vmem>>, vector<16x16x4xf32>
    tpu.vector_store %arg7[%c1, %c1_3, %c0_4], %2 {strides = array<i32>} : memref<18x18x4xf32, #tpu.memory_space<vmem>>, vector<16x16x4xf32>,
    %4 = vector.extract_strided_slice %2 {offsets = [15, 0, 0], sizes = [1, 16, 4], strides = [1, 1, 1]} : vector<16x16x4xf32> to vector<1x16x4xf32>
    %c0_5 = arith.constant 0 : index
    %c1_6 = arith.constant 1 : index
    %c0_7 = arith.constant 0 : index
    %5 = vector.load %arg7[%c0_5, %c1_6, %c0_7] : memref<18x18x4xf32, #tpu.memory_space<vmem>>, vector<1x16x4xf32>
    tpu.vector_store %arg7[%c0_5, %c1_6, %c0_7], %4 {strides = array<i32>} : memref<18x18x4xf32, #tpu.memory_space<vmem>>, vector<1x16x4xf32>,
    %6 = vector.extract_strided_slice %2 {offsets = [0, 0, 0], sizes = [1, 16, 4], strides = [1, 1, 1]} : vector<16x16x4xf32> to vector<1x16x4xf32>
    %c17 = arith.constant 17 : index
    %c1_8 = arith.constant 1 : index
    %c0_9 = arith.constant 0 : index
    %7 = vector.load %arg7[%c17, %c1_8, %c0_9] : memref<18x18x4xf32, #tpu.memory_space<vmem>>, vector<1x16x4xf32>
    tpu.vector_store %arg7[%c17, %c1_8, %c0_9], %6 {strides = array<i32>} : memref<18x18x4xf32, #tpu.memory_space<vmem>>, vector<1x16x4xf32>,
    %c0_10 = arith.constant 0 : index
    %c16 = arith.constant 16 : index
    %c0_11 = arith.constant 0 : index
    %8 = vector.load %arg7[%c0_10, %c16, %c0_11] : memref<18x18x4xf32, #tpu.memory_space<vmem>>, vector<18x1x4xf32>
    %c0_12 = arith.constant 0 : index
    %c0_13 = arith.constant 0 : index
    %c0_14 = arith.constant 0 : index
    %9 = vector.load %arg7[%c0_12, %c0_13, %c0_14] : memref<18x18x4xf32, #tpu.memory_space<vmem>>, vector<18x1x4xf32>
    tpu.vector_store %arg7[%c0_12, %c0_13, %c0_14], %8 {strides = array<i32>} : memref<18x18x4xf32, #tpu.memory_space<vmem>>, vector<18x1x4xf32>,
    %c0_15 = arith.constant 0 : index
    %c1_16 = arith.constant 1 : index
    %c0_17 = arith.constant 0 : index
    %10 = vector.load %arg7[%c0_15, %c1_16, %c0_17] : memref<18x18x4xf32, #tpu.memory_space<vmem>>, vector<18x1x4xf32>
    %c0_18 = arith.constant 0 : index
    %c17_19 = arith.constant 17 : index
    %c0_20 = arith.constant 0 : index
    %11 = vector.load %arg7[%c0_18, %c17_19, %c0_20] : memref<18x18x4xf32, #tpu.memory_space<vmem>>, vector<18x1x4xf32>
    tpu.vector_store %arg7[%c0_18, %c17_19, %c0_20], %10 {strides = array<i32>} : memref<18x18x4xf32, #tpu.memory_space<vmem>>, vector<18x1x4xf32>,
    %c0_21 = arith.constant 0 : index
    %c0_22 = arith.constant 0 : index
    %12 = vector.load %arg3[%c0_21, %c0_22] : memref<1x8xf32, #tpu.memory_space<vmem>>, vector<1x8xf32>
    %13 = vector.shape_cast %12 : vector<1x8xf32> to vector<1x8xf32>
    %14 = vector.broadcast %13 : vector<1x8xf32> to vector<256x8xf32>
    %c0_23 = arith.constant 0 : index
    %c0_24 = arith.constant 0 : index
    %c0_25 = arith.constant 0 : index
    %15 = vector.load %arg7[%c0_23, %c0_24, %c0_25] : memref<18x18x4xf32, #tpu.memory_space<vmem>>, vector<18x16x4xf32>
    %16 = arith.truncf %15 : vector<18x16x4xf32> to vector<18x16x4xbf16>
    %17 = vector.extract_strided_slice %16 {offsets = [0, 0, 0], sizes = [16, 16, 4], strides = [1, 1, 1]} : vector<18x16x4xbf16> to vector<16x16x4xbf16>
    %18 = vector.shape_cast %17 : vector<16x16x4xbf16> to vector<256x4xbf16>
    %c0_26 = arith.constant 0 : index
    %c0_27 = arith.constant 0 : index
    %c0_28 = arith.constant 0 : index
    %19 = vector.load %arg2[%c0_26, %c0_27, %c0_28] : memref<9x4x8xbf16, #tpu.memory_space<vmem>>, vector<1x4x8xbf16>
    %20 = vector.shape_cast %19 : vector<1x4x8xbf16> to vector<4x8xbf16>
    %cst = arith.constant dense<0.000000e+00> : vector<256x8xf32>
    %21 = tpu.matmul %18, %20, %cst {dimension_numbers = #tpu.dot_dimension_numbers<[1], [0], [0], [1], [0, 0, 1, 1], [], []>} : vector<256x4xbf16>, vector<4x8xbf16>, vector<256x8xf32> -> vector<256x8xf32>
    %22 = arith.addf %14, %21 : vector<256x8xf32>
    %23 = vector.extract_strided_slice %16 {offsets = [1, 0, 0], sizes = [16, 16, 4], strides = [1, 1, 1]} : vector<18x16x4xbf16> to vector<16x16x4xbf16>
    %24 = vector.shape_cast %23 : vector<16x16x4xbf16> to vector<256x4xbf16>
    %c3 = arith.constant 3 : index
    %c0_29 = arith.constant 0 : index
    %c0_30 = arith.constant 0 : index
    %25 = vector.load %arg2[%c3, %c0_29, %c0_30] : memref<9x4x8xbf16, #tpu.memory_space<vmem>>, vector<1x4x8xbf16>
    %26 = vector.shape_cast %25 : vector<1x4x8xbf16> to vector<4x8xbf16>
    %cst_31 = arith.constant dense<0.000000e+00> : vector<256x8xf32>
    %27 = tpu.matmul %24, %26, %cst_31 {dimension_numbers = #tpu.dot_dimension_numbers<[1], [0], [0], [1], [0, 0, 1, 1], [], []>} : vector<256x4xbf16>, vector<4x8xbf16>, vector<256x8xf32> -> vector<256x8xf32>
    %28 = arith.addf %22, %27 : vector<256x8xf32>
    %29 = vector.extract_strided_slice %16 {offsets = [2, 0, 0], sizes = [16, 16, 4], strides = [1, 1, 1]} : vector<18x16x4xbf16> to vector<16x16x4xbf16>
    %30 = vector.shape_cast %29 : vector<16x16x4xbf16> to vector<256x4xbf16>
    %c6 = arith.constant 6 : index
    %c0_32 = arith.constant 0 : index
    %c0_33 = arith.constant 0 : index
    %31 = vector.load %arg2[%c6, %c0_32, %c0_33] : memref<9x4x8xbf16, #tpu.memory_space<vmem>>, vector<1x4x8xbf16>
    %32 = vector.shape_cast %31 : vector<1x4x8xbf16> to vector<4x8xbf16>
    %cst_34 = arith.constant dense<0.000000e+00> : vector<256x8xf32>
    %33 = tpu.matmul %30, %32, %cst_34 {dimension_numbers = #tpu.dot_dimension_numbers<[1], [0], [0], [1], [0, 0, 1, 1], [], []>} : vector<256x4xbf16>, vector<4x8xbf16>, vector<256x8xf32> -> vector<256x8xf32>
    %34 = arith.addf %28, %33 : vector<256x8xf32>
    %c0_35 = arith.constant 0 : index
    %c1_36 = arith.constant 1 : index
    %c0_37 = arith.constant 0 : index
    %35 = vector.load %arg7[%c0_35, %c1_36, %c0_37] : memref<18x18x4xf32, #tpu.memory_space<vmem>>, vector<18x16x4xf32>
    %36 = arith.truncf %35 : vector<18x16x4xf32> to vector<18x16x4xbf16>
    %37 = vector.extract_strided_slice %36 {offsets = [0, 0, 0], sizes = [16, 16, 4], strides = [1, 1, 1]} : vector<18x16x4xbf16> to vector<16x16x4xbf16>
    %38 = vector.shape_cast %37 : vector<16x16x4xbf16> to vector<256x4xbf16>
    %c1_38 = arith.constant 1 : index
    %c0_39 = arith.constant 0 : index
    %c0_40 = arith.constant 0 : index
    %39 = vector.load %arg2[%c1_38, %c0_39, %c0_40] : memref<9x4x8xbf16, #tpu.memory_space<vmem>>, vector<1x4x8xbf16>
    %40 = vector.shape_cast %39 : vector<1x4x8xbf16> to vector<4x8xbf16>
    %cst_41 = arith.constant dense<0.000000e+00> : vector<256x8xf32>
    %41 = tpu.matmul %38, %40, %cst_41 {dimension_numbers = #tpu.dot_dimension_numbers<[1], [0], [0], [1], [0, 0, 1, 1], [], []>} : vector<256x4xbf16>, vector<4x8xbf16>, vector<256x8xf32> -> vector<256x8xf32>
    %42 = arith.addf %34, %41 : vector<256x8xf32>
    %43 = vector.extract_strided_slice %36 {offsets = [1, 0, 0], sizes = [16, 16, 4], strides = [1, 1, 1]} : vector<18x16x4xbf16> to vector<16x16x4xbf16>
    %44 = vector.shape_cast %43 : vector<16x16x4xbf16> to vector<256x4xbf16>
    %c4 = arith.constant 4 : index
    %c0_42 = arith.constant 0 : index
    %c0_43 = arith.constant 0 : index
    %45 = vector.load %arg2[%c4, %c0_42, %c0_43] : memref<9x4x8xbf16, #tpu.memory_space<vmem>>, vector<1x4x8xbf16>
    %46 = vector.shape_cast %45 : vector<1x4x8xbf16> to vector<4x8xbf16>
    %cst_44 = arith.constant dense<0.000000e+00> : vector<256x8xf32>
    %47 = tpu.matmul %44, %46, %cst_44 {dimension_numbers = #tpu.dot_dimension_numbers<[1], [0], [0], [1], [0, 0, 1, 1], [], []>} : vector<256x4xbf16>, vector<4x8xbf16>, vector<256x8xf32> -> vector<256x8xf32>
    %48 = arith.addf %42, %47 : vector<256x8xf32>
    %49 = vector.extract_strided_slice %36 {offsets = [2, 0, 0], sizes = [16, 16, 4], strides = [1, 1, 1]} : vector<18x16x4xbf16> to vector<16x16x4xbf16>
    %50 = vector.shape_cast %49 : vector<16x16x4xbf16> to vector<256x4xbf16>
    %c7 = arith.constant 7 : index
    %c0_45 = arith.constant 0 : index
    %c0_46 = arith.constant 0 : index
    %51 = vector.load %arg2[%c7, %c0_45, %c0_46] : memref<9x4x8xbf16, #tpu.memory_space<vmem>>, vector<1x4x8xbf16>
    %52 = vector.shape_cast %51 : vector<1x4x8xbf16> to vector<4x8xbf16>
    %cst_47 = arith.constant dense<0.000000e+00> : vector<256x8xf32>
    %53 = tpu.matmul %50, %52, %cst_47 {dimension_numbers = #tpu.dot_dimension_numbers<[1], [0], [0], [1], [0, 0, 1, 1], [], []>} : vector<256x4xbf16>, vector<4x8xbf16>, vector<256x8xf32> -> vector<256x8xf32>
    %54 = arith.addf %48, %53 : vector<256x8xf32>
    %c0_48 = arith.constant 0 : index
    %c2 = arith.constant 2 : index
    %c0_49 = arith.constant 0 : index
    %55 = vector.load %arg7[%c0_48, %c2, %c0_49] : memref<18x18x4xf32, #tpu.memory_space<vmem>>, vector<18x16x4xf32>
    %56 = arith.truncf %55 : vector<18x16x4xf32> to vector<18x16x4xbf16>
    %57 = vector.extract_strided_slice %56 {offsets = [0, 0, 0], sizes = [16, 16, 4], strides = [1, 1, 1]} : vector<18x16x4xbf16> to vector<16x16x4xbf16>
    %58 = vector.shape_cast %57 : vector<16x16x4xbf16> to vector<256x4xbf16>
    %c2_50 = arith.constant 2 : index
    %c0_51 = arith.constant 0 : index
    %c0_52 = arith.constant 0 : index
    %59 = vector.load %arg2[%c2_50, %c0_51, %c0_52] : memref<9x4x8xbf16, #tpu.memory_space<vmem>>, vector<1x4x8xbf16>
    %60 = vector.shape_cast %59 : vector<1x4x8xbf16> to vector<4x8xbf16>
    %cst_53 = arith.constant dense<0.000000e+00> : vector<256x8xf32>
    %61 = tpu.matmul %58, %60, %cst_53 {dimension_numbers = #tpu.dot_dimension_numbers<[1], [0], [0], [1], [0, 0, 1, 1], [], []>} : vector<256x4xbf16>, vector<4x8xbf16>, vector<256x8xf32> -> vector<256x8xf32>
    %62 = arith.addf %54, %61 : vector<256x8xf32>
    %63 = vector.extract_strided_slice %56 {offsets = [1, 0, 0], sizes = [16, 16, 4], strides = [1, 1, 1]} : vector<18x16x4xbf16> to vector<16x16x4xbf16>
    %64 = vector.shape_cast %63 : vector<16x16x4xbf16> to vector<256x4xbf16>
    %c5 = arith.constant 5 : index
    %c0_54 = arith.constant 0 : index
    %c0_55 = arith.constant 0 : index
    %65 = vector.load %arg2[%c5, %c0_54, %c0_55] : memref<9x4x8xbf16, #tpu.memory_space<vmem>>, vector<1x4x8xbf16>
    %66 = vector.shape_cast %65 : vector<1x4x8xbf16> to vector<4x8xbf16>
    %cst_56 = arith.constant dense<0.000000e+00> : vector<256x8xf32>
    %67 = tpu.matmul %64, %66, %cst_56 {dimension_numbers = #tpu.dot_dimension_numbers<[1], [0], [0], [1], [0, 0, 1, 1], [], []>} : vector<256x4xbf16>, vector<4x8xbf16>, vector<256x8xf32> -> vector<256x8xf32>
    %68 = arith.addf %62, %67 : vector<256x8xf32>
    %69 = vector.extract_strided_slice %56 {offsets = [2, 0, 0], sizes = [16, 16, 4], strides = [1, 1, 1]} : vector<18x16x4xbf16> to vector<16x16x4xbf16>
    %70 = vector.shape_cast %69 : vector<16x16x4xbf16> to vector<256x4xbf16>
    %c8 = arith.constant 8 : index
    %c0_57 = arith.constant 0 : index
    %c0_58 = arith.constant 0 : index
    %71 = vector.load %arg2[%c8, %c0_57, %c0_58] : memref<9x4x8xbf16, #tpu.memory_space<vmem>>, vector<1x4x8xbf16>
    %72 = vector.shape_cast %71 : vector<1x4x8xbf16> to vector<4x8xbf16>
    %cst_59 = arith.constant dense<0.000000e+00> : vector<256x8xf32>
    %73 = tpu.matmul %70, %72, %cst_59 {dimension_numbers = #tpu.dot_dimension_numbers<[1], [0], [0], [1], [0, 0, 1, 1], [], []>} : vector<256x4xbf16>, vector<4x8xbf16>, vector<256x8xf32> -> vector<256x8xf32>
    %74 = arith.addf %68, %73 : vector<256x8xf32>
    %cst_60 = arith.constant 0.000000e+00 : f32
    %75 = vector.broadcast %cst_60 : f32 to vector<256x8xf32>
    %76 = arith.maximumf %74, %75 : vector<256x8xf32>
    %77 = vector.shape_cast %76 : vector<256x8xf32> to vector<16x16x8xf32>
    %c1_61 = arith.constant 1 : index
    %c1_62 = arith.constant 1 : index
    %c0_63 = arith.constant 0 : index
    %78 = vector.load %arg8[%c1_61, %c1_62, %c0_63] : memref<18x18x8xf32, #tpu.memory_space<vmem>>, vector<16x16x8xf32>
    tpu.vector_store %arg8[%c1_61, %c1_62, %c0_63], %77 {strides = array<i32>} : memref<18x18x8xf32, #tpu.memory_space<vmem>>, vector<16x16x8xf32>,
    %79 = vector.extract_strided_slice %77 {offsets = [15, 0, 0], sizes = [1, 16, 8], strides = [1, 1, 1]} : vector<16x16x8xf32> to vector<1x16x8xf32>
    %c0_64 = arith.constant 0 : index
    %c1_65 = arith.constant 1 : index
    %c0_66 = arith.constant 0 : index
    %80 = vector.load %arg8[%c0_64, %c1_65, %c0_66] : memref<18x18x8xf32, #tpu.memory_space<vmem>>, vector<1x16x8xf32>
    tpu.vector_store %arg8[%c0_64, %c1_65, %c0_66], %79 {strides = array<i32>} : memref<18x18x8xf32, #tpu.memory_space<vmem>>, vector<1x16x8xf32>,
    %81 = vector.extract_strided_slice %77 {offsets = [0, 0, 0], sizes = [1, 16, 8], strides = [1, 1, 1]} : vector<16x16x8xf32> to vector<1x16x8xf32>
    %c17_67 = arith.constant 17 : index
    %c1_68 = arith.constant 1 : index
    %c0_69 = arith.constant 0 : index
    %82 = vector.load %arg8[%c17_67, %c1_68, %c0_69] : memref<18x18x8xf32, #tpu.memory_space<vmem>>, vector<1x16x8xf32>
    tpu.vector_store %arg8[%c17_67, %c1_68, %c0_69], %81 {strides = array<i32>} : memref<18x18x8xf32, #tpu.memory_space<vmem>>, vector<1x16x8xf32>,
    %c0_70 = arith.constant 0 : index
    %c16_71 = arith.constant 16 : index
    %c0_72 = arith.constant 0 : index
    %83 = vector.load %arg8[%c0_70, %c16_71, %c0_72] : memref<18x18x8xf32, #tpu.memory_space<vmem>>, vector<18x1x8xf32>
    %c0_73 = arith.constant 0 : index
    %c0_74 = arith.constant 0 : index
    %c0_75 = arith.constant 0 : index
    %84 = vector.load %arg8[%c0_73, %c0_74, %c0_75] : memref<18x18x8xf32, #tpu.memory_space<vmem>>, vector<18x1x8xf32>
    tpu.vector_store %arg8[%c0_73, %c0_74, %c0_75], %83 {strides = array<i32>} : memref<18x18x8xf32, #tpu.memory_space<vmem>>, vector<18x1x8xf32>,
    %c0_76 = arith.constant 0 : index
    %c1_77 = arith.constant 1 : index
    %c0_78 = arith.constant 0 : index
    %85 = vector.load %arg8[%c0_76, %c1_77, %c0_78] : memref<18x18x8xf32, #tpu.memory_space<vmem>>, vector<18x1x8xf32>
    %c0_79 = arith.constant 0 : index
    %c17_80 = arith.constant 17 : index
    %c0_81 = arith.constant 0 : index
    %86 = vector.load %arg8[%c0_79, %c17_80, %c0_81] : memref<18x18x8xf32, #tpu.memory_space<vmem>>, vector<18x1x8xf32>
    tpu.vector_store %arg8[%c0_79, %c17_80, %c0_81], %85 {strides = array<i32>} : memref<18x18x8xf32, #tpu.memory_space<vmem>>, vector<18x1x8xf32>,
    %c0_82 = arith.constant 0 : index
    %c0_83 = arith.constant 0 : index
    %87 = vector.load %arg5[%c0_82, %c0_83] : memref<1x8xf32, #tpu.memory_space<vmem>>, vector<1x8xf32>
    %88 = vector.shape_cast %87 : vector<1x8xf32> to vector<1x8xf32>
    %89 = vector.broadcast %88 : vector<1x8xf32> to vector<256x8xf32>
    %c0_84 = arith.constant 0 : index
    %c0_85 = arith.constant 0 : index
    %c0_86 = arith.constant 0 : index
    %90 = vector.load %arg8[%c0_84, %c0_85, %c0_86] : memref<18x18x8xf32, #tpu.memory_space<vmem>>, vector<18x16x8xf32>
    %91 = arith.truncf %90 : vector<18x16x8xf32> to vector<18x16x8xbf16>
    %92 = vector.extract_strided_slice %91 {offsets = [0, 0, 0], sizes = [16, 16, 8], strides = [1, 1, 1]} : vector<18x16x8xbf16> to vector<16x16x8xbf16>
    %93 = vector.shape_cast %92 : vector<16x16x8xbf16> to vector<256x8xbf16>
    %c0_87 = arith.constant 0 : index
    %c0_88 = arith.constant 0 : index
    %c0_89 = arith.constant 0 : index
    %94 = vector.load %arg4[%c0_87, %c0_88, %c0_89] : memref<9x8x8xbf16, #tpu.memory_space<vmem>>, vector<1x8x8xbf16>
    %95 = vector.shape_cast %94 : vector<1x8x8xbf16> to vector<8x8xbf16>
    %cst_90 = arith.constant dense<0.000000e+00> : vector<256x8xf32>
    %96 = tpu.matmul %93, %95, %cst_90 {dimension_numbers = #tpu.dot_dimension_numbers<[1], [0], [0], [1], [0, 0, 1, 1], [], []>} : vector<256x8xbf16>, vector<8x8xbf16>, vector<256x8xf32> -> vector<256x8xf32>
    %97 = arith.addf %89, %96 : vector<256x8xf32>
    %98 = vector.extract_strided_slice %91 {offsets = [1, 0, 0], sizes = [16, 16, 8], strides = [1, 1, 1]} : vector<18x16x8xbf16> to vector<16x16x8xbf16>
    %99 = vector.shape_cast %98 : vector<16x16x8xbf16> to vector<256x8xbf16>
    %c3_91 = arith.constant 3 : index
    %c0_92 = arith.constant 0 : index
    %c0_93 = arith.constant 0 : index
    %100 = vector.load %arg4[%c3_91, %c0_92, %c0_93] : memref<9x8x8xbf16, #tpu.memory_space<vmem>>, vector<1x8x8xbf16>
    %101 = vector.shape_cast %100 : vector<1x8x8xbf16> to vector<8x8xbf16>
    %cst_94 = arith.constant dense<0.000000e+00> : vector<256x8xf32>
    %102 = tpu.matmul %99, %101, %cst_94 {dimension_numbers = #tpu.dot_dimension_numbers<[1], [0], [0], [1], [0, 0, 1, 1], [], []>} : vector<256x8xbf16>, vector<8x8xbf16>, vector<256x8xf32> -> vector<256x8xf32>
    %103 = arith.addf %97, %102 : vector<256x8xf32>
    %104 = vector.extract_strided_slice %91 {offsets = [2, 0, 0], sizes = [16, 16, 8], strides = [1, 1, 1]} : vector<18x16x8xbf16> to vector<16x16x8xbf16>
    %105 = vector.shape_cast %104 : vector<16x16x8xbf16> to vector<256x8xbf16>
    %c6_95 = arith.constant 6 : index
    %c0_96 = arith.constant 0 : index
    %c0_97 = arith.constant 0 : index
    %106 = vector.load %arg4[%c6_95, %c0_96, %c0_97] : memref<9x8x8xbf16, #tpu.memory_space<vmem>>, vector<1x8x8xbf16>
    %107 = vector.shape_cast %106 : vector<1x8x8xbf16> to vector<8x8xbf16>
    %cst_98 = arith.constant dense<0.000000e+00> : vector<256x8xf32>
    %108 = tpu.matmul %105, %107, %cst_98 {dimension_numbers = #tpu.dot_dimension_numbers<[1], [0], [0], [1], [0, 0, 1, 1], [], []>} : vector<256x8xbf16>, vector<8x8xbf16>, vector<256x8xf32> -> vector<256x8xf32>
    %109 = arith.addf %103, %108 : vector<256x8xf32>
    %c0_99 = arith.constant 0 : index
    %c1_100 = arith.constant 1 : index
    %c0_101 = arith.constant 0 : index
    %110 = vector.load %arg8[%c0_99, %c1_100, %c0_101] : memref<18x18x8xf32, #tpu.memory_space<vmem>>, vector<18x16x8xf32>
    %111 = arith.truncf %110 : vector<18x16x8xf32> to vector<18x16x8xbf16>
    %112 = vector.extract_strided_slice %111 {offsets = [0, 0, 0], sizes = [16, 16, 8], strides = [1, 1, 1]} : vector<18x16x8xbf16> to vector<16x16x8xbf16>
    %113 = vector.shape_cast %112 : vector<16x16x8xbf16> to vector<256x8xbf16>
    %c1_102 = arith.constant 1 : index
    %c0_103 = arith.constant 0 : index
    %c0_104 = arith.constant 0 : index
    %114 = vector.load %arg4[%c1_102, %c0_103, %c0_104] : memref<9x8x8xbf16, #tpu.memory_space<vmem>>, vector<1x8x8xbf16>
    %115 = vector.shape_cast %114 : vector<1x8x8xbf16> to vector<8x8xbf16>
    %cst_105 = arith.constant dense<0.000000e+00> : vector<256x8xf32>
    %116 = tpu.matmul %113, %115, %cst_105 {dimension_numbers = #tpu.dot_dimension_numbers<[1], [0], [0], [1], [0, 0, 1, 1], [], []>} : vector<256x8xbf16>, vector<8x8xbf16>, vector<256x8xf32> -> vector<256x8xf32>
    %117 = arith.addf %109, %116 : vector<256x8xf32>
    %118 = vector.extract_strided_slice %111 {offsets = [1, 0, 0], sizes = [16, 16, 8], strides = [1, 1, 1]} : vector<18x16x8xbf16> to vector<16x16x8xbf16>
    %119 = vector.shape_cast %118 : vector<16x16x8xbf16> to vector<256x8xbf16>
    %c4_106 = arith.constant 4 : index
    %c0_107 = arith.constant 0 : index
    %c0_108 = arith.constant 0 : index
    %120 = vector.load %arg4[%c4_106, %c0_107, %c0_108] : memref<9x8x8xbf16, #tpu.memory_space<vmem>>, vector<1x8x8xbf16>
    %121 = vector.shape_cast %120 : vector<1x8x8xbf16> to vector<8x8xbf16>
    %cst_109 = arith.constant dense<0.000000e+00> : vector<256x8xf32>
    %122 = tpu.matmul %119, %121, %cst_109 {dimension_numbers = #tpu.dot_dimension_numbers<[1], [0], [0], [1], [0, 0, 1, 1], [], []>} : vector<256x8xbf16>, vector<8x8xbf16>, vector<256x8xf32> -> vector<256x8xf32>
    %123 = arith.addf %117, %122 : vector<256x8xf32>
    %124 = vector.extract_strided_slice %111 {offsets = [2, 0, 0], sizes = [16, 16, 8], strides = [1, 1, 1]} : vector<18x16x8xbf16> to vector<16x16x8xbf16>
    %125 = vector.shape_cast %124 : vector<16x16x8xbf16> to vector<256x8xbf16>
    %c7_110 = arith.constant 7 : index
    %c0_111 = arith.constant 0 : index
    %c0_112 = arith.constant 0 : index
    %126 = vector.load %arg4[%c7_110, %c0_111, %c0_112] : memref<9x8x8xbf16, #tpu.memory_space<vmem>>, vector<1x8x8xbf16>
    %127 = vector.shape_cast %126 : vector<1x8x8xbf16> to vector<8x8xbf16>
    %cst_113 = arith.constant dense<0.000000e+00> : vector<256x8xf32>
    %128 = tpu.matmul %125, %127, %cst_113 {dimension_numbers = #tpu.dot_dimension_numbers<[1], [0], [0], [1], [0, 0, 1, 1], [], []>} : vector<256x8xbf16>, vector<8x8xbf16>, vector<256x8xf32> -> vector<256x8xf32>
    %129 = arith.addf %123, %128 : vector<256x8xf32>
    %c0_114 = arith.constant 0 : index
    %c2_115 = arith.constant 2 : index
    %c0_116 = arith.constant 0 : index
    %130 = vector.load %arg8[%c0_114, %c2_115, %c0_116] : memref<18x18x8xf32, #tpu.memory_space<vmem>>, vector<18x16x8xf32>
    %131 = arith.truncf %130 : vector<18x16x8xf32> to vector<18x16x8xbf16>
    %132 = vector.extract_strided_slice %131 {offsets = [0, 0, 0], sizes = [16, 16, 8], strides = [1, 1, 1]} : vector<18x16x8xbf16> to vector<16x16x8xbf16>
    %133 = vector.shape_cast %132 : vector<16x16x8xbf16> to vector<256x8xbf16>
    %c2_117 = arith.constant 2 : index
    %c0_118 = arith.constant 0 : index
    %c0_119 = arith.constant 0 : index
    %134 = vector.load %arg4[%c2_117, %c0_118, %c0_119] : memref<9x8x8xbf16, #tpu.memory_space<vmem>>, vector<1x8x8xbf16>
    %135 = vector.shape_cast %134 : vector<1x8x8xbf16> to vector<8x8xbf16>
    %cst_120 = arith.constant dense<0.000000e+00> : vector<256x8xf32>
    %136 = tpu.matmul %133, %135, %cst_120 {dimension_numbers = #tpu.dot_dimension_numbers<[1], [0], [0], [1], [0, 0, 1, 1], [], []>} : vector<256x8xbf16>, vector<8x8xbf16>, vector<256x8xf32> -> vector<256x8xf32>
    %137 = arith.addf %129, %136 : vector<256x8xf32>
    %138 = vector.extract_strided_slice %131 {offsets = [1, 0, 0], sizes = [16, 16, 8], strides = [1, 1, 1]} : vector<18x16x8xbf16> to vector<16x16x8xbf16>
    %139 = vector.shape_cast %138 : vector<16x16x8xbf16> to vector<256x8xbf16>
    %c5_121 = arith.constant 5 : index
    %c0_122 = arith.constant 0 : index
    %c0_123 = arith.constant 0 : index
    %140 = vector.load %arg4[%c5_121, %c0_122, %c0_123] : memref<9x8x8xbf16, #tpu.memory_space<vmem>>, vector<1x8x8xbf16>
    %141 = vector.shape_cast %140 : vector<1x8x8xbf16> to vector<8x8xbf16>
    %cst_124 = arith.constant dense<0.000000e+00> : vector<256x8xf32>
    %142 = tpu.matmul %139, %141, %cst_124 {dimension_numbers = #tpu.dot_dimension_numbers<[1], [0], [0], [1], [0, 0, 1, 1], [], []>} : vector<256x8xbf16>, vector<8x8xbf16>, vector<256x8xf32> -> vector<256x8xf32>
    %143 = arith.addf %137, %142 : vector<256x8xf32>
    %144 = vector.extract_strided_slice %131 {offsets = [2, 0, 0], sizes = [16, 16, 8], strides = [1, 1, 1]} : vector<18x16x8xbf16> to vector<16x16x8xbf16>
    %145 = vector.shape_cast %144 : vector<16x16x8xbf16> to vector<256x8xbf16>
    %c8_125 = arith.constant 8 : index
    %c0_126 = arith.constant 0 : index
    %c0_127 = arith.constant 0 : index
    %146 = vector.load %arg4[%c8_125, %c0_126, %c0_127] : memref<9x8x8xbf16, #tpu.memory_space<vmem>>, vector<1x8x8xbf16>
    %147 = vector.shape_cast %146 : vector<1x8x8xbf16> to vector<8x8xbf16>
    %cst_128 = arith.constant dense<0.000000e+00> : vector<256x8xf32>
    %148 = tpu.matmul %145, %147, %cst_128 {dimension_numbers = #tpu.dot_dimension_numbers<[1], [0], [0], [1], [0, 0, 1, 1], [], []>} : vector<256x8xbf16>, vector<8x8xbf16>, vector<256x8xf32> -> vector<256x8xf32>
    %149 = arith.addf %143, %148 : vector<256x8xf32>
    %cst_129 = arith.constant 0.000000e+00 : f32
    %150 = vector.broadcast %cst_129 : f32 to vector<256x8xf32>
    %151 = arith.maximumf %149, %150 : vector<256x8xf32>
    %152 = vector.shape_cast %151 : vector<256x8xf32> to vector<16x16x8xf32>
    %153 = vector.shape_cast %152 : vector<16x16x8xf32> to vector<1x16x16x8xf32>
    %c0_130 = arith.constant 0 : index
    %c0_131 = arith.constant 0 : index
    %c0_132 = arith.constant 0 : index
    %c0_133 = arith.constant 0 : index
    %154 = vector.load %arg6[%c0_130, %c0_131, %c0_132, %c0_133] : memref<1x16x16x8xf32, #tpu.memory_space<vmem>>, vector<1x16x16x8xf32>
    tpu.vector_store %arg6[%c0_130, %c0_131, %c0_132, %c0_133], %153 {strides = array<i32>} : memref<1x16x16x8xf32, #tpu.memory_space<vmem>>, vector<1x16x16x8xf32>,
    return
  }
  func.func @transform_0(%arg0: i32) -> (i32, i32, i32, i32) {
    %c0_i32 = arith.constant 0 : i32
    %c0_i32_0 = arith.constant 0 : i32
    %c0_i32_1 = arith.constant 0 : i32
    %c0_i32_2 = arith.constant 0 : i32
    return %arg0, %c0_i32, %c0_i32_0, %c0_i32_1 : i32, i32, i32, i32
  }
  func.func @transform_1(%arg0: i32) -> (i32, i32, i32) {
    %c0_i32 = arith.constant 0 : i32
    %c0_i32_0 = arith.constant 0 : i32
    %c0_i32_1 = arith.constant 0 : i32
    %c0_i32_2 = arith.constant 0 : i32
    return %c0_i32, %c0_i32_0, %c0_i32_1 : i32, i32, i32
  }
  func.func @transform_2(%arg0: i32) -> (i32, i32) {
    %c0_i32 = arith.constant 0 : i32
    %c0_i32_0 = arith.constant 0 : i32
    %c0_i32_1 = arith.constant 0 : i32
    return %c0_i32, %c0_i32_0 : i32, i32
  }
  func.func @transform_3(%arg0: i32) -> (i32, i32, i32) {
    %c0_i32 = arith.constant 0 : i32
    %c0_i32_0 = arith.constant 0 : i32
    %c0_i32_1 = arith.constant 0 : i32
    %c0_i32_2 = arith.constant 0 : i32
    return %c0_i32, %c0_i32_0, %c0_i32_1 : i32, i32, i32
  }
  func.func @transform_4(%arg0: i32) -> (i32, i32) {
    %c0_i32 = arith.constant 0 : i32
    %c0_i32_0 = arith.constant 0 : i32
    %c0_i32_1 = arith.constant 0 : i32
    return %c0_i32, %c0_i32_0 : i32, i32
  }
  func.func @transform_5(%arg0: i32) -> (i32, i32, i32, i32) {
    %c0_i32 = arith.constant 0 : i32
    %c0_i32_0 = arith.constant 0 : i32
    %c0_i32_1 = arith.constant 0 : i32
    %c0_i32_2 = arith.constant 0 : i32
    return %arg0, %c0_i32, %c0_i32_0, %c0_i32_1 : i32, i32, i32, i32
  }
}

</mosaic_0001>

<llo_original>
// kernel: tpu_custom_call.1
$region0: #{tpu_custom_call.1}
  #allocation0 [shape = 'u32[]', space=smem, size = 0x4, offset = 0x4, fixed_abs, tag = 'smem constant byte address 0x4 - core index']
  #allocation1 [shape = 'u32[144,128]{1,0:T(1,128)}', space=vmem, size = 0x12000, scoped, tag = 'internal scratch']
  #allocation2 [shape = 'f32[18,18,4]{2,1,0:T(8,128)}', space=vmem, size = 0x36000, scoped, tag = 'scratch operand']
  #allocation3 [shape = 'f32[18,18,8]{2,1,0:T(8,128)}', space=vmem, size = 0x36000, scoped, tag = 'scratch operand']
  %s0 = inlined_call_operand.hbm [shape: bf16[2,16,16,4], index: 0, kind: input, shape index: {}]
  %s1 = inlined_call_operand.hbm [shape: bf16[9,4,8], index: 1, kind: input, shape index: {}]
  %s2 = inlined_call_operand.hbm [shape: f32[1,8], index: 2, kind: input, shape index: {}]
  %s3 = inlined_call_operand.hbm [shape: bf16[9,8,8], index: 3, kind: input, shape index: {}]
  %s4 = inlined_call_operand.hbm [shape: f32[1,8], index: 4, kind: input, shape index: {}]
  %s5 = inlined_call_operand.hbm [shape: f32[2,16,16,8], index: 5, kind: output, shape index: {}]
  %s6 = sld [smem:[#allocation0]]
  $region73: #{tpu_custom_call.1} parent=0
    _
  %s8 = ssub.s32 1, %s6
  %s9 = scalar_select 0, %s8, %s6
  $region1: #{tpu_custom_call.1} parent=0
    #allocation4 [shape = 'u8[131072]{0}', space=vmem, size = 0x20000, scoped, tag = 'input window, operand 0']
    #allocation5 [shape = 's32[2]{0}', space=sflag, size = 0x8, scoped, tag = 'scoped memory for tpu_custom_call.1']
    #allocation6 [shape = 's32[2]{0}', space=sflag, size = 0x8, scoped, tag = 'scoped memory for tpu_custom_call.1']
    #allocation7 [shape = 'u8[9216]{0}', space=vmem, size = 0x2400, scoped, tag = 'input window, operand 1, single buffered']
    #allocation8 [shape = 's32[1]{0}', space=sflag, size = 0x4, scoped, tag = 'scoped memory for tpu_custom_call.1']
    #allocation9 [shape = 'u8[512]{0}', space=vmem, size = 0x400, scoped, tag = 'input window, operand 2, single buffered']
    #allocation10 [shape = 'u8[18432]{0}', space=vmem, size = 0x4800, scoped, tag = 'input window, operand 3, single buffered']
    #allocation11 [shape = 's32[1]{0}', space=sflag, size = 0x4, scoped, tag = 'scoped memory for tpu_custom_call.1']
    #allocation12 [shape = 'u8[512]{0}', space=vmem, size = 0x400, scoped, tag = 'input window, operand 4, single buffered']
    #allocation13 [shape = 'u8[262144]{0}', space=vmem, size = 0x40000, scoped, tag = 'output window, operand 0']
    %10 = vsyncpa [#allocation5], 0
    %s11 = scalar_lea.sflag [#allocation5], 1
    %12 = vsyncpa %s11, 0
    %13 = vsyncpa [#allocation8], 0
    %14 = vsyncpa [#allocation11], 0
    %15 = vsyncpa [#allocation6], 0
    %s16 = scalar_lea.sflag [#allocation6], 1
    %17 = vsyncpa %s16, 0
    loop: start=0, step=1, limit=4
    $region2: #{tpu_custom_call.1} parent=1 // loop_pre_header
      _
    $region3: #{tpu_custom_call.1} parent=1 // loop_header
      %s19 = sphi 0, %s23
      %p20 = scmp.ge.s32.totalorder %s19, 4
      %s29 = sphi 0, %s31
      %s32 = sphi 0, %s29
      %s33 = sphi 0, %s32
      %s49 = sphi 0, %s33
      %s53 = sphi 0, %s53
      %s55 = sphi 0, %s53
      %s56 = sphi 0, %s55
      %s70 = sphi 0, %s56
      %s74 = sphi 0, %s74
      %s76 = sphi 0, %s74
      %s77 = sphi 0, %s76
      %s91 = sphi 0, %s77
      %s95 = sphi 0, %s95
      %s97 = sphi 0, %s95
      %s98 = sphi 0, %s97
      %s112 = sphi 0, %s98
      %s116 = sphi 0, %s116
      %s118 = sphi 0, %s116
      %s119 = sphi 0, %s118
      %s133 = sphi 0, %s119
      %s139 = sphi 0, %s141
      %s142 = sphi 0, %s139
      %s143 = sphi 0, %s142
      %s159 = sphi 0, %s143
    $region4: #{tpu_custom_call.1} parent=1 // loop_header_branch
      %22 = sbr.rel (%p20) target = $region8
    $region5: #{tpu_custom_call.1} parent=1 // loop_body
      %s24 = ssub.s32 %s19, 1
      %s25 = ssub.s32 %s19, 2
      %s26 = sadd.s32 %s19, 1
      %s27 = ssub.s32 %s19, %s26
      %p28 = scmp.eq.s32.totalorder %s27, 0
      %s30 = sadd.s32 %s29, 1
      %s31 = scalar_select %p28, %s29, %s30
      %p34 = pneg %p28
      %p35 = scmp.eq.s32.totalorder %s19, 1
      %p36 = por %p34, %p35
      %p37 = scmp.ne.s32.totalorder %s29, %s32
      %p38 = scmp.eq.s32.totalorder %s19, 0
      %p39 = por %p37, %p38
      %p40 = scmp.ne.s32.totalorder %s29, %s32
      %p41 = scmp.eq.s32.totalorder %s24, 1
      %p42 = por %p40, %p41
      %p43 = scmp.ne.s32.totalorder %s32, %s33
      %p44 = scmp.eq.s32.totalorder %s24, 0
      %p45 = por %p43, %p44
      %p46 = scmp.ne.s32.totalorder %s32, %s33
      %p47 = scmp.eq.s32.totalorder %s25, 1
      %p48 = por %p46, %p47
      %p50 = scmp.ne.s32.totalorder %s33, %s49
      %p51 = scmp.eq.s32.totalorder %s25, 0
      %p52 = por %p50, %p51
      %s54 = sadd.s32 %s53, 1
      %p57 = scmp.eq.s32.totalorder %s19, 1
      %p58 = scmp.ne.s32.totalorder %s53, %s55
      %p59 = scmp.eq.s32.totalorder %s19, 0
      %p60 = por %p58, %p59
      %p61 = scmp.ne.s32.totalorder %s53, %s55
      %p62 = scmp.eq.s32.totalorder %s24, 1
      %p63 = por %p61, %p62
      %p64 = scmp.ne.s32.totalorder %s55, %s56
      %p65 = scmp.eq.s32.totalorder %s24, 0
      %p66 = por %p64, %p65
      %p67 = scmp.ne.s32.totalorder %s55, %s56
      %p68 = scmp.eq.s32.totalorder %s25, 1
      %p69 = por %p67, %p68
      %p71 = scmp.ne.s32.totalorder %s56, %s70
      %p72 = scmp.eq.s32.totalorder %s25, 0
      %p73 = por %p71, %p72
      %s75 = sadd.s32 %s74, 1
      %p78 = scmp.eq.s32.totalorder %s19, 1
      %p79 = scmp.ne.s32.totalorder %s74, %s76
      %p80 = scmp.eq.s32.totalorder %s19, 0
      %p81 = por %p79, %p80
      %p82 = scmp.ne.s32.totalorder %s74, %s76
      %p83 = scmp.eq.s32.totalorder %s24, 1
      %p84 = por %p82, %p83
      %p85 = scmp.ne.s32.totalorder %s76, %s77
      %p86 = scmp.eq.s32.totalorder %s24, 0
      %p87 = por %p85, %p86
      %p88 = scmp.ne.s32.totalorder %s76, %s77
      %p89 = scmp.eq.s32.totalorder %s25, 1
      %p90 = por %p88, %p89
      %p92 = scmp.ne.s32.totalorder %s77, %s91
      %p93 = scmp.eq.s32.totalorder %s25, 0
      %p94 = por %p92, %p93
      %s96 = sadd.s32 %s95, 1
      %p99 = scmp.eq.s32.totalorder %s19, 1
      %p100 = scmp.ne.s32.totalorder %s95, %s97
      %p101 = scmp.eq.s32.totalorder %s19, 0
      %p102 = por %p100, %p101
      %p103 = scmp.ne.s32.totalorder %s95, %s97
      %p104 = scmp.eq.s32.totalorder %s24, 1
      %p105 = por %p103, %p104
      %p106 = scmp.ne.s32.totalorder %s97, %s98
      %p107 = scmp.eq.s32.totalorder %s24, 0
      %p108 = por %p106, %p107
      %p109 = scmp.ne.s32.totalorder %s97, %s98
      %p110 = scmp.eq.s32.totalorder %s25, 1
      %p111 = por %p109, %p110
      %p113 = scmp.ne.s32.totalorder %s98, %s112
      %p114 = scmp.eq.s32.totalorder %s25, 0
      %p115 = por %p113, %p114
      %s117 = sadd.s32 %s116, 1
      %p120 = scmp.eq.s32.totalorder %s19, 1
      %p121 = scmp.ne.s32.totalorder %s116, %s118
      %p122 = scmp.eq.s32.totalorder %s19, 0
      %p123 = por %p121, %p122
      %p124 = scmp.ne.s32.totalorder %s116, %s118
      %p125 = scmp.eq.s32.totalorder %s24, 1
      %p126 = por %p124, %p125
      %p127 = scmp.ne.s32.totalorder %s118, %s119
      %p128 = scmp.eq.s32.totalorder %s24, 0
      %p129 = por %p127, %p128
      %p130 = scmp.ne.s32.totalorder %s118, %s119
      %p131 = scmp.eq.s32.totalorder %s25, 1
      %p132 = por %p130, %p131
      %p134 = scmp.ne.s32.totalorder %s119, %s133
      %p135 = scmp.eq.s32.totalorder %s25, 0
      %p136 = por %p134, %p135
      %s137 = ssub.s32 %s19, %s26
      %p138 = scmp.eq.s32.totalorder %s137, 0
      %s140 = sadd.s32 %s139, 1
      %s141 = scalar_select %p138, %s139, %s140
      %p144 = pneg %p138
      %p145 = scmp.eq.s32.totalorder %s19, 1
      %p146 = por %p144, %p145
      %p147 = scmp.ne.s32.totalorder %s139, %s142
      %p148 = scmp.eq.s32.totalorder %s19, 0
      %p149 = por %p147, %p148
      %p150 = scmp.ne.s32.totalorder %s139, %s142
      %p151 = scmp.eq.s32.totalorder %s24, 1
      %p152 = por %p150, %p151
      %p153 = scmp.ne.s32.totalorder %s142, %s143
      %p154 = scmp.eq.s32.totalorder %s24, 0
      %p155 = por %p153, %p154
      %p156 = scmp.ne.s32.totalorder %s142, %s143
      %p157 = scmp.eq.s32.totalorder %s25, 1
      %p158 = por %p156, %p157
      %p160 = scmp.ne.s32.totalorder %s143, %s159
      %p161 = scmp.eq.s32.totalorder %s25, 0
      %p162 = por %p160, %p161
      %p163 = scmp.le.s32.totalorder 1, %s19
      %p164 = scmp.lt.s32.totalorder %s19, 3
      %p165 = pnand %p163, %p164
      %p166 = pneg %p165
      // Predicated region
      $region9: #{tpu_custom_call.1} parent=5 // pred_check
        _
      $region10: #{tpu_custom_call.1} parent=5 // pred_check_branch
        %168 = sbr.rel (%p165) target = $region12
      $region11: #{tpu_custom_call.1} parent=5 // pred_region
        %s169 = ssub.s32 %s19, 1
        // Predicated region
        $region13: #{tpu_custom_call.1} parent=11 // pred_check
          %p170 = pneg %p66
        $region14: #{tpu_custom_call.1} parent=11 // pred_check_branch
          %172 = sbr.rel (%p170) target = $region16
        $region15: #{tpu_custom_call.1} parent=11 // pred_region
          %s174 = ssub.s32 288, 288
          %175 = vsyncadd [#allocation8], %s174
          %s176 = sshll.u32 [#allocation7], 4
          %s177 = int_to_ptr.vmem [resolvable:$true] %s176
          %182 = dma.hbm_to_vmem [thread:$0]  %s1, 288, %s177, [#allocation8], 32, 32, 2
        $region16: #{tpu_custom_call.1} parent=11 // pred_fallthru
          _
        // Predicated region
        $region17: #{tpu_custom_call.1} parent=11 // pred_check
          %p183 = pneg %p87
        $region18: #{tpu_custom_call.1} parent=11 // pred_check_branch
          %185 = sbr.rel (%p183) target = $region20
        $region19: #{tpu_custom_call.1} parent=11 // pred_region
          %s187 = ssub.s32 16, 16
          %188 = vsyncadd [#allocation8], %s187
          %s190 = sshll.u32 [#allocation9], 4
          %s191 = int_to_ptr.vmem [resolvable:$true] %s190
          %193 = dma.hbm_to_vmem [thread:$0]  %s2, 16, %s191, [#allocation8]
        $region20: #{tpu_custom_call.1} parent=11 // pred_fallthru
          _
        // Predicated region
        $region21: #{tpu_custom_call.1} parent=11 // pred_check
          %p194 = pneg %p108
        $region22: #{tpu_custom_call.1} parent=11 // pred_check_branch
          %196 = sbr.rel (%p194) target = $region24
        $region23: #{tpu_custom_call.1} parent=11 // pred_region
          %s198 = ssub.s32 576, 576
          %199 = vsyncadd [#allocation11], %s198
          %s200 = sshll.u32 [#allocation10], 4
          %s201 = int_to_ptr.vmem [resolvable:$true] %s200
          %206 = dma.hbm_to_vmem [thread:$0]  %s3, 576, %s201, [#allocation11], 64, 64, 4
        $region24: #{tpu_custom_call.1} parent=11 // pred_fallthru
          _
        // Predicated region
        $region25: #{tpu_custom_call.1} parent=11 // pred_check
          %p207 = pneg %p129
        $region26: #{tpu_custom_call.1} parent=11 // pred_check_branch
          %209 = sbr.rel (%p207) target = $region28
        $region27: #{tpu_custom_call.1} parent=11 // pred_region
          %s211 = ssub.s32 16, 16
          %212 = vsyncadd [#allocation11], %s211
          %s214 = sshll.u32 [#allocation12], 4
          %s215 = int_to_ptr.vmem [resolvable:$true] %s214
          %217 = dma.hbm_to_vmem [thread:$0]  %s4, 16, %s215, [#allocation11]
        $region28: #{tpu_custom_call.1} parent=11 // pred_fallthru
          _
      $region12: #{tpu_custom_call.1} parent=5 // pred_fallthru
        _
      %p218 = scmp.lt.s32.totalorder %s19, 2
      // Predicated region
      $region29: #{tpu_custom_call.1} parent=5 // pred_check
        %p219 = pneg %p218
      $region30: #{tpu_custom_call.1} parent=5 // pred_check_branch
        %221 = sbr.rel (%p219) target = $region32
      $region31: #{tpu_custom_call.1} parent=5 // pred_region
        // Predicated region
        $region33: #{tpu_custom_call.1} parent=31 // pred_check
          %p222 = pneg %p39
        $region34: #{tpu_custom_call.1} parent=31 // pred_check_branch
          %224 = sbr.rel (%p222) target = $region36
        $region35: #{tpu_custom_call.1} parent=31 // pred_region
          %s225 = sand.u32 %s29, 1
          %s226 = scalar_lea.sflag [#allocation5], %s225
          %s227 = sand.u32 %s29, 1
          %s228 = smul.addr %s227, 128
          %s229 = scalar_lea.vmem [#allocation4], %s228
          %s231 = ssub.s32 2048, 2048
          %232 = vsyncadd %s226, %s231
          %s233 = smul.addr %s19, 32
          %s234 = smul.addr %s233, 64
          %s235 = scalar_lea.hbm %s0, %s234
          %s236 = sshll.u32 %s229, 4
          %s237 = int_to_ptr.vmem [resolvable:$true] %s236
          %242 = dma.hbm_to_vmem [thread:$0]  %s235, 2048, %s237, %s226, 64, 64, 4
        $region36: #{tpu_custom_call.1} parent=31 // pred_fallthru
          _
      $region32: #{tpu_custom_call.1} parent=5 // pred_fallthru
        _
      %p243 = scmp.le.s32.totalorder 1, %s19
      %p244 = scmp.lt.s32.totalorder %s19, 3
      %p245 = pnand %p243, %p244
      %p246 = pneg %p245
      // Predicated region
      $region37: #{tpu_custom_call.1} parent=5 // pred_check
        _
      $region38: #{tpu_custom_call.1} parent=5 // pred_check_branch
        %248 = sbr.rel (%p245) target = $region40
      $region39: #{tpu_custom_call.1} parent=5 // pred_region
        %s249 = ssub.s32 %s19, 1
        %s250 = sand.u32 %s32, 1
        %s251 = scalar_lea.sflag [#allocation5], %s250
        %s252 = sand.u32 %s32, 1
        %s253 = smul.addr %s252, 128
        %s254 = scalar_lea.vmem [#allocation4], %s253
        // Predicated region
        $region41: #{tpu_custom_call.1} parent=39 // pred_check
          %p255 = pneg %p45
        $region42: #{tpu_custom_call.1} parent=39 // pred_check_branch
          %257 = sbr.rel (%p255) target = $region44
        $region43: #{tpu_custom_call.1} parent=39 // pred_region
          %258 = dma.done %s251, 2048
        $region44: #{tpu_custom_call.1} parent=39 // pred_fallthru
          _
        // Predicated region
        $region45: #{tpu_custom_call.1} parent=39 // pred_check
          %p259 = pneg %p66
        $region46: #{tpu_custom_call.1} parent=39 // pred_check_branch
          %261 = sbr.rel (%p259) target = $region48
        $region47: #{tpu_custom_call.1} parent=39 // pred_region
          %262 = dma.done [#allocation8], 288
        $region48: #{tpu_custom_call.1} parent=39 // pred_fallthru
          _
        // Predicated region
        $region49: #{tpu_custom_call.1} parent=39 // pred_check
          %p263 = pneg %p87
        $region50: #{tpu_custom_call.1} parent=39 // pred_check_branch
          %265 = sbr.rel (%p263) target = $region52
        $region51: #{tpu_custom_call.1} parent=39 // pred_region
          %266 = dma.done [#allocation8], 16
        $region52: #{tpu_custom_call.1} parent=39 // pred_fallthru
          _
        // Predicated region
        $region53: #{tpu_custom_call.1} parent=39 // pred_check
          %p267 = pneg %p108
        $region54: #{tpu_custom_call.1} parent=39 // pred_check_branch
          %269 = sbr.rel (%p267) target = $region56
        $region55: #{tpu_custom_call.1} parent=39 // pred_region
          %270 = dma.done [#allocation11], 576
        $region56: #{tpu_custom_call.1} parent=39 // pred_fallthru
          _
        // Predicated region
        $region57: #{tpu_custom_call.1} parent=39 // pred_check
          %p271 = pneg %p129
        $region58: #{tpu_custom_call.1} parent=39 // pred_check_branch
          %273 = sbr.rel (%p271) target = $region60
        $region59: #{tpu_custom_call.1} parent=39 // pred_region
          %274 = dma.done [#allocation11], 16
        $region60: #{tpu_custom_call.1} parent=39 // pred_fallthru
          _
        %s275 = sand.u32 %s32, 1
        %s276 = scalar_lea.sflag [#allocation5], %s275
        %s277 = sand.u32 %s32, 1
        %s278 = smul.addr %s277, 128
        %s279 = scalar_lea.vmem [#allocation4], %s278
        %p280 = pneg %p45
        %p281 = pneg %p42
        %p282 = pneg %p66
        %p283 = pneg %p63
        %p284 = pneg %p87
        %p285 = pneg %p84
        %p286 = pneg %p108
        %p287 = pneg %p105
        %p288 = pneg %p129
        %p289 = pneg %p126
        %p290 = pneg %p155
        %p291 = pneg %p152
        %s292 = sand.u32 %s142, 1
        %s293 = scalar_lea.sflag [#allocation6], %s292
        %s294 = sand.u32 %s142, 1
        %s295 = smul.addr %s294, 256
        %s296 = scalar_lea.vmem [#allocation13], %s295
        %v298 = vld [vmem:[%s254] sm:$0xf]
        %v299 = vld [vmem:[%s254 + $0x4] sm:$0xf]
        %v300 = vld [vmem:[%s254 + $0x8] sm:$0xf]
        %v301 = vld [vmem:[%s254 + $0xc] sm:$0xf]
        %v302 = vld [vmem:[%s254 + $0x10] sm:$0xf]
        %v303 = vld [vmem:[%s254 + $0x14] sm:$0xf]
        %v304 = vld [vmem:[%s254 + $0x18] sm:$0xf]
        %v305 = vld [vmem:[%s254 + $0x1c] sm:$0xf]
        %v306 = vld [vmem:[%s254 + $0x20] sm:$0xf]
        %v307 = vld [vmem:[%s254 + $0x24] sm:$0xf]
        %v308 = vld [vmem:[%s254 + $0x28] sm:$0xf]
        %v309 = vld [vmem:[%s254 + $0x2c] sm:$0xf]
        %v310 = vld [vmem:[%s254 + $0x30] sm:$0xf]
        %v311 = vld [vmem:[%s254 + $0x34] sm:$0xf]
        %v312 = vld [vmem:[%s254 + $0x38] sm:$0xf]
        %v313 = vld [vmem:[%s254 + $0x3c] sm:$0xf]
        %v314 = vld [vmem:[%s254 + $0x40] sm:$0xf]
        %v315 = vld [vmem:[%s254 + $0x44] sm:$0xf]
        %v316 = vld [vmem:[%s254 + $0x48] sm:$0xf]
        %v317 = vld [vmem:[%s254 + $0x4c] sm:$0xf]
        %v318 = vld [vmem:[%s254 + $0x50] sm:$0xf]
        %v319 = vld [vmem:[%s254 + $0x54] sm:$0xf]
        %v320 = vld [vmem:[%s254 + $0x58] sm:$0xf]
        %v321 = vld [vmem:[%s254 + $0x5c] sm:$0xf]
        %v322 = vld [vmem:[%s254 + $0x60] sm:$0xf]
        %v323 = vld [vmem:[%s254 + $0x64] sm:$0xf]
        %v324 = vld [vmem:[%s254 + $0x68] sm:$0xf]
        %v325 = vld [vmem:[%s254 + $0x6c] sm:$0xf]
        %v326 = vld [vmem:[%s254 + $0x70] sm:$0xf]
        %v327 = vld [vmem:[%s254 + $0x74] sm:$0xf]
        %v328 = vld [vmem:[%s254 + $0x78] sm:$0xf]
        %v329 = vld [vmem:[%s254 + $0x7c] sm:$0xf]
        %v330 = vunpack.c.l.bf16 %v298
        %v331 = vunpack.c.l.bf16 %v299
        %v332 = vunpack.c.l.bf16 %v300
        %v333 = vunpack.c.l.bf16 %v301
        %v334 = vunpack.c.l.bf16 %v302
        %v335 = vunpack.c.l.bf16 %v303
        %v336 = vunpack.c.l.bf16 %v304
        %v337 = vunpack.c.l.bf16 %v305
        %v338 = vunpack.c.l.bf16 %v306
        %v339 = vunpack.c.l.bf16 %v307
        %v340 = vunpack.c.l.bf16 %v308
        %v341 = vunpack.c.l.bf16 %v309
        %v342 = vunpack.c.l.bf16 %v310
        %v343 = vunpack.c.l.bf16 %v311
        %v344 = vunpack.c.l.bf16 %v312
        %v345 = vunpack.c.l.bf16 %v313
        %v346 = vunpack.c.l.bf16 %v314
        %v347 = vunpack.c.l.bf16 %v315
        %v348 = vunpack.c.l.bf16 %v316
        %v349 = vunpack.c.l.bf16 %v317
        %v350 = vunpack.c.l.bf16 %v318
        %v351 = vunpack.c.l.bf16 %v319
        %v352 = vunpack.c.l.bf16 %v320
        %v353 = vunpack.c.l.bf16 %v321
        %v354 = vunpack.c.l.bf16 %v322
        %v355 = vunpack.c.l.bf16 %v323
        %v356 = vunpack.c.l.bf16 %v324
        %v357 = vunpack.c.l.bf16 %v325
        %v358 = vunpack.c.l.bf16 %v326
        %v359 = vunpack.c.l.bf16 %v327
        %v360 = vunpack.c.l.bf16 %v328
        %v361 = vunpack.c.l.bf16 %v329
        %s362 = scalar_lea.vmem [#allocation2], 24
        %vm363 = vcmask 31744
        %364 = vst.msk [vmem:[%s362 + $0x1] sm:$0xff] %vm363, %v330
        %365 = vst.msk [vmem:[%s362 + $0x9] sm:$0xff] %vm363, %v331
        %366 = vst.msk [vmem:[%s362 + $0x19] sm:$0xff] %vm363, %v332
        %367 = vst.msk [vmem:[%s362 + $0x21] sm:$0xff] %vm363, %v333
        %368 = vst.msk [vmem:[%s362 + $0x31] sm:$0xff] %vm363, %v334
        %369 = vst.msk [vmem:[%s362 + $0x39] sm:$0xff] %vm363, %v335
        %370 = vst.msk [vmem:[%s362 + $0x49] sm:$0xff] %vm363, %v336
        %371 = vst.msk [vmem:[%s362 + $0x51] sm:$0xff] %vm363, %v337
        %372 = vst.msk [vmem:[%s362 + $0x61] sm:$0xff] %vm363, %v338
        %373 = vst.msk [vmem:[%s362 + $0x69] sm:$0xff] %vm363, %v339
        %374 = vst.msk [vmem:[%s362 + $0x79] sm:$0xff] %vm363, %v340
        %375 = vst.msk [vmem:[%s362 + $0x81] sm:$0xff] %vm363, %v341
        %376 = vst.msk [vmem:[%s362 + $0x91] sm:$0xff] %vm363, %v342
        %377 = vst.msk [vmem:[%s362 + $0x99] sm:$0xff] %vm363, %v343
        %378 = vst.msk [vmem:[%s362 + $0xa9] sm:$0xff] %vm363, %v344
        %379 = vst.msk [vmem:[%s362 + $0xb1] sm:$0xff] %vm363, %v345
        %380 = vst.msk [vmem:[%s362 + $0xc1] sm:$0xff] %vm363, %v346
        %381 = vst.msk [vmem:[%s362 + $0xc9] sm:$0xff] %vm363, %v347
        %382 = vst.msk [vmem:[%s362 + $0xd9] sm:$0xff] %vm363, %v348
        %383 = vst.msk [vmem:[%s362 + $0xe1] sm:$0xff] %vm363, %v349
        %384 = vst.msk [vmem:[%s362 + $0xf1] sm:$0xff] %vm363, %v350
        %385 = vst.msk [vmem:[%s362 + $0xf9] sm:$0xff] %vm363, %v351
        %386 = vst.msk [vmem:[%s362 + $0x109] sm:$0xff] %vm363, %v352
        %387 = vst.msk [vmem:[%s362 + $0x111] sm:$0xff] %vm363, %v353
        %388 = vst.msk [vmem:[%s362 + $0x121] sm:$0xff] %vm363, %v354
        %389 = vst.msk [vmem:[%s362 + $0x129] sm:$0xff] %vm363, %v355
        %390 = vst.msk [vmem:[%s362 + $0x139] sm:$0xff] %vm363, %v356
        %391 = vst.msk [vmem:[%s362 + $0x141] sm:$0xff] %vm363, %v357
        %392 = vst.msk [vmem:[%s362 + $0x151] sm:$0xff] %vm363, %v358
        %393 = vst.msk [vmem:[%s362 + $0x159] sm:$0xff] %vm363, %v359
        %394 = vst.msk [vmem:[%s362 + $0x169] sm:$0xff] %vm363, %v360
        %395 = vst.msk [vmem:[%s362 + $0x171] sm:$0xff] %vm363, %v361
        %396 = vst.msk [vmem:[#allocation2 + $0x1] sm:$0xff] %vm363, %v360
        %397 = vst.msk [vmem:[#allocation2 + $0x9] sm:$0xff] %vm363, %v361
        %s398 = scalar_lea.vmem [#allocation2], 408
        %399 = vst.msk [vmem:[%s398 + $0x1] sm:$0xff] %vm363, %v330
        %400 = vst.msk [vmem:[%s398 + $0x9] sm:$0xff] %vm363, %v331
        %v401 = vld [vmem:[#allocation2 + $0x10] sm:$0x1]
        %v402 = vld [vmem:[#allocation2 + $0x28] sm:$0x1]
        %v403 = vld [vmem:[#allocation2 + $0x40] sm:$0x1]
        %v404 = vld [vmem:[#allocation2 + $0x58] sm:$0x1]
        %v405 = vld [vmem:[#allocation2 + $0x70] sm:$0x1]
        %v406 = vld [vmem:[#allocation2 + $0x88] sm:$0x1]
        %v407 = vld [vmem:[#allocation2 + $0xa0] sm:$0x1]
        %v408 = vld [vmem:[#allocation2 + $0xb8] sm:$0x1]
        %v409 = vld [vmem:[#allocation2 + $0xd0] sm:$0x1]
        %v410 = vld [vmem:[#allocation2 + $0xe8] sm:$0x1]
        %v411 = vld [vmem:[#allocation2 + $0x100] sm:$0x1]
        %v412 = vld [vmem:[#allocation2 + $0x118] sm:$0x1]
        %v413 = vld [vmem:[#allocation2 + $0x130] sm:$0x1]
        %v414 = vld [vmem:[#allocation2 + $0x148] sm:$0x1]
        %v415 = vld [vmem:[#allocation2 + $0x160] sm:$0x1]
        %v416 = vld [vmem:[#allocation2 + $0x178] sm:$0x1]
        %v417 = vld [vmem:[#allocation2 + $0x190] sm:$0x1]
        %v418 = vld [vmem:[#allocation2 + $0x1a8] sm:$0x1]
        %vm419 = vcmask 24576
        %420 = vst.msk [vmem:[#allocation2] sm:$0x1] %vm419, %v401
        %421 = vst.msk [vmem:[#allocation2 + $0x18] sm:$0x1] %vm419, %v402
        %422 = vst.msk [vmem:[#allocation2 + $0x30] sm:$0x1] %vm419, %v403
        %423 = vst.msk [vmem:[#allocation2 + $0x48] sm:$0x1] %vm419, %v404
        %424 = vst.msk [vmem:[#allocation2 + $0x60] sm:$0x1] %vm419, %v405
        %425 = vst.msk [vmem:[#allocation2 + $0x78] sm:$0x1] %vm419, %v406
        %426 = vst.msk [vmem:[#allocation2 + $0x90] sm:$0x1] %vm419, %v407
        %427 = vst.msk [vmem:[#allocation2 + $0xa8] sm:$0x1] %vm419, %v408
        %428 = vst.msk [vmem:[#allocation2 + $0xc0] sm:$0x1] %vm419, %v409
        %429 = vst.msk [vmem:[#allocation2 + $0xd8] sm:$0x1] %vm419, %v410
        %430 = vst.msk [vmem:[#allocation2 + $0xf0] sm:$0x1] %vm419, %v411
        %431 = vst.msk [vmem:[#allocation2 + $0x108] sm:$0x1] %vm419, %v412
        %432 = vst.msk [vmem:[#allocation2 + $0x120] sm:$0x1] %vm419, %v413
        %433 = vst.msk [vmem:[#allocation2 + $0x138] sm:$0x1] %vm419, %v414
        %434 = vst.msk [vmem:[#allocation2 + $0x150] sm:$0x1] %vm419, %v415
        %435 = vst.msk [vmem:[#allocation2 + $0x168] sm:$0x1] %vm419, %v416
        %436 = vst.msk [vmem:[#allocation2 + $0x180] sm:$0x1] %vm419, %v417
        %437 = vst.msk [vmem:[#allocation2 + $0x198] sm:$0x1] %vm419, %v418
        %v438 = vld [vmem:[#allocation2 + $0x1] sm:$0x1]
        %v439 = vld [vmem:[#allocation2 + $0x19] sm:$0x1]
        %v440 = vld [vmem:[#allocation2 + $0x31] sm:$0x1]
        %v441 = vld [vmem:[#allocation2 + $0x49] sm:$0x1]
        %v442 = vld [vmem:[#allocation2 + $0x61] sm:$0x1]
        %v443 = vld [vmem:[#allocation2 + $0x79] sm:$0x1]
        %v444 = vld [vmem:[#allocation2 + $0x91] sm:$0x1]
        %v445 = vld [vmem:[#allocation2 + $0xa9] sm:$0x1]
        %v446 = vld [vmem:[#allocation2 + $0xc1] sm:$0x1]
        %v447 = vld [vmem:[#allocation2 + $0xd9] sm:$0x1]
        %v448 = vld [vmem:[#allocation2 + $0xf1] sm:$0x1]
        %v449 = vld [vmem:[#allocation2 + $0x109] sm:$0x1]
        %v450 = vld [vmem:[#allocation2 + $0x121] sm:$0x1]
        %v451 = vld [vmem:[#allocation2 + $0x139] sm:$0x1]
        %v452 = vld [vmem:[#allocation2 + $0x151] sm:$0x1]
        %v453 = vld [vmem:[#allocation2 + $0x169] sm:$0x1]
        %v454 = vld [vmem:[#allocation2 + $0x181] sm:$0x1]
        %v455 = vld [vmem:[#allocation2 + $0x199] sm:$0x1]
        %456 = vst.msk [vmem:[#allocation2 + $0x11] sm:$0x1] %vm419, %v438
        %457 = vst.msk [vmem:[#allocation2 + $0x29] sm:$0x1] %vm419, %v439
        %458 = vst.msk [vmem:[#allocation2 + $0x41] sm:$0x1] %vm419, %v440
        %459 = vst.msk [vmem:[#allocation2 + $0x59] sm:$0x1] %vm419, %v441
        %460 = vst.msk [vmem:[#allocation2 + $0x71] sm:$0x1] %vm419, %v442
        %461 = vst.msk [vmem:[#allocation2 + $0x89] sm:$0x1] %vm419, %v443
        %462 = vst.msk [vmem:[#allocation2 + $0xa1] sm:$0x1] %vm419, %v444
        %463 = vst.msk [vmem:[#allocation2 + $0xb9] sm:$0x1] %vm419, %v445
        %464 = vst.msk [vmem:[#allocation2 + $0xd1] sm:$0x1] %vm419, %v446
        %465 = vst.msk [vmem:[#allocation2 + $0xe9] sm:$0x1] %vm419, %v447
        %466 = vst.msk [vmem:[#allocation2 + $0x101] sm:$0x1] %vm419, %v448
        %467 = vst.msk [vmem:[#allocation2 + $0x119] sm:$0x1] %vm419, %v449
        %468 = vst.msk [vmem:[#allocation2 + $0x131] sm:$0x1] %vm419, %v450
        %469 = vst.msk [vmem:[#allocation2 + $0x149] sm:$0x1] %vm419, %v451
        %470 = vst.msk [vmem:[#allocation2 + $0x161] sm:$0x1] %vm419, %v452
        %471 = vst.msk [vmem:[#allocation2 + $0x179] sm:$0x1] %vm419, %v453
        %472 = vst.msk [vmem:[#allocation2 + $0x191] sm:$0x1] %vm419, %v454
        %473 = vst.msk [vmem:[#allocation2 + $0x1a9] sm:$0x1] %vm419, %v455
        %v474 = vld [vmem:[#allocation9] sm:$0x1]
        %v476 = vlaneseq
        %v477 = vshrl.u32 %v476, 7
        %v478 = vsub.s32 0, %v477
        %v479 = vrot.slane %v474, %v478
        %v481 = vld [vmem:[#allocation2] sm:$0xff]
        %v482 = vld [vmem:[#allocation2 + $0x8] sm:$0xff]
        %v483 = vld [vmem:[#allocation2 + $0x18] sm:$0xff]
        %v484 = vld [vmem:[#allocation2 + $0x20] sm:$0xff]
        %v485 = vld [vmem:[#allocation2 + $0x30] sm:$0xff]
        %v486 = vld [vmem:[#allocation2 + $0x38] sm:$0xff]
        %v487 = vld [vmem:[#allocation2 + $0x48] sm:$0xff]
        %v488 = vld [vmem:[#allocation2 + $0x50] sm:$0xff]
        %v489 = vld [vmem:[#allocation2 + $0x60] sm:$0xff]
        %v490 = vld [vmem:[#allocation2 + $0x68] sm:$0xff]
        %v491 = vld [vmem:[#allocation2 + $0x78] sm:$0xff]
        %v492 = vld [vmem:[#allocation2 + $0x80] sm:$0xff]
        %v493 = vld [vmem:[#allocation2 + $0x90] sm:$0xff]
        %v494 = vld [vmem:[#allocation2 + $0x98] sm:$0xff]
        %v495 = vld [vmem:[#allocation2 + $0xa8] sm:$0xff]
        %v496 = vld [vmem:[#allocation2 + $0xb0] sm:$0xff]
        %v497 = vld [vmem:[#allocation2 + $0xc0] sm:$0xff]
        %v498 = vld [vmem:[#allocation2 + $0xc8] sm:$0xff]
        %v499 = vld [vmem:[#allocation2 + $0xd8] sm:$0xff]
        %v500 = vld [vmem:[#allocation2 + $0xe0] sm:$0xff]
        %v501 = vld [vmem:[#allocation2 + $0xf0] sm:$0xff]
        %v502 = vld [vmem:[#allocation2 + $0xf8] sm:$0xff]
        %v503 = vld [vmem:[#allocation2 + $0x108] sm:$0xff]
        %v504 = vld [vmem:[#allocation2 + $0x110] sm:$0xff]
        %v505 = vld [vmem:[#allocation2 + $0x120] sm:$0xff]
        %v506 = vld [vmem:[#allocation2 + $0x128] sm:$0xff]
        %v507 = vld [vmem:[#allocation2 + $0x138] sm:$0xff]
        %v508 = vld [vmem:[#allocation2 + $0x140] sm:$0xff]
        %v509 = vld [vmem:[#allocation2 + $0x150] sm:$0xff]
        %v510 = vld [vmem:[#allocation2 + $0x158] sm:$0xff]
        %v511 = vld [vmem:[#allocation2 + $0x168] sm:$0xff]
        %v512 = vld [vmem:[#allocation2 + $0x170] sm:$0xff]
        %v513 = vld [vmem:[#allocation2 + $0x180] sm:$0xff]
        %v514 = vld [vmem:[#allocation2 + $0x188] sm:$0xff]
        %v515 = vld [vmem:[#allocation2 + $0x198] sm:$0xff]
        %v516 = vld [vmem:[#allocation2 + $0x1a0] sm:$0xff]
        %v517 = vpack.c.bf16 %v482, %v481
        %v518 = vpack.c.bf16 %v484, %v483
        %v519 = vpack.c.bf16 %v486, %v485
        %v520 = vpack.c.bf16 %v488, %v487
        %v521 = vpack.c.bf16 %v490, %v489
        %v522 = vpack.c.bf16 %v492, %v491
        %v523 = vpack.c.bf16 %v494, %v493
        %v524 = vpack.c.bf16 %v496, %v495
        %v525 = vpack.c.bf16 %v498, %v497
        %v526 = vpack.c.bf16 %v500, %v499
        %v527 = vpack.c.bf16 %v502, %v501
        %v528 = vpack.c.bf16 %v504, %v503
        %v529 = vpack.c.bf16 %v506, %v505
        %v530 = vpack.c.bf16 %v508, %v507
        %v531 = vpack.c.bf16 %v510, %v509
        %v532 = vpack.c.bf16 %v512, %v511
        %v533 = vpack.c.bf16 %v514, %v513
        %v534 = vpack.c.bf16 %v516, %v515
        %v535 = vld [vmem:[#allocation7] sm:$0x3]
        %v537 = vsel %vm363, %v517, 0
        %v540 = vsel %vm363, %v518, 0
        %v543 = vsel %vm363, %v519, 0
        %v546 = vsel %vm363, %v520, 0
        %v549 = vsel %vm363, %v521, 0
        %v552 = vsel %vm363, %v522, 0
        %v555 = vsel %vm363, %v523, 0
        %v558 = vsel %vm363, %v524, 0
        %v561 = vsel %vm363, %v525, 0
        %v564 = vsel %vm363, %v526, 0
        %v567 = vsel %vm363, %v527, 0
        %v570 = vsel %vm363, %v528, 0
        %v573 = vsel %vm363, %v529, 0
        %v576 = vsel %vm363, %v530, 0
        %v579 = vsel %vm363, %v531, 0
        %v582 = vsel %vm363, %v532, 0
        %vm584 = vcmask 1041408
        %v586 = vsel %vm584, %v535, 0
        %588 = vmatprep.subr.bf16.mxu0 0
        %589 = vmatpush1.bf16.msra.mxu0 %v586
        %590 = vmatprep.subr.bf16.mxu0 0
        %591 = vmatpush1.bf16.msra.mxu0 0
        %592 = vmatprep.subr.bf16.mxu0 0
        %593 = vmatpush1.bf16.msra.mxu0 0
        %594 = vmatprep.subr.bf16.mxu0 0
        %595 = vmatpush1.bf16.msra.mxu0 0
        %596 = vmatprep.subr.bf16.mxu0 0
        %597 = vmatpush1.bf16.msra.mxu0 0
        %598 = vmatprep.subr.bf16.mxu0 0
        %599 = vmatpush1.bf16.msra.mxu0 0
        %600 = vmatprep.subr.bf16.mxu0 0
        %601 = vmatpush1.bf16.msra.mxu0 0
        %602 = vmatprep.subr.bf16.mxu0 0
        %603 = vmatpush1.bf16.msra.mxu0 0
        %604 = vmatprep.subr.bf16.mxu0 0
        %605 = vmatpush1.bf16.msra.mxu0 0
        %606 = vmatprep.subr.bf16.mxu0 0
        %607 = vmatpush1.bf16.msra.mxu0 0
        %608 = vmatprep.subr.bf16.mxu0 0
        %609 = vmatpush1.bf16.msra.mxu0 0
        %610 = vmatprep.subr.bf16.mxu0 0
        %611 = vmatpush1.bf16.msra.mxu0 0
        %612 = vmatprep.subr.bf16.mxu0 0
        %613 = vmatpush1.bf16.msra.mxu0 0
        %614 = vmatprep.subr.bf16.mxu0 0
        %615 = vmatpush1.bf16.msra.mxu0 0
        %616 = vmatprep.subr.bf16.mxu0 0
        %617 = vmatpush1.bf16.msra.mxu0 0
        %618 = vmatprep.subr.bf16.mxu0 0
        %619 = vmatpush1.bf16.msra.mxu0 0
        %620 = vmatprep.mubr.bf16.mxu0 0
        %621 = vmatmul.mubr.bf16.gmra.mrb[0].mxu0 %v537
        %v622 = vpop.f32.mrb[0].mxu0
        %v623 = vadd.f32 0.0, %v622
        %v624 = vpop.f32.mrb[0].mxu0
        %v625 = vpop.f32.mrb[0].mxu0
        %v626 = vadd.f32 0.0, %v625
        %v627 = vpop.f32.mrb[0].mxu0
        %628 = vmatprep.mubr.bf16.mxu0 0
        %629 = vmatmul.mubr.bf16.gmra.mrb[0].mxu0 %v540
        %v630 = vpop.f32.mrb[0].mxu0
        %v631 = vadd.f32 0.0, %v630
        %v632 = vpop.f32.mrb[0].mxu0
        %v633 = vpop.f32.mrb[0].mxu0
        %v634 = vadd.f32 0.0, %v633
        %v635 = vpop.f32.mrb[0].mxu0
        %636 = vmatprep.mubr.bf16.mxu0 0
        %637 = vmatmul.mubr.bf16.gmra.mrb[0].mxu0 %v543
        %v638 = vpop.f32.mrb[0].mxu0
        %v639 = vadd.f32 0.0, %v638
        %v640 = vpop.f32.mrb[0].mxu0
        %v641 = vpop.f32.mrb[0].mxu0
        %v642 = vadd.f32 0.0, %v641
        %v643 = vpop.f32.mrb[0].mxu0
        %644 = vmatprep.mubr.bf16.mxu0 0
        %645 = vmatmul.mubr.bf16.gmra.mrb[0].mxu0 %v546
        %v646 = vpop.f32.mrb[0].mxu0
        %v647 = vadd.f32 0.0, %v646
        %v648 = vpop.f32.mrb[0].mxu0
        %v649 = vpop.f32.mrb[0].mxu0
        %v650 = vadd.f32 0.0, %v649
        %v651 = vpop.f32.mrb[0].mxu0
        %652 = vmatprep.mubr.bf16.mxu0 0
        %653 = vmatmul.mubr.bf16.gmra.mrb[0].mxu0 %v549
        %v654 = vpop.f32.mrb[0].mxu0
        %v655 = vadd.f32 0.0, %v654
        %v656 = vpop.f32.mrb[0].mxu0
        %v657 = vpop.f32.mrb[0].mxu0
        %v658 = vadd.f32 0.0, %v657
        %v659 = vpop.f32.mrb[0].mxu0
        %660 = vmatprep.mubr.bf16.mxu0 0
        %661 = vmatmul.mubr.bf16.gmra.mrb[0].mxu0 %v552
        %v662 = vpop.f32.mrb[0].mxu0
        %v663 = vadd.f32 0.0, %v662
        %v664 = vpop.f32.mrb[0].mxu0
        %v665 = vpop.f32.mrb[0].mxu0
        %v666 = vadd.f32 0.0, %v665
        %v667 = vpop.f32.mrb[0].mxu0
        %668 = vmatprep.mubr.bf16.mxu0 0
        %669 = vmatmul.mubr.bf16.gmra.mrb[0].mxu0 %v555
        %v670 = vpop.f32.mrb[0].mxu0
        %v671 = vadd.f32 0.0, %v670
        %v672 = vpop.f32.mrb[0].mxu0
        %v673 = vpop.f32.mrb[0].mxu0
        %v674 = vadd.f32 0.0, %v673
        %v675 = vpop.f32.mrb[0].mxu0
        %676 = vmatprep.mubr.bf16.mxu0 0
        %677 = vmatmul.mubr.bf16.gmra.mrb[0].mxu0 %v558
        %v678 = vpop.f32.mrb[0].mxu0
        %v679 = vadd.f32 0.0, %v678
        %v680 = vpop.f32.mrb[0].mxu0
        %v681 = vpop.f32.mrb[0].mxu0
        %v682 = vadd.f32 0.0, %v681
        %v683 = vpop.f32.mrb[0].mxu0
        %684 = vmatprep.mubr.bf16.mxu0 0
        %685 = vmatmul.mubr.bf16.gmra.mrb[0].mxu0 %v561
        %v686 = vpop.f32.mrb[0].mxu0
        %v687 = vadd.f32 0.0, %v686
        %v688 = vpop.f32.mrb[0].mxu0
        %v689 = vpop.f32.mrb[0].mxu0
        %v690 = vadd.f32 0.0, %v689
        %v691 = vpop.f32.mrb[0].mxu0
        %692 = vmatprep.mubr.bf16.mxu0 0
        %693 = vmatmul.mubr.bf16.gmra.mrb[0].mxu0 %v564
        %v694 = vpop.f32.mrb[0].mxu0
        %v695 = vadd.f32 0.0, %v694
        %v696 = vpop.f32.mrb[0].mxu0
        %v697 = vpop.f32.mrb[0].mxu0
        %v698 = vadd.f32 0.0, %v697
        %v699 = vpop.f32.mrb[0].mxu0
        %700 = vmatprep.mubr.bf16.mxu0 0
        %701 = vmatmul.mubr.bf16.gmra.mrb[0].mxu0 %v567
        %v702 = vpop.f32.mrb[0].mxu0
        %v703 = vadd.f32 0.0, %v702
        %v704 = vpop.f32.mrb[0].mxu0
        %v705 = vpop.f32.mrb[0].mxu0
        %v706 = vadd.f32 0.0, %v705
        %v707 = vpop.f32.mrb[0].mxu0
        %708 = vmatprep.mubr.bf16.mxu0 0
        %709 = vmatmul.mubr.bf16.gmra.mrb[0].mxu0 %v570
        %v710 = vpop.f32.mrb[0].mxu0
        %v711 = vadd.f32 0.0, %v710
        %v712 = vpop.f32.mrb[0].mxu0
        %v713 = vpop.f32.mrb[0].mxu0
        %v714 = vadd.f32 0.0, %v713
        %v715 = vpop.f32.mrb[0].mxu0
        %716 = vmatprep.mubr.bf16.mxu0 0
        %717 = vmatmul.mubr.bf16.gmra.mrb[0].mxu0 %v573
        %v718 = vpop.f32.mrb[0].mxu0
        %v719 = vadd.f32 0.0, %v718
        %v720 = vpop.f32.mrb[0].mxu0
        %v721 = vpop.f32.mrb[0].mxu0
        %v722 = vadd.f32 0.0, %v721
        %v723 = vpop.f32.mrb[0].mxu0
        %724 = vmatprep.mubr.bf16.mxu0 0
        %725 = vmatmul.mubr.bf16.gmra.mrb[0].mxu0 %v576
        %v726 = vpop.f32.mrb[0].mxu0
        %v727 = vadd.f32 0.0, %v726
        %v728 = vpop.f32.mrb[0].mxu0
        %v729 = vpop.f32.mrb[0].mxu0
        %v730 = vadd.f32 0.0, %v729
        %v731 = vpop.f32.mrb[0].mxu0
        %732 = vmatprep.mubr.bf16.mxu0 0
        %733 = vmatmul.mubr.bf16.gmra.mrb[0].mxu0 %v579
        %v734 = vpop.f32.mrb[0].mxu0
        %v735 = vadd.f32 0.0, %v734
        %v736 = vpop.f32.mrb[0].mxu0
        %v737 = vpop.f32.mrb[0].mxu0
        %v738 = vadd.f32 0.0, %v737
        %v739 = vpop.f32.mrb[0].mxu0
        %740 = vmatprep.mubr.bf16.mxu0 0
        %741 = vmatmul.mubr.bf16.gmra.mrb[0].mxu0 %v582
        %v742 = vpop.f32.mrb[0].mxu0
        %v743 = vadd.f32 0.0, %v742
        %v744 = vpop.f32.mrb[0].mxu0
        %v745 = vpop.f32.mrb[0].mxu0
        %v746 = vadd.f32 0.0, %v745
        %v747 = vpop.f32.mrb[0].mxu0
        %748 = vdwg.mxu0
        %v749 = vadd.f32 %v479, %v623
        %v750 = vadd.f32 %v479, %v626
        %v751 = vadd.f32 %v479, %v631
        %v752 = vadd.f32 %v479, %v634
        %v753 = vadd.f32 %v479, %v639
        %v754 = vadd.f32 %v479, %v642
        %v755 = vadd.f32 %v479, %v647
        %v756 = vadd.f32 %v479, %v650
        %v757 = vadd.f32 %v479, %v655
        %v758 = vadd.f32 %v479, %v658
        %v759 = vadd.f32 %v479, %v663
        %v760 = vadd.f32 %v479, %v666
        %v761 = vadd.f32 %v479, %v671
        %v762 = vadd.f32 %v479, %v674
        %v763 = vadd.f32 %v479, %v679
        %v764 = vadd.f32 %v479, %v682
        %v765 = vadd.f32 %v479, %v687
        %v766 = vadd.f32 %v479, %v690
        %v767 = vadd.f32 %v479, %v695
        %v768 = vadd.f32 %v479, %v698
        %v769 = vadd.f32 %v479, %v703
        %v770 = vadd.f32 %v479, %v706
        %v771 = vadd.f32 %v479, %v711
        %v772 = vadd.f32 %v479, %v714
        %v773 = vadd.f32 %v479, %v719
        %v774 = vadd.f32 %v479, %v722
        %v775 = vadd.f32 %v479, %v727
        %v776 = vadd.f32 %v479, %v730
        %v777 = vadd.f32 %v479, %v735
        %v778 = vadd.f32 %v479, %v738
        %v779 = vadd.f32 %v479, %v743
        %v780 = vadd.f32 %v479, %v746
        %s781 = scalar_lea.vmem [#allocation7], 6
        %v782 = vld [vmem:[%s781] sm:$0x3]
        %v784 = vsel %vm363, %v533, 0
        %v787 = vsel %vm584, %v782, 0
        %789 = vmatprep.subr.bf16.mxu0 0
        %790 = vmatpush1.bf16.msra.mxu0 %v787
        %791 = vmatprep.subr.bf16.mxu0 0
        %792 = vmatpush1.bf16.msra.mxu0 0
        %793 = vmatprep.subr.bf16.mxu0 0
        %794 = vmatpush1.bf16.msra.mxu0 0
        %795 = vmatprep.subr.bf16.mxu0 0
        %796 = vmatpush1.bf16.msra.mxu0 0
        %797 = vmatprep.subr.bf16.mxu0 0
        %798 = vmatpush1.bf16.msra.mxu0 0
        %799 = vmatprep.subr.bf16.mxu0 0
        %800 = vmatpush1.bf16.msra.mxu0 0
        %801 = vmatprep.subr.bf16.mxu0 0
        %802 = vmatpush1.bf16.msra.mxu0 0
        %803 = vmatprep.subr.bf16.mxu0 0
        %804 = vmatpush1.bf16.msra.mxu0 0
        %805 = vmatprep.subr.bf16.mxu0 0
        %806 = vmatpush1.bf16.msra.mxu0 0
        %807 = vmatprep.subr.bf16.mxu0 0
        %808 = vmatpush1.bf16.msra.mxu0 0
        %809 = vmatprep.subr.bf16.mxu0 0
        %810 = vmatpush1.bf16.msra.mxu0 0
        %811 = vmatprep.subr.bf16.mxu0 0
        %812 = vmatpush1.bf16.msra.mxu0 0
        %813 = vmatprep.subr.bf16.mxu0 0
        %814 = vmatpush1.bf16.msra.mxu0 0
        %815 = vmatprep.subr.bf16.mxu0 0
        %816 = vmatpush1.bf16.msra.mxu0 0
        %817 = vmatprep.subr.bf16.mxu0 0
        %818 = vmatpush1.bf16.msra.mxu0 0
        %819 = vmatprep.subr.bf16.mxu0 0
        %820 = vmatpush1.bf16.msra.mxu0 0
        %821 = vmatprep.mubr.bf16.mxu0 0
        %822 = vmatmul.mubr.bf16.gmra.mrb[0].mxu0 %v540
        %v823 = vpop.f32.mrb[0].mxu0
        %v824 = vadd.f32 0.0, %v823
        %v825 = vpop.f32.mrb[0].mxu0
        %v826 = vpop.f32.mrb[0].mxu0
        %v827 = vadd.f32 0.0, %v826
        %v828 = vpop.f32.mrb[0].mxu0
        %829 = vmatprep.mubr.bf16.mxu0 0
        %830 = vmatmul.mubr.bf16.gmra.mrb[0].mxu0 %v543
        %v831 = vpop.f32.mrb[0].mxu0
        %v832 = vadd.f32 0.0, %v831
        %v833 = vpop.f32.mrb[0].mxu0
        %v834 = vpop.f32.mrb[0].mxu0
        %v835 = vadd.f32 0.0, %v834
        %v836 = vpop.f32.mrb[0].mxu0
        %837 = vmatprep.mubr.bf16.mxu0 0
        %838 = vmatmul.mubr.bf16.gmra.mrb[0].mxu0 %v546
        %v839 = vpop.f32.mrb[0].mxu0
        %v840 = vadd.f32 0.0, %v839
        %v841 = vpop.f32.mrb[0].mxu0
        %v842 = vpop.f32.mrb[0].mxu0
        %v843 = vadd.f32 0.0, %v842
        %v844 = vpop.f32.mrb[0].mxu0
        %845 = vmatprep.mubr.bf16.mxu0 0
        %846 = vmatmul.mubr.bf16.gmra.mrb[0].mxu0 %v549
        %v847 = vpop.f32.mrb[0].mxu0
        %v848 = vadd.f32 0.0, %v847
        %v849 = vpop.f32.mrb[0].mxu0
        %v850 = vpop.f32.mrb[0].mxu0
        %v851 = vadd.f32 0.0, %v850
        %v852 = vpop.f32.mrb[0].mxu0
        %853 = vmatprep.mubr.bf16.mxu0 0
        %854 = vmatmul.mubr.bf16.gmra.mrb[0].mxu0 %v552
        %v855 = vpop.f32.mrb[0].mxu0
        %v856 = vadd.f32 0.0, %v855
        %v857 = vpop.f32.mrb[0].mxu0
        %v858 = vpop.f32.mrb[0].mxu0
        %v859 = vadd.f32 0.0, %v858
        %v860 = vpop.f32.mrb[0].mxu0
        %861 = vmatprep.mubr.bf16.mxu0 0
        %862 = vmatmul.mubr.bf16.gmra.mrb[0].mxu0 %v555
        %v863 = vpop.f32.mrb[0].mxu0
        %v864 = vadd.f32 0.0, %v863
        %v865 = vpop.f32.mrb[0].mxu0
        %v866 = vpop.f32.mrb[0].mxu0
        %v867 = vadd.f32 0.0, %v866
        %v868 = vpop.f32.mrb[0].mxu0
        %869 = vmatprep.mubr.bf16.mxu0 0
        %870 = vmatmul.mubr.bf16.gmra.mrb[0].mxu0 %v558
        %v871 = vpop.f32.mrb[0].mxu0
        %v872 = vadd.f32 0.0, %v871
        %v873 = vpop.f32.mrb[0].mxu0
        %v874 = vpop.f32.mrb[0].mxu0
        %v875 = vadd.f32 0.0, %v874
        %v876 = vpop.f32.mrb[0].mxu0
        %877 = vmatprep.mubr.bf16.mxu0 0
        %878 = vmatmul.mubr.bf16.gmra.mrb[0].mxu0 %v561
        %v879 = vpop.f32.mrb[0].mxu0
        %v880 = vadd.f32 0.0, %v879
        %v881 = vpop.f32.mrb[0].mxu0
        %v882 = vpop.f32.mrb[0].mxu0
        %v883 = vadd.f32 0.0, %v882
        %v884 = vpop.f32.mrb[0].mxu0
        %885 = vmatprep.mubr.bf16.mxu0 0
        %886 = vmatmul.mubr.bf16.gmra.mrb[0].mxu0 %v564
        %v887 = vpop.f32.mrb[0].mxu0
        %v888 = vadd.f32 0.0, %v887
        %v889 = vpop.f32.mrb[0].mxu0
        %v890 = vpop.f32.mrb[0].mxu0
        %v891 = vadd.f32 0.0, %v890
        %v892 = vpop.f32.mrb[0].mxu0
        %893 = vmatprep.mubr.bf16.mxu0 0
        %894 = vmatmul.mubr.bf16.gmra.mrb[0].mxu0 %v567
        %v895 = vpop.f32.mrb[0].mxu0
        %v896 = vadd.f32 0.0, %v895
        %v897 = vpop.f32.mrb[0].mxu0
        %v898 = vpop.f32.mrb[0].mxu0
        %v899 = vadd.f32 0.0, %v898
        %v900 = vpop.f32.mrb[0].mxu0
        %901 = vmatprep.mubr.bf16.mxu0 0
        %902 = vmatmul.mubr.bf16.gmra.mrb[0].mxu0 %v570
        %v903 = vpop.f32.mrb[0].mxu0
        %v904 = vadd.f32 0.0, %v903
        %v905 = vpop.f32.mrb[0].mxu0
        %v906 = vpop.f32.mrb[0].mxu0
        %v907 = vadd.f32 0.0, %v906
        %v908 = vpop.f32.mrb[0].mxu0
        %909 = vmatprep.mubr.bf16.mxu0 0
        %910 = vmatmul.mubr.bf16.gmra.mrb[0].mxu0 %v573
        %v911 = vpop.f32.mrb[0].mxu0
        %v912 = vadd.f32 0.0, %v911
        %v913 = vpop.f32.mrb[0].mxu0
        %v914 = vpop.f32.mrb[0].mxu0
        %v915 = vadd.f32 0.0, %v914
        %v916 = vpop.f32.mrb[0].mxu0
        %917 = vmatprep.mubr.bf16.mxu0 0
        %918 = vmatmul.mubr.bf16.gmra.mrb[0].mxu0 %v576
        %v919 = vpop.f32.mrb[0].mxu0
        %v920 = vadd.f32 0.0, %v919
        %v921 = vpop.f32.mrb[0].mxu0
        %v922 = vpop.f32.mrb[0].mxu0
        %v923 = vadd.f32 0.0, %v922
        %v924 = vpop.f32.mrb[0].mxu0
        %925 = vmatprep.mubr.bf16.mxu0 0
        %926 = vmatmul.mubr.bf16.gmra.mrb[0].mxu0 %v579
        %v927 = vpop.f32.mrb[0].mxu0
        %v928 = vadd.f32 0.0, %v927
        %v929 = vpop.f32.mrb[0].mxu0
        %v930 = vpop.f32.mrb[0].mxu0
        %v931 = vadd.f32 0.0, %v930
        %v932 = vpop.f32.mrb[0].mxu0
        %933 = vmatprep.mubr.bf16.mxu0 0
        %934 = vmatmul.mubr.bf16.gmra.mrb[0].mxu0 %v582
        %v935 = vpop.f32.mrb[0].mxu0
        %v936 = vadd.f32 0.0, %v935
        %v937 = vpop.f32.mrb[0].mxu0
        %v938 = vpop.f32.mrb[0].mxu0
        %v939 = vadd.f32 0.0, %v938
        %v940 = vpop.f32.mrb[0].mxu0
        %941 = vmatprep.mubr.bf16.mxu0 0
        %942 = vmatmul.mubr.bf16.gmra.mrb[0].mxu0 %v784
        %v943 = vpop.f32.mrb[0].mxu0
        %v944 = vadd.f32 0.0, %v943
        %v945 = vpop.f32.mrb[0].mxu0
        %v946 = vpop.f32.mrb[0].mxu0
        %v947 = vadd.f32 0.0, %v946
        %v948 = vpop.f32.mrb[0].mxu0
        %949 = vdwg.mxu0
        %v950 = vadd.f32 %v749, %v824
        %v951 = vadd.f32 %v750, %v827
        %v952 = vadd.f32 %v751, %v832
        %v953 = vadd.f32 %v752, %v835
        %v954 = vadd.f32 %v753, %v840
        %v955 = vadd.f32 %v754, %v843
        %v956 = vadd.f32 %v755, %v848
        %v957 = vadd.f32 %v756, %v851
        %v958 = vadd.f32 %v757, %v856
        %v959 = vadd.f32 %v758, %v859
        %v960 = vadd.f32 %v759, %v864
        %v961 = vadd.f32 %v760, %v867
        %v962 = vadd.f32 %v761, %v872
        %v963 = vadd.f32 %v762, %v875
        %v964 = vadd.f32 %v763, %v880
        %v965 = vadd.f32 %v764, %v883
        %v966 = vadd.f32 %v765, %v888
        %v967 = vadd.f32 %v766, %v891
        %v968 = vadd.f32 %v767, %v896
        %v969 = vadd.f32 %v768, %v899
        %v970 = vadd.f32 %v769, %v904
        %v971 = vadd.f32 %v770, %v907
        %v972 = vadd.f32 %v771, %v912
        %v973 = vadd.f32 %v772, %v915
        %v974 = vadd.f32 %v773, %v920
        %v975 = vadd.f32 %v774, %v923
        %v976 = vadd.f32 %v775, %v928
        %v977 = vadd.f32 %v776, %v931
        %v978 = vadd.f32 %v777, %v936
        %v979 = vadd.f32 %v778, %v939
        %v980 = vadd.f32 %v779, %v944
        %v981 = vadd.f32 %v780, %v947
        %s982 = scalar_lea.vmem [#allocation7], 12
        %v983 = vld [vmem:[%s982] sm:$0x3]
        %v985 = vsel %vm363, %v534, 0
        %v988 = vsel %vm584, %v983, 0
        %990 = vmatprep.subr.bf16.mxu0 0
        %991 = vmatpush1.bf16.msra.mxu0 %v988
        %992 = vmatprep.subr.bf16.mxu0 0
        %993 = vmatpush1.bf16.msra.mxu0 0
        %994 = vmatprep.subr.bf16.mxu0 0
        %995 = vmatpush1.bf16.msra.mxu0 0
        %996 = vmatprep.subr.bf16.mxu0 0
        %997 = vmatpush1.bf16.msra.mxu0 0
        %998 = vmatprep.subr.bf16.mxu0 0
        %999 = vmatpush1.bf16.msra.mxu0 0
        %1000 = vmatprep.subr.bf16.mxu0 0
        %1001 = vmatpush1.bf16.msra.mxu0 0
        %1002 = vmatprep.subr.bf16.mxu0 0
        %1003 = vmatpush1.bf16.msra.mxu0 0
        %1004 = vmatprep.subr.bf16.mxu0 0
        %1005 = vmatpush1.bf16.msra.mxu0 0
        %1006 = vmatprep.subr.bf16.mxu0 0
        %1007 = vmatpush1.bf16.msra.mxu0 0
        %1008 = vmatprep.subr.bf16.mxu0 0
        %1009 = vmatpush1.bf16.msra.mxu0 0
        %1010 = vmatprep.subr.bf16.mxu0 0
        %1011 = vmatpush1.bf16.msra.mxu0 0
        %1012 = vmatprep.subr.bf16.mxu0 0
        %1013 = vmatpush1.bf16.msra.mxu0 0
        %1014 = vmatprep.subr.bf16.mxu0 0
        %1015 = vmatpush1.bf16.msra.mxu0 0
        %1016 = vmatprep.subr.bf16.mxu0 0
        %1017 = vmatpush1.bf16.msra.mxu0 0
        %1018 = vmatprep.subr.bf16.mxu0 0
        %1019 = vmatpush1.bf16.msra.mxu0 0
        %1020 = vmatprep.subr.bf16.mxu0 0
        %1021 = vmatpush1.bf16.msra.mxu0 0
        %1022 = vmatprep.mubr.bf16.mxu0 0
        %1023 = vmatmul.mubr.bf16.gmra.mrb[0].mxu0 %v543
        %v1024 = vpop.f32.mrb[0].mxu0
        %v1025 = vadd.f32 0.0, %v1024
        %v1026 = vpop.f32.mrb[0].mxu0
        %v1027 = vpop.f32.mrb[0].mxu0
        %v1028 = vadd.f32 0.0, %v1027
        %v1029 = vpop.f32.mrb[0].mxu0
        %1030 = vmatprep.mubr.bf16.mxu0 0
        %1031 = vmatmul.mubr.bf16.gmra.mrb[0].mxu0 %v546
        %v1032 = vpop.f32.mrb[0].mxu0
        %v1033 = vadd.f32 0.0, %v1032
        %v1034 = vpop.f32.mrb[0].mxu0
        %v1035 = vpop.f32.mrb[0].mxu0
        %v1036 = vadd.f32 0.0, %v1035
        %v1037 = vpop.f32.mrb[0].mxu0
        %1038 = vmatprep.mubr.bf16.mxu0 0
        %1039 = vmatmul.mubr.bf16.gmra.mrb[0].mxu0 %v549
        %v1040 = vpop.f32.mrb[0].mxu0
        %v1041 = vadd.f32 0.0, %v1040
        %v1042 = vpop.f32.mrb[0].mxu0
        %v1043 = vpop.f32.mrb[0].mxu0
        %v1044 = vadd.f32 0.0, %v1043
        %v1045 = vpop.f32.mrb[0].mxu0
        %1046 = vmatprep.mubr.bf16.mxu0 0
        %1047 = vmatmul.mubr.bf16.gmra.mrb[0].mxu0 %v552
        %v1048 = vpop.f32.mrb[0].mxu0
        %v1049 = vadd.f32 0.0, %v1048
        %v1050 = vpop.f32.mrb[0].mxu0
        %v1051 = vpop.f32.mrb[0].mxu0
        %v1052 = vadd.f32 0.0, %v1051
        %v1053 = vpop.f32.mrb[0].mxu0
        %1054 = vmatprep.mubr.bf16.mxu0 0
        %1055 = vmatmul.mubr.bf16.gmra.mrb[0].mxu0 %v555
        %v1056 = vpop.f32.mrb[0].mxu0
        %v1057 = vadd.f32 0.0, %v1056
        %v1058 = vpop.f32.mrb[0].mxu0
        %v1059 = vpop.f32.mrb[0].mxu0
        %v1060 = vadd.f32 0.0, %v1059
        %v1061 = vpop.f32.mrb[0].mxu0
        %1062 = vmatprep.mubr.bf16.mxu0 0
        %1063 = vmatmul.mubr.bf16.gmra.mrb[0].mxu0 %v558
        %v1064 = vpop.f32.mrb[0].mxu0
        %v1065 = vadd.f32 0.0, %v1064
        %v1066 = vpop.f32.mrb[0].mxu0
        %v1067 = vpop.f32.mrb[0].mxu0
        %v1068 = vadd.f32 0.0, %v1067
        %v1069 = vpop.f32.mrb[0].mxu0
        %1070 = vmatprep.mubr.bf16.mxu0 0
        %1071 = vmatmul.mubr.bf16.gmra.mrb[0].mxu0 %v561
        %v1072 = vpop.f32.mrb[0].mxu0
        %v1073 = vadd.f32 0.0, %v1072
        %v1074 = vpop.f32.mrb[0].mxu0
        %v1075 = vpop.f32.mrb[0].mxu0
        %v1076 = vadd.f32 0.0, %v1075
        %v1077 = vpop.f32.mrb[0].mxu0
        %1078 = vmatprep.mubr.bf16.mxu0 0
        %1079 = vmatmul.mubr.bf16.gmra.mrb[0].mxu0 %v564
        %v1080 = vpop.f32.mrb[0].mxu0
        %v1081 = vadd.f32 0.0, %v1080
        %v1082 = vpop.f32.mrb[0].mxu0
        %v1083 = vpop.f32.mrb[0].mxu0
        %v1084 = vadd.f32 0.0, %v1083
        %v1085 = vpop.f32.mrb[0].mxu0
        %1086 = vmatprep.mubr.bf16.mxu0 0
        %1087 = vmatmul.mubr.bf16.gmra.mrb[0].mxu0 %v567
        %v1088 = vpop.f32.mrb[0].mxu0
        %v1089 = vadd.f32 0.0, %v1088
        %v1090 = vpop.f32.mrb[0].mxu0
        %v1091 = vpop.f32.mrb[0].mxu0
        %v1092 = vadd.f32 0.0, %v1091
        %v1093 = vpop.f32.mrb[0].mxu0
        %1094 = vmatprep.mubr.bf16.mxu0 0
        %1095 = vmatmul.mubr.bf16.gmra.mrb[0].mxu0 %v570
        %v1096 = vpop.f32.mrb[0].mxu0
        %v1097 = vadd.f32 0.0, %v1096
        %v1098 = vpop.f32.mrb[0].mxu0
        %v1099 = vpop.f32.mrb[0].mxu0
        %v1100 = vadd.f32 0.0, %v1099
        %v1101 = vpop.f32.mrb[0].mxu0
        %1102 = vmatprep.mubr.bf16.mxu0 0
        %1103 = vmatmul.mubr.bf16.gmra.mrb[0].mxu0 %v573
        %v1104 = vpop.f32.mrb[0].mxu0
        %v1105 = vadd.f32 0.0, %v1104
        %v1106 = vpop.f32.mrb[0].mxu0
        %v1107 = vpop.f32.mrb[0].mxu0
        %v1108 = vadd.f32 0.0, %v1107
        %v1109 = vpop.f32.mrb[0].mxu0
        %1110 = vmatprep.mubr.bf16.mxu0 0
        %1111 = vmatmul.mubr.bf16.gmra.mrb[0].mxu0 %v576
        %v1112 = vpop.f32.mrb[0].mxu0
        %v1113 = vadd.f32 0.0, %v1112
        %v1114 = vpop.f32.mrb[0].mxu0
        %v1115 = vpop.f32.mrb[0].mxu0
        %v1116 = vadd.f32 0.0, %v1115
        %v1117 = vpop.f32.mrb[0].mxu0
        %1118 = vmatprep.mubr.bf16.mxu0 0
        %1119 = vmatmul.mubr.bf16.gmra.mrb[0].mxu0 %v579
        %v1120 = vpop.f32.mrb[0].mxu0
        %v1121 = vadd.f32 0.0, %v1120
        %v1122 = vpop.f32.mrb[0].mxu0
        %v1123 = vpop.f32.mrb[0].mxu0
        %v1124 = vadd.f32 0.0, %v1123
        %v1125 = vpop.f32.mrb[0].mxu0
        %1126 = vmatprep.mubr.bf16.mxu0 0
        %1127 = vmatmul.mubr.bf16.gmra.mrb[0].mxu0 %v582
        %v1128 = vpop.f32.mrb[0].mxu0
        %v1129 = vadd.f32 0.0, %v1128
        %v1130 = vpop.f32.mrb[0].mxu0
        %v1131 = vpop.f32.mrb[0].mxu0
        %v1132 = vadd.f32 0.0, %v1131
        %v1133 = vpop.f32.mrb[0].mxu0
        %1134 = vmatprep.mubr.bf16.mxu0 0
        %1135 = vmatmul.mubr.bf16.gmra.mrb[0].mxu0 %v784
        %v1136 = vpop.f32.mrb[0].mxu0
        %v1137 = vadd.f32 0.0, %v1136
        %v1138 = vpop.f32.mrb[0].mxu0
        %v1139 = vpop.f32.mrb[0].mxu0
        %v1140 = vadd.f32 0.0, %v1139
        %v1141 = vpop.f32.mrb[0].mxu0
        %1142 = vmatprep.mubr.bf16.mxu0 0
        %1143 = vmatmul.mubr.bf16.gmra.mrb[0].mxu0 %v985
        %v1144 = vpop.f32.mrb[0].mxu0
        %v1145 = vadd.f32 0.0, %v1144
        %v1146 = vpop.f32.mrb[0].mxu0
        %v1147 = vpop.f32.mrb[0].mxu0
        %v1148 = vadd.f32 0.0, %v1147
        %v1149 = vpop.f32.mrb[0].mxu0
        %1150 = vdwg.mxu0
        %v1151 = vadd.f32 %v950, %v1025
        %v1152 = vadd.f32 %v951, %v1028
        %v1153 = vadd.f32 %v952, %v1033
        %v1154 = vadd.f32 %v953, %v1036
        %v1155 = vadd.f32 %v954, %v1041
        %v1156 = vadd.f32 %v955, %v1044
        %v1157 = vadd.f32 %v956, %v1049
        %v1158 = vadd.f32 %v957, %v1052
        %v1159 = vadd.f32 %v958, %v1057
        %v1160 = vadd.f32 %v959, %v1060
        %v1161 = vadd.f32 %v960, %v1065
        %v1162 = vadd.f32 %v961, %v1068
        %v1163 = vadd.f32 %v962, %v1073
        %v1164 = vadd.f32 %v963, %v1076
        %v1165 = vadd.f32 %v964, %v1081
        %v1166 = vadd.f32 %v965, %v1084
        %v1167 = vadd.f32 %v966, %v1089
        %v1168 = vadd.f32 %v967, %v1092
        %v1169 = vadd.f32 %v968, %v1097
        %v1170 = vadd.f32 %v969, %v1100
        %v1171 = vadd.f32 %v970, %v1105
        %v1172 = vadd.f32 %v971, %v1108
        %v1173 = vadd.f32 %v972, %v1113
        %v1174 = vadd.f32 %v973, %v1116
        %v1175 = vadd.f32 %v974, %v1121
        %v1176 = vadd.f32 %v975, %v1124
        %v1177 = vadd.f32 %v976, %v1129
        %v1178 = vadd.f32 %v977, %v1132
        %v1179 = vadd.f32 %v978, %v1137
        %v1180 = vadd.f32 %v979, %v1140
        %v1181 = vadd.f32 %v980, %v1145
        %v1182 = vadd.f32 %v981, %v1148
        %v1183 = vld [vmem:[#allocation2 + $0x1] sm:$0xff]
        %v1184 = vld [vmem:[#allocation2 + $0x9] sm:$0xff]
        %v1185 = vld [vmem:[#allocation2 + $0x19] sm:$0xff]
        %v1186 = vld [vmem:[#allocation2 + $0x21] sm:$0xff]
        %v1187 = vld [vmem:[#allocation2 + $0x31] sm:$0xff]
        %v1188 = vld [vmem:[#allocation2 + $0x39] sm:$0xff]
        %v1189 = vld [vmem:[#allocation2 + $0x49] sm:$0xff]
        %v1190 = vld [vmem:[#allocation2 + $0x51] sm:$0xff]
        %v1191 = vld [vmem:[#allocation2 + $0x61] sm:$0xff]
        %v1192 = vld [vmem:[#allocation2 + $0x69] sm:$0xff]
        %v1193 = vld [vmem:[#allocation2 + $0x79] sm:$0xff]
        %v1194 = vld [vmem:[#allocation2 + $0x81] sm:$0xff]
        %v1195 = vld [vmem:[#allocation2 + $0x91] sm:$0xff]
        %v1196 = vld [vmem:[#allocation2 + $0x99] sm:$0xff]
        %v1197 = vld [vmem:[#allocation2 + $0xa9] sm:$0xff]
        %v1198 = vld [vmem:[#allocation2 + $0xb1] sm:$0xff]
        %v1199 = vld [vmem:[#allocation2 + $0xc1] sm:$0xff]
        %v1200 = vld [vmem:[#allocation2 + $0xc9] sm:$0xff]
        %v1201 = vld [vmem:[#allocation2 + $0xd9] sm:$0xff]
        %v1202 = vld [vmem:[#allocation2 + $0xe1] sm:$0xff]
        %v1203 = vld [vmem:[#allocation2 + $0xf1] sm:$0xff]
        %v1204 = vld [vmem:[#allocation2 + $0xf9] sm:$0xff]
        %v1205 = vld [vmem:[#allocation2 + $0x109] sm:$0xff]
        %v1206 = vld [vmem:[#allocation2 + $0x111] sm:$0xff]
        %v1207 = vld [vmem:[#allocation2 + $0x121] sm:$0xff]
        %v1208 = vld [vmem:[#allocation2 + $0x129] sm:$0xff]
        %v1209 = vld [vmem:[#allocation2 + $0x139] sm:$0xff]
        %v1210 = vld [vmem:[#allocation2 + $0x141] sm:$0xff]
        %v1211 = vld [vmem:[#allocation2 + $0x151] sm:$0xff]
        %v1212 = vld [vmem:[#allocation2 + $0x159] sm:$0xff]
        %v1213 = vld [vmem:[#allocation2 + $0x169] sm:$0xff]
        %v1214 = vld [vmem:[#allocation2 + $0x171] sm:$0xff]
        %v1215 = vld [vmem:[#allocation2 + $0x181] sm:$0xff]
        %v1216 = vld [vmem:[#allocation2 + $0x189] sm:$0xff]
        %v1217 = vld [vmem:[#allocation2 + $0x199] sm:$0xff]
        %v1218 = vld [vmem:[#allocation2 + $0x1a1] sm:$0xff]
        %v1219 = vpack.c.bf16 %v1184, %v1183
        %v1220 = vpack.c.bf16 %v1186, %v1185
        %v1221 = vpack.c.bf16 %v1188, %v1187
        %v1222 = vpack.c.bf16 %v1190, %v1189
        %v1223 = vpack.c.bf16 %v1192, %v1191
        %v1224 = vpack.c.bf16 %v1194, %v1193
        %v1225 = vpack.c.bf16 %v1196, %v1195
        %v1226 = vpack.c.bf16 %v1198, %v1197
        %v1227 = vpack.c.bf16 %v1200, %v1199
        %v1228 = vpack.c.bf16 %v1202, %v1201
        %v1229 = vpack.c.bf16 %v1204, %v1203
        %v1230 = vpack.c.bf16 %v1206, %v1205
        %v1231 = vpack.c.bf16 %v1208, %v1207
        %v1232 = vpack.c.bf16 %v1210, %v1209
        %v1233 = vpack.c.bf16 %v1212, %v1211
        %v1234 = vpack.c.bf16 %v1214, %v1213
        %v1235 = vpack.c.bf16 %v1216, %v1215
        %v1236 = vpack.c.bf16 %v1218, %v1217
        %s1237 = scalar_lea.vmem [#allocation7], 2
        %v1238 = vld [vmem:[%s1237] sm:$0x3]
        %v1240 = vsel %vm363, %v1219, 0
        %v1243 = vsel %vm363, %v1220, 0
        %v1246 = vsel %vm363, %v1221, 0
        %v1249 = vsel %vm363, %v1222, 0
        %v1252 = vsel %vm363, %v1223, 0
        %v1255 = vsel %vm363, %v1224, 0
        %v1258 = vsel %vm363, %v1225, 0
        %v1261 = vsel %vm363, %v1226, 0
        %v1264 = vsel %vm363, %v1227, 0
        %v1267 = vsel %vm363, %v1228, 0
        %v1270 = vsel %vm363, %v1229, 0
        %v1273 = vsel %vm363, %v1230, 0
        %v1276 = vsel %vm363, %v1231, 0
        %v1279 = vsel %vm363, %v1232, 0
        %v1282 = vsel %vm363, %v1233, 0
        %v1285 = vsel %vm363, %v1234, 0
        %v1288 = vsel %vm584, %v1238, 0
        %1290 = vmatprep.subr.bf16.mxu0 0
        %1291 = vmatpush1.bf16.msra.mxu0 %v1288
        %1292 = vmatprep.subr.bf16.mxu0 0
        %1293 = vmatpush1.bf16.msra.mxu0 0
        %1294 = vmatprep.subr.bf16.mxu0 0
        %1295 = vmatpush1.bf16.msra.mxu0 0
        %1296 = vmatprep.subr.bf16.mxu0 0
        %1297 = vmatpush1.bf16.msra.mxu0 0
        %1298 = vmatprep.subr.bf16.mxu0 0
        %1299 = vmatpush1.bf16.msra.mxu0 0
        %1300 = vmatprep.subr.bf16.mxu0 0
        %1301 = vmatpush1.bf16.msra.mxu0 0
        %1302 = vmatprep.subr.bf16.mxu0 0
        %1303 = vmatpush1.bf16.msra.mxu0 0
        %1304 = vmatprep.subr.bf16.mxu0 0
        %1305 = vmatpush1.bf16.msra.mxu0 0
        %1306 = vmatprep.subr.bf16.mxu0 0
        %1307 = vmatpush1.bf16.msra.mxu0 0
        %1308 = vmatprep.subr.bf16.mxu0 0
        %1309 = vmatpush1.bf16.msra.mxu0 0
        %1310 = vmatprep.subr.bf16.mxu0 0
        %1311 = vmatpush1.bf16.msra.mxu0 0
        %1312 = vmatprep.subr.bf16.mxu0 0
        %1313 = vmatpush1.bf16.msra.mxu0 0
        %1314 = vmatprep.subr.bf16.mxu0 0
        %1315 = vmatpush1.bf16.msra.mxu0 0
        %1316 = vmatprep.subr.bf16.mxu0 0
        %1317 = vmatpush1.bf16.msra.mxu0 0
        %1318 = vmatprep.subr.bf16.mxu0 0
        %1319 = vmatpush1.bf16.msra.mxu0 0
        %1320 = vmatprep.subr.bf16.mxu0 0
        %1321 = vmatpush1.bf16.msra.mxu0 0
        %1322 = vmatprep.mubr.bf16.mxu0 0
        %1323 = vmatmul.mubr.bf16.gmra.mrb[0].mxu0 %v1240
        %v1324 = vpop.f32.mrb[0].mxu0
        %v1325 = vadd.f32 0.0, %v1324
        %v1326 = vpop.f32.mrb[0].mxu0
        %v1327 = vpop.f32.mrb[0].mxu0
        %v1328 = vadd.f32 0.0, %v1327
        %v1329 = vpop.f32.mrb[0].mxu0
        %1330 = vmatprep.mubr.bf16.mxu0 0
        %1331 = vmatmul.mubr.bf16.gmra.mrb[0].mxu0 %v1243
        %v1332 = vpop.f32.mrb[0].mxu0
        %v1333 = vadd.f32 0.0, %v1332
        %v1334 = vpop.f32.mrb[0].mxu0
        %v1335 = vpop.f32.mrb[0].mxu0
        %v1336 = vadd.f32 0.0, %v1335
        %v1337 = vpop.f32.mrb[0].mxu0
        %1338 = vmatprep.mubr.bf16.mxu0 0
        %1339 = vmatmul.mubr.bf16.gmra.mrb[0].mxu0 %v1246
        %v1340 = vpop.f32.mrb[0].mxu0
        %v1341 = vadd.f32 0.0, %v1340
        %v1342 = vpop.f32.mrb[0].mxu0
        %v1343 = vpop.f32.mrb[0].mxu0
        %v1344 = vadd.f32 0.0, %v1343
        %v1345 = vpop.f32.mrb[0].mxu0
        %1346 = vmatprep.mubr.bf16.mxu0 0
        %1347 = vmatmul.mubr.bf16.gmra.mrb[0].mxu0 %v1249
        %v1348 = vpop.f32.mrb[0].mxu0
        %v1349 = vadd.f32 0.0, %v1348
        %v1350 = vpop.f32.mrb[0].mxu0
        %v1351 = vpop.f32.mrb[0].mxu0
        %v1352 = vadd.f32 0.0, %v1351
        %v1353 = vpop.f32.mrb[0].mxu0
        %1354 = vmatprep.mubr.bf16.mxu0 0
        %1355 = vmatmul.mubr.bf16.gmra.mrb[0].mxu0 %v1252
        %v1356 = vpop.f32.mrb[0].mxu0
        %v1357 = vadd.f32 0.0, %v1356
        %v1358 = vpop.f32.mrb[0].mxu0
        %v1359 = vpop.f32.mrb[0].mxu0
        %v1360 = vadd.f32 0.0, %v1359
        %v1361 = vpop.f32.mrb[0].mxu0
        %1362 = vmatprep.mubr.bf16.mxu0 0
        %1363 = vmatmul.mubr.bf16.gmra.mrb[0].mxu0 %v1255
        %v1364 = vpop.f32.mrb[0].mxu0
        %v1365 = vadd.f32 0.0, %v1364
        %v1366 = vpop.f32.mrb[0].mxu0
        %v1367 = vpop.f32.mrb[0].mxu0
        %v1368 = vadd.f32 0.0, %v1367
        %v1369 = vpop.f32.mrb[0].mxu0
        %1370 = vmatprep.mubr.bf16.mxu0 0
        %1371 = vmatmul.mubr.bf16.gmra.mrb[0].mxu0 %v1258
        %v1372 = vpop.f32.mrb[0].mxu0
        %v1373 = vadd.f32 0.0, %v1372
        %v1374 = vpop.f32.mrb[0].mxu0
        %v1375 = vpop.f32.mrb[0].mxu0
        %v1376 = vadd.f32 0.0, %v1375
        %v1377 = vpop.f32.mrb[0].mxu0
        %1378 = vmatprep.mubr.bf16.mxu0 0
        %1379 = vmatmul.mubr.bf16.gmra.mrb[0].mxu0 %v1261
        %v1380 = vpop.f32.mrb[0].mxu0
        %v1381 = vadd.f32 0.0, %v1380
        %v1382 = vpop.f32.mrb[0].mxu0
        %v1383 = vpop.f32.mrb[0].mxu0
        %v1384 = vadd.f32 0.0, %v1383
        %v1385 = vpop.f32.mrb[0].mxu0
        %1386 = vmatprep.mubr.bf16.mxu0 0
        %1387 = vmatmul.mubr.bf16.gmra.mrb[0].mxu0 %v1264
        %v1388 = vpop.f32.mrb[0].mxu0
        %v1389 = vadd.f32 0.0, %v1388
        %v1390 = vpop.f32.mrb[0].mxu0
        %v1391 = vpop.f32.mrb[0].mxu0
        %v1392 = vadd.f32 0.0, %v1391
        %v1393 = vpop.f32.mrb[0].mxu0
        %1394 = vmatprep.mubr.bf16.mxu0 0
        %1395 = vmatmul.mubr.bf16.gmra.mrb[0].mxu0 %v1267
        %v1396 = vpop.f32.mrb[0].mxu0
        %v1397 = vadd.f32 0.0, %v1396
        %v1398 = vpop.f32.mrb[0].mxu0
        %v1399 = vpop.f32.mrb[0].mxu0
        %v1400 = vadd.f32 0.0, %v1399
        %v1401 = vpop.f32.mrb[0].mxu0
        %1402 = vmatprep.mubr.bf16.mxu0 0
        %1403 = vmatmul.mubr.bf16.gmra.mrb[0].mxu0 %v1270
        %v1404 = vpop.f32.mrb[0].mxu0
        %v1405 = vadd.f32 0.0, %v1404
        %v1406 = vpop.f32.mrb[0].mxu0
        %v1407 = vpop.f32.mrb[0].mxu0
        %v1408 = vadd.f32 0.0, %v1407
        %v1409 = vpop.f32.mrb[0].mxu0
        %1410 = vmatprep.mubr.bf16.mxu0 0
        %1411 = vmatmul.mubr.bf16.gmra.mrb[0].mxu0 %v1273
        %v1412 = vpop.f32.mrb[0].mxu0
        %v1413 = vadd.f32 0.0, %v1412
        %v1414 = vpop.f32.mrb[0].mxu0
        %v1415 = vpop.f32.mrb[0].mxu0
        %v1416 = vadd.f32 0.0, %v1415
        %v1417 = vpop.f32.mrb[0].mxu0
        %1418 = vmatprep.mubr.bf16.mxu0 0
        %1419 = vmatmul.mubr.bf16.gmra.mrb[0].mxu0 %v1276
        %v1420 = vpop.f32.mrb[0].mxu0
        %v1421 = vadd.f32 0.0, %v1420
        %v1422 = vpop.f32.mrb[0].mxu0
        %v1423 = vpop.f32.mrb[0].mxu0
        %v1424 = vadd.f32 0.0, %v1423
        %v1425 = vpop.f32.mrb[0].mxu0
        %1426 = vmatprep.mubr.bf16.mxu0 0
        %1427 = vmatmul.mubr.bf16.gmra.mrb[0].mxu0 %v1279
        %v1428 = vpop.f32.mrb[0].mxu0
        %v1429 = vadd.f32 0.0, %v1428
        %v1430 = vpop.f32.mrb[0].mxu0
        %v1431 = vpop.f32.mrb[0].mxu0
        %v1432 = vadd.f32 0.0, %v1431
        %v1433 = vpop.f32.mrb[0].mxu0
        %1434 = vmatprep.mubr.bf16.mxu0 0
        %1435 = vmatmul.mubr.bf16.gmra.mrb[0].mxu0 %v1282
        %v1436 = vpop.f32.mrb[0].mxu0
        %v1437 = vadd.f32 0.0, %v1436
        %v1438 = vpop.f32.mrb[0].mxu0
        %v1439 = vpop.f32.mrb[0].mxu0
        %v1440 = vadd.f32 0.0, %v1439
        %v1441 = vpop.f32.mrb[0].mxu0
        %1442 = vmatprep.mubr.bf16.mxu0 0
        %1443 = vmatmul.mubr.bf16.gmra.mrb[0].mxu0 %v1285
        %v1444 = vpop.f32.mrb[0].mxu0
        %v1445 = vadd.f32 0.0, %v1444
        %v1446 = vpop.f32.mrb[0].mxu0
        %v1447 = vpop.f32.mrb[0].mxu0
        %v1448 = vadd.f32 0.0, %v1447
        %v1449 = vpop.f32.mrb[0].mxu0
        %1450 = vdwg.mxu0
        %v1451 = vadd.f32 %v1151, %v1325
        %v1452 = vadd.f32 %v1152, %v1328
        %v1453 = vadd.f32 %v1153, %v1333
        %v1454 = vadd.f32 %v1154, %v1336
        %v1455 = vadd.f32 %v1155, %v1341
        %v1456 = vadd.f32 %v1156, %v1344
        %v1457 = vadd.f32 %v1157, %v1349
        %v1458 = vadd.f32 %v1158, %v1352
        %v1459 = vadd.f32 %v1159, %v1357
        %v1460 = vadd.f32 %v1160, %v1360
        %v1461 = vadd.f32 %v1161, %v1365
        %v1462 = vadd.f32 %v1162, %v1368
        %v1463 = vadd.f32 %v1163, %v1373
        %v1464 = vadd.f32 %v1164, %v1376
        %v1465 = vadd.f32 %v1165, %v1381
        %v1466 = vadd.f32 %v1166, %v1384
        %v1467 = vadd.f32 %v1167, %v1389
        %v1468 = vadd.f32 %v1168, %v1392
        %v1469 = vadd.f32 %v1169, %v1397
        %v1470 = vadd.f32 %v1170, %v1400
        %v1471 = vadd.f32 %v1171, %v1405
        %v1472 = vadd.f32 %v1172, %v1408
        %v1473 = vadd.f32 %v1173, %v1413
        %v1474 = vadd.f32 %v1174, %v1416
        %v1475 = vadd.f32 %v1175, %v1421
        %v1476 = vadd.f32 %v1176, %v1424
        %v1477 = vadd.f32 %v1177, %v1429
        %v1478 = vadd.f32 %v1178, %v1432
        %v1479 = vadd.f32 %v1179, %v1437
        %v1480 = vadd.f32 %v1180, %v1440
        %v1481 = vadd.f32 %v1181, %v1445
        %v1482 = vadd.f32 %v1182, %v1448
        %s1483 = scalar_lea.vmem [#allocation7], 8
        %v1484 = vld [vmem:[%s1483] sm:$0x3]
        %v1486 = vsel %vm363, %v1235, 0
        %v1489 = vsel %vm584, %v1484, 0
        %1491 = vmatprep.subr.bf16.mxu0 0
        %1492 = vmatpush1.bf16.msra.mxu0 %v1489
        %1493 = vmatprep.subr.bf16.mxu0 0
        %1494 = vmatpush1.bf16.msra.mxu0 0
        %1495 = vmatprep.subr.bf16.mxu0 0
        %1496 = vmatpush1.bf16.msra.mxu0 0
        %1497 = vmatprep.subr.bf16.mxu0 0
        %1498 = vmatpush1.bf16.msra.mxu0 0
        %1499 = vmatprep.subr.bf16.mxu0 0
        %1500 = vmatpush1.bf16.msra.mxu0 0
        %1501 = vmatprep.subr.bf16.mxu0 0
        %1502 = vmatpush1.bf16.msra.mxu0 0
        %1503 = vmatprep.subr.bf16.mxu0 0
        %1504 = vmatpush1.bf16.msra.mxu0 0
        %1505 = vmatprep.subr.bf16.mxu0 0
        %1506 = vmatpush1.bf16.msra.mxu0 0
        %1507 = vmatprep.subr.bf16.mxu0 0
        %1508 = vmatpush1.bf16.msra.mxu0 0
        %1509 = vmatprep.subr.bf16.mxu0 0
        %1510 = vmatpush1.bf16.msra.mxu0 0
        %1511 = vmatprep.subr.bf16.mxu0 0
        %1512 = vmatpush1.bf16.msra.mxu0 0
        %1513 = vmatprep.subr.bf16.mxu0 0
        %1514 = vmatpush1.bf16.msra.mxu0 0
        %1515 = vmatprep.subr.bf16.mxu0 0
        %1516 = vmatpush1.bf16.msra.mxu0 0
        %1517 = vmatprep.subr.bf16.mxu0 0
        %1518 = vmatpush1.bf16.msra.mxu0 0
        %1519 = vmatprep.subr.bf16.mxu0 0
        %1520 = vmatpush1.bf16.msra.mxu0 0
        %1521 = vmatprep.subr.bf16.mxu0 0
        %1522 = vmatpush1.bf16.msra.mxu0 0
        %1523 = vmatprep.mubr.bf16.mxu0 0
        %1524 = vmatmul.mubr.bf16.gmra.mrb[0].mxu0 %v1243
        %v1525 = vpop.f32.mrb[0].mxu0
        %v1526 = vadd.f32 0.0, %v1525
        %v1527 = vpop.f32.mrb[0].mxu0
        %v1528 = vpop.f32.mrb[0].mxu0
        %v1529 = vadd.f32 0.0, %v1528
        %v1530 = vpop.f32.mrb[0].mxu0
        %1531 = vmatprep.mubr.bf16.mxu0 0
        %1532 = vmatmul.mubr.bf16.gmra.mrb[0].mxu0 %v1246
        %v1533 = vpop.f32.mrb[0].mxu0
        %v1534 = vadd.f32 0.0, %v1533
        %v1535 = vpop.f32.mrb[0].mxu0
        %v1536 = vpop.f32.mrb[0].mxu0
        %v1537 = vadd.f32 0.0, %v1536
        %v1538 = vpop.f32.mrb[0].mxu0
        %1539 = vmatprep.mubr.bf16.mxu0 0
        %1540 = vmatmul.mubr.bf16.gmra.mrb[0].mxu0 %v1249
        %v1541 = vpop.f32.mrb[0].mxu0
        %v1542 = vadd.f32 0.0, %v1541
        %v1543 = vpop.f32.mrb[0].mxu0
        %v1544 = vpop.f32.mrb[0].mxu0
        %v1545 = vadd.f32 0.0, %v1544
        %v1546 = vpop.f32.mrb[0].mxu0
        %1547 = vmatprep.mubr.bf16.mxu0 0
        %1548 = vmatmul.mubr.bf16.gmra.mrb[0].mxu0 %v1252
        %v1549 = vpop.f32.mrb[0].mxu0
        %v1550 = vadd.f32 0.0, %v1549
        %v1551 = vpop.f32.mrb[0].mxu0
        %v1552 = vpop.f32.mrb[0].mxu0
        %v1553 = vadd.f32 0.0, %v1552
        %v1554 = vpop.f32.mrb[0].mxu0
        %1555 = vmatprep.mubr.bf16.mxu0 0
        %1556 = vmatmul.mubr.bf16.gmra.mrb[0].mxu0 %v1255
        %v1557 = vpop.f32.mrb[0].mxu0
        %v1558 = vadd.f32 0.0, %v1557
        %v1559 = vpop.f32.mrb[0].mxu0
        %v1560 = vpop.f32.mrb[0].mxu0
        %v1561 = vadd.f32 0.0, %v1560
        %v1562 = vpop.f32.mrb[0].mxu0
        %1563 = vmatprep.mubr.bf16.mxu0 0
        %1564 = vmatmul.mubr.bf16.gmra.mrb[0].mxu0 %v1258
        %v1565 = vpop.f32.mrb[0].mxu0
        %v1566 = vadd.f32 0.0, %v1565
        %v1567 = vpop.f32.mrb[0].mxu0
        %v1568 = vpop.f32.mrb[0].mxu0
        %v1569 = vadd.f32 0.0, %v1568
        %v1570 = vpop.f32.mrb[0].mxu0
        %1571 = vmatprep.mubr.bf16.mxu0 0
        %1572 = vmatmul.mubr.bf16.gmra.mrb[0].mxu0 %v1261
        %v1573 = vpop.f32.mrb[0].mxu0
        %v1574 = vadd.f32 0.0, %v1573
        %v1575 = vpop.f32.mrb[0].mxu0
        %v1576 = vpop.f32.mrb[0].mxu0
        %v1577 = vadd.f32 0.0, %v1576
        %v1578 = vpop.f32.mrb[0].mxu0
        %1579 = vmatprep.mubr.bf16.mxu0 0
        %1580 = vmatmul.mubr.bf16.gmra.mrb[0].mxu0 %v1264
        %v1581 = vpop.f32.mrb[0].mxu0
        %v1582 = vadd.f32 0.0, %v1581
        %v1583 = vpop.f32.mrb[0].mxu0
        %v1584 = vpop.f32.mrb[0].mxu0
        %v1585 = vadd.f32 0.0, %v1584
        %v1586 = vpop.f32.mrb[0].mxu0
        %1587 = vmatprep.mubr.bf16.mxu0 0
        %1588 = vmatmul.mubr.bf16.gmra.mrb[0].mxu0 %v1267
        %v1589 = vpop.f32.mrb[0].mxu0
        %v1590 = vadd.f32 0.0, %v1589
        %v1591 = vpop.f32.mrb[0].mxu0
        %v1592 = vpop.f32.mrb[0].mxu0
        %v1593 = vadd.f32 0.0, %v1592
        %v1594 = vpop.f32.mrb[0].mxu0
        %1595 = vmatprep.mubr.bf16.mxu0 0
        %1596 = vmatmul.mubr.bf16.gmra.mrb[0].mxu0 %v1270
        %v1597 = vpop.f32.mrb[0].mxu0
        %v1598 = vadd.f32 0.0, %v1597
        %v1599 = vpop.f32.mrb[0].mxu0
        %v1600 = vpop.f32.mrb[0].mxu0
        %v1601 = vadd.f32 0.0, %v1600
        %v1602 = vpop.f32.mrb[0].mxu0
        %1603 = vmatprep.mubr.bf16.mxu0 0
        %1604 = vmatmul.mubr.bf16.gmra.mrb[0].mxu0 %v1273
        %v1605 = vpop.f32.mrb[0].mxu0
        %v1606 = vadd.f32 0.0, %v1605
        %v1607 = vpop.f32.mrb[0].mxu0
        %v1608 = vpop.f32.mrb[0].mxu0
        %v1609 = vadd.f32 0.0, %v1608
        %v1610 = vpop.f32.mrb[0].mxu0
        %1611 = vmatprep.mubr.bf16.mxu0 0
        %1612 = vmatmul.mubr.bf16.gmra.mrb[0].mxu0 %v1276
        %v1613 = vpop.f32.mrb[0].mxu0
        %v1614 = vadd.f32 0.0, %v1613
        %v1615 = vpop.f32.mrb[0].mxu0
        %v1616 = vpop.f32.mrb[0].mxu0
        %v1617 = vadd.f32 0.0, %v1616
        %v1618 = vpop.f32.mrb[0].mxu0
        %1619 = vmatprep.mubr.bf16.mxu0 0
        %1620 = vmatmul.mubr.bf16.gmra.mrb[0].mxu0 %v1279
        %v1621 = vpop.f32.mrb[0].mxu0
        %v1622 = vadd.f32 0.0, %v1621
        %v1623 = vpop.f32.mrb[0].mxu0
        %v1624 = vpop.f32.mrb[0].mxu0
        %v1625 = vadd.f32 0.0, %v1624
        %v1626 = vpop.f32.mrb[0].mxu0
        %1627 = vmatprep.mubr.bf16.mxu0 0
        %1628 = vmatmul.mubr.bf16.gmra.mrb[0].mxu0 %v1282
        %v1629 = vpop.f32.mrb[0].mxu0
        %v1630 = vadd.f32 0.0, %v1629
        %v1631 = vpop.f32.mrb[0].mxu0
        %v1632 = vpop.f32.mrb[0].mxu0
        %v1633 = vadd.f32 0.0, %v1632
        %v1634 = vpop.f32.mrb[0].mxu0
        %1635 = vmatprep.mubr.bf16.mxu0 0
        %1636 = vmatmul.mubr.bf16.gmra.mrb[0].mxu0 %v1285
        %v1637 = vpop.f32.mrb[0].mxu0
        %v1638 = vadd.f32 0.0, %v1637
        %v1639 = vpop.f32.mrb[0].mxu0
        %v1640 = vpop.f32.mrb[0].mxu0
        %v1641 = vadd.f32 0.0, %v1640
        %v1642 = vpop.f32.mrb[0].mxu0
        %1643 = vmatprep.mubr.bf16.mxu0 0
        %1644 = vmatmul.mubr.bf16.gmra.mrb[0].mxu0 %v1486
        %v1645 = vpop.f32.mrb[0].mxu0
        %v1646 = vadd.f32 0.0, %v1645
        %v1647 = vpop.f32.mrb[0].mxu0
        %v1648 = vpop.f32.mrb[0].mxu0
        %v1649 = vadd.f32 0.0, %v1648
        %v1650 = vpop.f32.mrb[0].mxu0
        %1651 = vdwg.mxu0
        %v1652 = vadd.f32 %v1451, %v1526
        %v1653 = vadd.f32 %v1452, %v1529
        %v1654 = vadd.f32 %v1453, %v1534
        %v1655 = vadd.f32 %v1454, %v1537
        %v1656 = vadd.f32 %v1455, %v1542
        %v1657 = vadd.f32 %v1456, %v1545
        %v1658 = vadd.f32 %v1457, %v1550
        %v1659 = vadd.f32 %v1458, %v1553
        %v1660 = vadd.f32 %v1459, %v1558
        %v1661 = vadd.f32 %v1460, %v1561
        %v1662 = vadd.f32 %v1461, %v1566
        %v1663 = vadd.f32 %v1462, %v1569
        %v1664 = vadd.f32 %v1463, %v1574
        %v1665 = vadd.f32 %v1464, %v1577
        %v1666 = vadd.f32 %v1465, %v1582
        %v1667 = vadd.f32 %v1466, %v1585
        %v1668 = vadd.f32 %v1467, %v1590
        %v1669 = vadd.f32 %v1468, %v1593
        %v1670 = vadd.f32 %v1469, %v1598
        %v1671 = vadd.f32 %v1470, %v1601
        %v1672 = vadd.f32 %v1471, %v1606
        %v1673 = vadd.f32 %v1472, %v1609
        %v1674 = vadd.f32 %v1473, %v1614
        %v1675 = vadd.f32 %v1474, %v1617
        %v1676 = vadd.f32 %v1475, %v1622
        %v1677 = vadd.f32 %v1476, %v1625
        %v1678 = vadd.f32 %v1477, %v1630
        %v1679 = vadd.f32 %v1478, %v1633
        %v1680 = vadd.f32 %v1479, %v1638
        %v1681 = vadd.f32 %v1480, %v1641
        %v1682 = vadd.f32 %v1481, %v1646
        %v1683 = vadd.f32 %v1482, %v1649
        %s1684 = scalar_lea.vmem [#allocation7], 14
        %v1685 = vld [vmem:[%s1684] sm:$0x3]
        %v1687 = vsel %vm363, %v1236, 0
        %v1690 = vsel %vm584, %v1685, 0
        %1692 = vmatprep.subr.bf16.mxu0 0
        %1693 = vmatpush1.bf16.msra.mxu0 %v1690
        %1694 = vmatprep.subr.bf16.mxu0 0
        %1695 = vmatpush1.bf16.msra.mxu0 0
        %1696 = vmatprep.subr.bf16.mxu0 0
        %1697 = vmatpush1.bf16.msra.mxu0 0
        %1698 = vmatprep.subr.bf16.mxu0 0
        %1699 = vmatpush1.bf16.msra.mxu0 0
        %1700 = vmatprep.subr.bf16.mxu0 0
        %1701 = vmatpush1.bf16.msra.mxu0 0
        %1702 = vmatprep.subr.bf16.mxu0 0
        %1703 = vmatpush1.bf16.msra.mxu0 0
        %1704 = vmatprep.subr.bf16.mxu0 0
        %1705 = vmatpush1.bf16.msra.mxu0 0
        %1706 = vmatprep.subr.bf16.mxu0 0
        %1707 = vmatpush1.bf16.msra.mxu0 0
        %1708 = vmatprep.subr.bf16.mxu0 0
        %1709 = vmatpush1.bf16.msra.mxu0 0
        %1710 = vmatprep.subr.bf16.mxu0 0
        %1711 = vmatpush1.bf16.msra.mxu0 0
        %1712 = vmatprep.subr.bf16.mxu0 0
        %1713 = vmatpush1.bf16.msra.mxu0 0
        %1714 = vmatprep.subr.bf16.mxu0 0
        %1715 = vmatpush1.bf16.msra.mxu0 0
        %1716 = vmatprep.subr.bf16.mxu0 0
        %1717 = vmatpush1.bf16.msra.mxu0 0
        %1718 = vmatprep.subr.bf16.mxu0 0
        %1719 = vmatpush1.bf16.msra.mxu0 0
        %1720 = vmatprep.subr.bf16.mxu0 0
        %1721 = vmatpush1.bf16.msra.mxu0 0
        %1722 = vmatprep.subr.bf16.mxu0 0
        %1723 = vmatpush1.bf16.msra.mxu0 0
        %1724 = vmatprep.mubr.bf16.mxu0 0
        %1725 = vmatmul.mubr.bf16.gmra.mrb[0].mxu0 %v1246
        %v1726 = vpop.f32.mrb[0].mxu0
        %v1727 = vadd.f32 0.0, %v1726
        %v1728 = vpop.f32.mrb[0].mxu0
        %v1729 = vpop.f32.mrb[0].mxu0
        %v1730 = vadd.f32 0.0, %v1729
        %v1731 = vpop.f32.mrb[0].mxu0
        %1732 = vmatprep.mubr.bf16.mxu0 0
        %1733 = vmatmul.mubr.bf16.gmra.mrb[0].mxu0 %v1249
        %v1734 = vpop.f32.mrb[0].mxu0
        %v1735 = vadd.f32 0.0, %v1734
        %v1736 = vpop.f32.mrb[0].mxu0
        %v1737 = vpop.f32.mrb[0].mxu0
        %v1738 = vadd.f32 0.0, %v1737
        %v1739 = vpop.f32.mrb[0].mxu0
        %1740 = vmatprep.mubr.bf16.mxu0 0
        %1741 = vmatmul.mubr.bf16.gmra.mrb[0].mxu0 %v1252
        %v1742 = vpop.f32.mrb[0].mxu0
        %v1743 = vadd.f32 0.0, %v1742
        %v1744 = vpop.f32.mrb[0].mxu0
        %v1745 = vpop.f32.mrb[0].mxu0
        %v1746 = vadd.f32 0.0, %v1745
        %v1747 = vpop.f32.mrb[0].mxu0
        %1748 = vmatprep.mubr.bf16.mxu0 0
        %1749 = vmatmul.mubr.bf16.gmra.mrb[0].mxu0 %v1255
        %v1750 = vpop.f32.mrb[0].mxu0
        %v1751 = vadd.f32 0.0, %v1750
        %v1752 = vpop.f32.mrb[0].mxu0
        %v1753 = vpop.f32.mrb[0].mxu0
        %v1754 = vadd.f32 0.0, %v1753
        %v1755 = vpop.f32.mrb[0].mxu0
        %1756 = vmatprep.mubr.bf16.mxu0 0
        %1757 = vmatmul.mubr.bf16.gmra.mrb[0].mxu0 %v1258
        %v1758 = vpop.f32.mrb[0].mxu0
        %v1759 = vadd.f32 0.0, %v1758
        %v1760 = vpop.f32.mrb[0].mxu0
        %v1761 = vpop.f32.mrb[0].mxu0
        %v1762 = vadd.f32 0.0, %v1761
        %v1763 = vpop.f32.mrb[0].mxu0
        %1764 = vmatprep.mubr.bf16.mxu0 0
        %1765 = vmatmul.mubr.bf16.gmra.mrb[0].mxu0 %v1261
        %v1766 = vpop.f32.mrb[0].mxu0
        %v1767 = vadd.f32 0.0, %v1766
        %v1768 = vpop.f32.mrb[0].mxu0
        %v1769 = vpop.f32.mrb[0].mxu0
        %v1770 = vadd.f32 0.0, %v1769
        %v1771 = vpop.f32.mrb[0].mxu0
        %1772 = vmatprep.mubr.bf16.mxu0 0
        %1773 = vmatmul.mubr.bf16.gmra.mrb[0].mxu0 %v1264
        %v1774 = vpop.f32.mrb[0].mxu0
        %v1775 = vadd.f32 0.0, %v1774
        %v1776 = vpop.f32.mrb[0].mxu0
        %v1777 = vpop.f32.mrb[0].mxu0
        %v1778 = vadd.f32 0.0, %v1777
        %v1779 = vpop.f32.mrb[0].mxu0
        %1780 = vmatprep.mubr.bf16.mxu0 0
        %1781 = vmatmul.mubr.bf16.gmra.mrb[0].mxu0 %v1267
        %v1782 = vpop.f32.mrb[0].mxu0
        %v1783 = vadd.f32 0.0, %v1782
        %v1784 = vpop.f32.mrb[0].mxu0
        %v1785 = vpop.f32.mrb[0].mxu0
        %v1786 = vadd.f32 0.0, %v1785
        %v1787 = vpop.f32.mrb[0].mxu0
        %1788 = vmatprep.mubr.bf16.mxu0 0
        %1789 = vmatmul.mubr.bf16.gmra.mrb[0].mxu0 %v1270
        %v1790 = vpop.f32.mrb[0].mxu0
        %v1791 = vadd.f32 0.0, %v1790
        %v1792 = vpop.f32.mrb[0].mxu0
        %v1793 = vpop.f32.mrb[0].mxu0
        %v1794 = vadd.f32 0.0, %v1793
        %v1795 = vpop.f32.mrb[0].mxu0
        %1796 = vmatprep.mubr.bf16.mxu0 0
        %1797 = vmatmul.mubr.bf16.gmra.mrb[0].mxu0 %v1273
        %v1798 = vpop.f32.mrb[0].mxu0
        %v1799 = vadd.f32 0.0, %v1798
        %v1800 = vpop.f32.mrb[0].mxu0
        %v1801 = vpop.f32.mrb[0].mxu0
        %v1802 = vadd.f32 0.0, %v1801
        %v1803 = vpop.f32.mrb[0].mxu0
        %1804 = vmatprep.mubr.bf16.mxu0 0
        %1805 = vmatmul.mubr.bf16.gmra.mrb[0].mxu0 %v1276
        %v1806 = vpop.f32.mrb[0].mxu0
        %v1807 = vadd.f32 0.0, %v1806
        %v1808 = vpop.f32.mrb[0].mxu0
        %v1809 = vpop.f32.mrb[0].mxu0
        %v1810 = vadd.f32 0.0, %v1809
        %v1811 = vpop.f32.mrb[0].mxu0
        %1812 = vmatprep.mubr.bf16.mxu0 0
        %1813 = vmatmul.mubr.bf16.gmra.mrb[0].mxu0 %v1279
        %v1814 = vpop.f32.mrb[0].mxu0
        %v1815 = vadd.f32 0.0, %v1814
        %v1816 = vpop.f32.mrb[0].mxu0
        %v1817 = vpop.f32.mrb[0].mxu0
        %v1818 = vadd.f32 0.0, %v1817
        %v1819 = vpop.f32.mrb[0].mxu0
        %1820 = vmatprep.mubr.bf16.mxu0 0
        %1821 = vmatmul.mubr.bf16.gmra.mrb[0].mxu0 %v1282
        %v1822 = vpop.f32.mrb[0].mxu0
        %v1823 = vadd.f32 0.0, %v1822
        %v1824 = vpop.f32.mrb[0].mxu0
        %v1825 = vpop.f32.mrb[0].mxu0
        %v1826 = vadd.f32 0.0, %v1825
        %v1827 = vpop.f32.mrb[0].mxu0
        %1828 = vmatprep.mubr.bf16.mxu0 0
        %1829 = vmatmul.mubr.bf16.gmra.mrb[0].mxu0 %v1285
        %v1830 = vpop.f32.mrb[0].mxu0
        %v1831 = vadd.f32 0.0, %v1830
        %v1832 = vpop.f32.mrb[0].mxu0
        %v1833 = vpop.f32.mrb[0].mxu0
        %v1834 = vadd.f32 0.0, %v1833
        %v1835 = vpop.f32.mrb[0].mxu0
        %1836 = vmatprep.mubr.bf16.mxu0 0
        %1837 = vmatmul.mubr.bf16.gmra.mrb[0].mxu0 %v1486
        %v1838 = vpop.f32.mrb[0].mxu0
        %v1839 = vadd.f32 0.0, %v1838
        %v1840 = vpop.f32.mrb[0].mxu0
        %v1841 = vpop.f32.mrb[0].mxu0
        %v1842 = vadd.f32 0.0, %v1841
        %v1843 = vpop.f32.mrb[0].mxu0
        %1844 = vmatprep.mubr.bf16.mxu0 0
        %1845 = vmatmul.mubr.bf16.gmra.mrb[0].mxu0 %v1687
        %v1846 = vpop.f32.mrb[0].mxu0
        %v1847 = vadd.f32 0.0, %v1846
        %v1848 = vpop.f32.mrb[0].mxu0
        %v1849 = vpop.f32.mrb[0].mxu0
        %v1850 = vadd.f32 0.0, %v1849
        %v1851 = vpop.f32.mrb[0].mxu0
        %1852 = vdwg.mxu0
        %v1853 = vadd.f32 %v1652, %v1727
        %v1854 = vadd.f32 %v1653, %v1730
        %v1855 = vadd.f32 %v1654, %v1735
        %v1856 = vadd.f32 %v1655, %v1738
        %v1857 = vadd.f32 %v1656, %v1743
        %v1858 = vadd.f32 %v1657, %v1746
        %v1859 = vadd.f32 %v1658, %v1751
        %v1860 = vadd.f32 %v1659, %v1754
        %v1861 = vadd.f32 %v1660, %v1759
        %v1862 = vadd.f32 %v1661, %v1762
        %v1863 = vadd.f32 %v1662, %v1767
        %v1864 = vadd.f32 %v1663, %v1770
        %v1865 = vadd.f32 %v1664, %v1775
        %v1866 = vadd.f32 %v1665, %v1778
        %v1867 = vadd.f32 %v1666, %v1783
        %v1868 = vadd.f32 %v1667, %v1786
        %v1869 = vadd.f32 %v1668, %v1791
        %v1870 = vadd.f32 %v1669, %v1794
        %v1871 = vadd.f32 %v1670, %v1799
        %v1872 = vadd.f32 %v1671, %v1802
        %v1873 = vadd.f32 %v1672, %v1807
        %v1874 = vadd.f32 %v1673, %v1810
        %v1875 = vadd.f32 %v1674, %v1815
        %v1876 = vadd.f32 %v1675, %v1818
        %v1877 = vadd.f32 %v1676, %v1823
        %v1878 = vadd.f32 %v1677, %v1826
        %v1879 = vadd.f32 %v1678, %v1831
        %v1880 = vadd.f32 %v1679, %v1834
        %v1881 = vadd.f32 %v1680, %v1839
        %v1882 = vadd.f32 %v1681, %v1842
        %v1883 = vadd.f32 %v1682, %v1847
        %v1884 = vadd.f32 %v1683, %v1850
        %v1885 = vld [vmem:[#allocation2 + $0x2] sm:$0xff]
        %v1886 = vld [vmem:[#allocation2 + $0xa] sm:$0xff]
        %v1887 = vld [vmem:[#allocation2 + $0x1a] sm:$0xff]
        %v1888 = vld [vmem:[#allocation2 + $0x22] sm:$0xff]
        %v1889 = vld [vmem:[#allocation2 + $0x32] sm:$0xff]
        %v1890 = vld [vmem:[#allocation2 + $0x3a] sm:$0xff]
        %v1891 = vld [vmem:[#allocation2 + $0x4a] sm:$0xff]
        %v1892 = vld [vmem:[#allocation2 + $0x52] sm:$0xff]
        %v1893 = vld [vmem:[#allocation2 + $0x62] sm:$0xff]
        %v1894 = vld [vmem:[#allocation2 + $0x6a] sm:$0xff]
        %v1895 = vld [vmem:[#allocation2 + $0x7a] sm:$0xff]
        %v1896 = vld [vmem:[#allocation2 + $0x82] sm:$0xff]
        %v1897 = vld [vmem:[#allocation2 + $0x92] sm:$0xff]
        %v1898 = vld [vmem:[#allocation2 + $0x9a] sm:$0xff]
        %v1899 = vld [vmem:[#allocation2 + $0xaa] sm:$0xff]
        %v1900 = vld [vmem:[#allocation2 + $0xb2] sm:$0xff]
        %v1901 = vld [vmem:[#allocation2 + $0xc2] sm:$0xff]
        %v1902 = vld [vmem:[#allocation2 + $0xca] sm:$0xff]
        %v1903 = vld [vmem:[#allocation2 + $0xda] sm:$0xff]
        %v1904 = vld [vmem:[#allocation2 + $0xe2] sm:$0xff]
        %v1905 = vld [vmem:[#allocation2 + $0xf2] sm:$0xff]
        %v1906 = vld [vmem:[#allocation2 + $0xfa] sm:$0xff]
        %v1907 = vld [vmem:[#allocation2 + $0x10a] sm:$0xff]
        %v1908 = vld [vmem:[#allocation2 + $0x112] sm:$0xff]
        %v1909 = vld [vmem:[#allocation2 + $0x122] sm:$0xff]
        %v1910 = vld [vmem:[#allocation2 + $0x12a] sm:$0xff]
        %v1911 = vld [vmem:[#allocation2 + $0x13a] sm:$0xff]
        %v1912 = vld [vmem:[#allocation2 + $0x142] sm:$0xff]
        %v1913 = vld [vmem:[#allocation2 + $0x152] sm:$0xff]
        %v1914 = vld [vmem:[#allocation2 + $0x15a] sm:$0xff]
        %v1915 = vld [vmem:[#allocation2 + $0x16a] sm:$0xff]
        %v1916 = vld [vmem:[#allocation2 + $0x172] sm:$0xff]
        %v1917 = vld [vmem:[#allocation2 + $0x182] sm:$0xff]
        %v1918 = vld [vmem:[#allocation2 + $0x18a] sm:$0xff]
        %v1919 = vld [vmem:[#allocation2 + $0x19a] sm:$0xff]
        %v1920 = vld [vmem:[#allocation2 + $0x1a2] sm:$0xff]
        %v1921 = vpack.c.bf16 %v1886, %v1885
        %v1922 = vpack.c.bf16 %v1888, %v1887
        %v1923 = vpack.c.bf16 %v1890, %v1889
        %v1924 = vpack.c.bf16 %v1892, %v1891
        %v1925 = vpack.c.bf16 %v1894, %v1893
        %v1926 = vpack.c.bf16 %v1896, %v1895
        %v1927 = vpack.c.bf16 %v1898, %v1897
        %v1928 = vpack.c.bf16 %v1900, %v1899
        %v1929 = vpack.c.bf16 %v1902, %v1901
        %v1930 = vpack.c.bf16 %v1904, %v1903
        %v1931 = vpack.c.bf16 %v1906, %v1905
        %v1932 = vpack.c.bf16 %v1908, %v1907
        %v1933 = vpack.c.bf16 %v1910, %v1909
        %v1934 = vpack.c.bf16 %v1912, %v1911
        %v1935 = vpack.c.bf16 %v1914, %v1913
        %v1936 = vpack.c.bf16 %v1916, %v1915
        %v1937 = vpack.c.bf16 %v1918, %v1917
        %v1938 = vpack.c.bf16 %v1920, %v1919
        %s1939 = scalar_lea.vmem [#allocation7], 4
        %v1940 = vld [vmem:[%s1939] sm:$0x3]
        %v1942 = vsel %vm363, %v1921, 0
        %v1945 = vsel %vm363, %v1922, 0
        %v1948 = vsel %vm363, %v1923, 0
        %v1951 = vsel %vm363, %v1924, 0
        %v1954 = vsel %vm363, %v1925, 0
        %v1957 = vsel %vm363, %v1926, 0
        %v1960 = vsel %vm363, %v1927, 0
        %v1963 = vsel %vm363, %v1928, 0
        %v1966 = vsel %vm363, %v1929, 0
        %v1969 = vsel %vm363, %v1930, 0
        %v1972 = vsel %vm363, %v1931, 0
        %v1975 = vsel %vm363, %v1932, 0
        %v1978 = vsel %vm363, %v1933, 0
        %v1981 = vsel %vm363, %v1934, 0
        %v1984 = vsel %vm363, %v1935, 0
        %v1987 = vsel %vm363, %v1936, 0
        %v1990 = vsel %vm584, %v1940, 0
        %1992 = vmatprep.subr.bf16.mxu0 0
        %1993 = vmatpush1.bf16.msra.mxu0 %v1990
        %1994 = vmatprep.subr.bf16.mxu0 0
        %1995 = vmatpush1.bf16.msra.mxu0 0
        %1996 = vmatprep.subr.bf16.mxu0 0
        %1997 = vmatpush1.bf16.msra.mxu0 0
        %1998 = vmatprep.subr.bf16.mxu0 0
        %1999 = vmatpush1.bf16.msra.mxu0 0
        %2000 = vmatprep.subr.bf16.mxu0 0
        %2001 = vmatpush1.bf16.msra.mxu0 0
        %2002 = vmatprep.subr.bf16.mxu0 0
        %2003 = vmatpush1.bf16.msra.mxu0 0
        %2004 = vmatprep.subr.bf16.mxu0 0
        %2005 = vmatpush1.bf16.msra.mxu0 0
        %2006 = vmatprep.subr.bf16.mxu0 0
        %2007 = vmatpush1.bf16.msra.mxu0 0
        %2008 = vmatprep.subr.bf16.mxu0 0
        %2009 = vmatpush1.bf16.msra.mxu0 0
        %2010 = vmatprep.subr.bf16.mxu0 0
        %2011 = vmatpush1.bf16.msra.mxu0 0
        %2012 = vmatprep.subr.bf16.mxu0 0
        %2013 = vmatpush1.bf16.msra.mxu0 0
        %2014 = vmatprep.subr.bf16.mxu0 0
        %2015 = vmatpush1.bf16.msra.mxu0 0
        %2016 = vmatprep.subr.bf16.mxu0 0
        %2017 = vmatpush1.bf16.msra.mxu0 0
        %2018 = vmatprep.subr.bf16.mxu0 0
        %2019 = vmatpush1.bf16.msra.mxu0 0
        %2020 = vmatprep.subr.bf16.mxu0 0
        %2021 = vmatpush1.bf16.msra.mxu0 0
        %2022 = vmatprep.subr.bf16.mxu0 0
        %2023 = vmatpush1.bf16.msra.mxu0 0
        %2024 = vmatprep.mubr.bf16.mxu0 0
        %2025 = vmatmul.mubr.bf16.gmra.mrb[0].mxu0 %v1942
        %v2026 = vpop.f32.mrb[0].mxu0
        %v2027 = vadd.f32 0.0, %v2026
        %v2028 = vpop.f32.mrb[0].mxu0
        %v2029 = vpop.f32.mrb[0].mxu0
        %v2030 = vadd.f32 0.0, %v2029
        %v2031 = vpop.f32.mrb[0].mxu0
        %2032 = vmatprep.mubr.bf16.mxu0 0
        %2033 = vmatmul.mubr.bf16.gmra.mrb[0].mxu0 %v1945
        %v2034 = vpop.f32.mrb[0].mxu0
        %v2035 = vadd.f32 0.0, %v2034
        %v2036 = vpop.f32.mrb[0].mxu0
        %v2037 = vpop.f32.mrb[0].mxu0
        %v2038 = vadd.f32 0.0, %v2037
        %v2039 = vpop.f32.mrb[0].mxu0
        %2040 = vmatprep.mubr.bf16.mxu0 0
        %2041 = vmatmul.mubr.bf16.gmra.mrb[0].mxu0 %v1948
        %v2042 = vpop.f32.mrb[0].mxu0
        %v2043 = vadd.f32 0.0, %v2042
        %v2044 = vpop.f32.mrb[0].mxu0
        %v2045 = vpop.f32.mrb[0].mxu0
        %v2046 = vadd.f32 0.0, %v2045
        %v2047 = vpop.f32.mrb[0].mxu0
        %2048 = vmatprep.mubr.bf16.mxu0 0
        %2049 = vmatmul.mubr.bf16.gmra.mrb[0].mxu0 %v1951
        %v2050 = vpop.f32.mrb[0].mxu0
        %v2051 = vadd.f32 0.0, %v2050
        %v2052 = vpop.f32.mrb[0].mxu0
        %v2053 = vpop.f32.mrb[0].mxu0
        %v2054 = vadd.f32 0.0, %v2053
        %v2055 = vpop.f32.mrb[0].mxu0
        %2056 = vmatprep.mubr.bf16.mxu0 0
        %2057 = vmatmul.mubr.bf16.gmra.mrb[0].mxu0 %v1954
        %v2058 = vpop.f32.mrb[0].mxu0
        %v2059 = vadd.f32 0.0, %v2058
        %v2060 = vpop.f32.mrb[0].mxu0
        %v2061 = vpop.f32.mrb[0].mxu0
        %v2062 = vadd.f32 0.0, %v2061
        %v2063 = vpop.f32.mrb[0].mxu0
        %2064 = vmatprep.mubr.bf16.mxu0 0
        %2065 = vmatmul.mubr.bf16.gmra.mrb[0].mxu0 %v1957
        %v2066 = vpop.f32.mrb[0].mxu0
        %v2067 = vadd.f32 0.0, %v2066
        %v2068 = vpop.f32.mrb[0].mxu0
        %v2069 = vpop.f32.mrb[0].mxu0
        %v2070 = vadd.f32 0.0, %v2069
        %v2071 = vpop.f32.mrb[0].mxu0
        %2072 = vmatprep.mubr.bf16.mxu0 0
        %2073 = vmatmul.mubr.bf16.gmra.mrb[0].mxu0 %v1960
        %v2074 = vpop.f32.mrb[0].mxu0
        %v2075 = vadd.f32 0.0, %v2074
        %v2076 = vpop.f32.mrb[0].mxu0
        %v2077 = vpop.f32.mrb[0].mxu0
        %v2078 = vadd.f32 0.0, %v2077
        %v2079 = vpop.f32.mrb[0].mxu0
        %2080 = vmatprep.mubr.bf16.mxu0 0
        %2081 = vmatmul.mubr.bf16.gmra.mrb[0].mxu0 %v1963
        %v2082 = vpop.f32.mrb[0].mxu0
        %v2083 = vadd.f32 0.0, %v2082
        %v2084 = vpop.f32.mrb[0].mxu0
        %v2085 = vpop.f32.mrb[0].mxu0
        %v2086 = vadd.f32 0.0, %v2085
        %v2087 = vpop.f32.mrb[0].mxu0
        %2088 = vmatprep.mubr.bf16.mxu0 0
        %2089 = vmatmul.mubr.bf16.gmra.mrb[0].mxu0 %v1966
        %v2090 = vpop.f32.mrb[0].mxu0
        %v2091 = vadd.f32 0.0, %v2090
        %v2092 = vpop.f32.mrb[0].mxu0
        %v2093 = vpop.f32.mrb[0].mxu0
        %v2094 = vadd.f32 0.0, %v2093
        %v2095 = vpop.f32.mrb[0].mxu0
        %2096 = vmatprep.mubr.bf16.mxu0 0
        %2097 = vmatmul.mubr.bf16.gmra.mrb[0].mxu0 %v1969
        %v2098 = vpop.f32.mrb[0].mxu0
        %v2099 = vadd.f32 0.0, %v2098
        %v2100 = vpop.f32.mrb[0].mxu0
        %v2101 = vpop.f32.mrb[0].mxu0
        %v2102 = vadd.f32 0.0, %v2101
        %v2103 = vpop.f32.mrb[0].mxu0
        %2104 = vmatprep.mubr.bf16.mxu0 0
        %2105 = vmatmul.mubr.bf16.gmra.mrb[0].mxu0 %v1972
        %v2106 = vpop.f32.mrb[0].mxu0
        %v2107 = vadd.f32 0.0, %v2106
        %v2108 = vpop.f32.mrb[0].mxu0
        %v2109 = vpop.f32.mrb[0].mxu0
        %v2110 = vadd.f32 0.0, %v2109
        %v2111 = vpop.f32.mrb[0].mxu0
        %2112 = vmatprep.mubr.bf16.mxu0 0
        %2113 = vmatmul.mubr.bf16.gmra.mrb[0].mxu0 %v1975
        %v2114 = vpop.f32.mrb[0].mxu0
        %v2115 = vadd.f32 0.0, %v2114
        %v2116 = vpop.f32.mrb[0].mxu0
        %v2117 = vpop.f32.mrb[0].mxu0
        %v2118 = vadd.f32 0.0, %v2117
        %v2119 = vpop.f32.mrb[0].mxu0
        %2120 = vmatprep.mubr.bf16.mxu0 0
        %2121 = vmatmul.mubr.bf16.gmra.mrb[0].mxu0 %v1978
        %v2122 = vpop.f32.mrb[0].mxu0
        %v2123 = vadd.f32 0.0, %v2122
        %v2124 = vpop.f32.mrb[0].mxu0
        %v2125 = vpop.f32.mrb[0].mxu0
        %v2126 = vadd.f32 0.0, %v2125
        %v2127 = vpop.f32.mrb[0].mxu0
        %2128 = vmatprep.mubr.bf16.mxu0 0
        %2129 = vmatmul.mubr.bf16.gmra.mrb[0].mxu0 %v1981
        %v2130 = vpop.f32.mrb[0].mxu0
        %v2131 = vadd.f32 0.0, %v2130
        %v2132 = vpop.f32.mrb[0].mxu0
        %v2133 = vpop.f32.mrb[0].mxu0
        %v2134 = vadd.f32 0.0, %v2133
        %v2135 = vpop.f32.mrb[0].mxu0
        %2136 = vmatprep.mubr.bf16.mxu0 0
        %2137 = vmatmul.mubr.bf16.gmra.mrb[0].mxu0 %v1984
        %v2138 = vpop.f32.mrb[0].mxu0
        %v2139 = vadd.f32 0.0, %v2138
        %v2140 = vpop.f32.mrb[0].mxu0
        %v2141 = vpop.f32.mrb[0].mxu0
        %v2142 = vadd.f32 0.0, %v2141
        %v2143 = vpop.f32.mrb[0].mxu0
        %2144 = vmatprep.mubr.bf16.mxu0 0
        %2145 = vmatmul.mubr.bf16.gmra.mrb[0].mxu0 %v1987
        %v2146 = vpop.f32.mrb[0].mxu0
        %v2147 = vadd.f32 0.0, %v2146
        %v2148 = vpop.f32.mrb[0].mxu0
        %v2149 = vpop.f32.mrb[0].mxu0
        %v2150 = vadd.f32 0.0, %v2149
        %v2151 = vpop.f32.mrb[0].mxu0
        %2152 = vdwg.mxu0
        %v2153 = vadd.f32 %v1853, %v2027
        %v2154 = vadd.f32 %v1854, %v2030
        %v2155 = vadd.f32 %v1855, %v2035
        %v2156 = vadd.f32 %v1856, %v2038
        %v2157 = vadd.f32 %v1857, %v2043
        %v2158 = vadd.f32 %v1858, %v2046
        %v2159 = vadd.f32 %v1859, %v2051
        %v2160 = vadd.f32 %v1860, %v2054
        %v2161 = vadd.f32 %v1861, %v2059
        %v2162 = vadd.f32 %v1862, %v2062
        %v2163 = vadd.f32 %v1863, %v2067
        %v2164 = vadd.f32 %v1864, %v2070
        %v2165 = vadd.f32 %v1865, %v2075
        %v2166 = vadd.f32 %v1866, %v2078
        %v2167 = vadd.f32 %v1867, %v2083
        %v2168 = vadd.f32 %v1868, %v2086
        %v2169 = vadd.f32 %v1869, %v2091
        %v2170 = vadd.f32 %v1870, %v2094
        %v2171 = vadd.f32 %v1871, %v2099
        %v2172 = vadd.f32 %v1872, %v2102
        %v2173 = vadd.f32 %v1873, %v2107
        %v2174 = vadd.f32 %v1874, %v2110
        %v2175 = vadd.f32 %v1875, %v2115
        %v2176 = vadd.f32 %v1876, %v2118
        %v2177 = vadd.f32 %v1877, %v2123
        %v2178 = vadd.f32 %v1878, %v2126
        %v2179 = vadd.f32 %v1879, %v2131
        %v2180 = vadd.f32 %v1880, %v2134
        %v2181 = vadd.f32 %v1881, %v2139
        %v2182 = vadd.f32 %v1882, %v2142
        %v2183 = vadd.f32 %v1883, %v2147
        %v2184 = vadd.f32 %v1884, %v2150
        %s2185 = scalar_lea.vmem [#allocation7], 10
        %v2186 = vld [vmem:[%s2185] sm:$0x3]
        %v2188 = vsel %vm363, %v1937, 0
        %v2191 = vsel %vm584, %v2186, 0
        %2193 = vmatprep.subr.bf16.mxu0 0
        %2194 = vmatpush1.bf16.msra.mxu0 %v2191
        %2195 = vmatprep.subr.bf16.mxu0 0
        %2196 = vmatpush1.bf16.msra.mxu0 0
        %2197 = vmatprep.subr.bf16.mxu0 0
        %2198 = vmatpush1.bf16.msra.mxu0 0
        %2199 = vmatprep.subr.bf16.mxu0 0
        %2200 = vmatpush1.bf16.msra.mxu0 0
        %2201 = vmatprep.subr.bf16.mxu0 0
        %2202 = vmatpush1.bf16.msra.mxu0 0
        %2203 = vmatprep.subr.bf16.mxu0 0
        %2204 = vmatpush1.bf16.msra.mxu0 0
        %2205 = vmatprep.subr.bf16.mxu0 0
        %2206 = vmatpush1.bf16.msra.mxu0 0
        %2207 = vmatprep.subr.bf16.mxu0 0
        %2208 = vmatpush1.bf16.msra.mxu0 0
        %2209 = vmatprep.subr.bf16.mxu0 0
        %2210 = vmatpush1.bf16.msra.mxu0 0
        %2211 = vmatprep.subr.bf16.mxu0 0
        %2212 = vmatpush1.bf16.msra.mxu0 0
        %2213 = vmatprep.subr.bf16.mxu0 0
        %2214 = vmatpush1.bf16.msra.mxu0 0
        %2215 = vmatprep.subr.bf16.mxu0 0
        %2216 = vmatpush1.bf16.msra.mxu0 0
        %2217 = vmatprep.subr.bf16.mxu0 0
        %2218 = vmatpush1.bf16.msra.mxu0 0
        %2219 = vmatprep.subr.bf16.mxu0 0
        %2220 = vmatpush1.bf16.msra.mxu0 0
        %2221 = vmatprep.subr.bf16.mxu0 0
        %2222 = vmatpush1.bf16.msra.mxu0 0
        %2223 = vmatprep.subr.bf16.mxu0 0
        %2224 = vmatpush1.bf16.msra.mxu0 0
        %2225 = vmatprep.mubr.bf16.mxu0 0
        %2226 = vmatmul.mubr.bf16.gmra.mrb[0].mxu0 %v1945
        %v2227 = vpop.f32.mrb[0].mxu0
        %v2228 = vadd.f32 0.0, %v2227
        %v2229 = vpop.f32.mrb[0].mxu0
        %v2230 = vpop.f32.mrb[0].mxu0
        %v2231 = vadd.f32 0.0, %v2230
        %v2232 = vpop.f32.mrb[0].mxu0
        %2233 = vmatprep.mubr.bf16.mxu0 0
        %2234 = vmatmul.mubr.bf16.gmra.mrb[0].mxu0 %v1948
        %v2235 = vpop.f32.mrb[0].mxu0
        %v2236 = vadd.f32 0.0, %v2235
        %v2237 = vpop.f32.mrb[0].mxu0
        %v2238 = vpop.f32.mrb[0].mxu0
        %v2239 = vadd.f32 0.0, %v2238
        %v2240 = vpop.f32.mrb[0].mxu0
        %2241 = vmatprep.mubr.bf16.mxu0 0
        %2242 = vmatmul.mubr.bf16.gmra.mrb[0].mxu0 %v1951
        %v2243 = vpop.f32.mrb[0].mxu0
        %v2244 = vadd.f32 0.0, %v2243
        %v2245 = vpop.f32.mrb[0].mxu0
        %v2246 = vpop.f32.mrb[0].mxu0
        %v2247 = vadd.f32 0.0, %v2246
        %v2248 = vpop.f32.mrb[0].mxu0
        %2249 = vmatprep.mubr.bf16.mxu0 0
        %2250 = vmatmul.mubr.bf16.gmra.mrb[0].mxu0 %v1954
        %v2251 = vpop.f32.mrb[0].mxu0
        %v2252 = vadd.f32 0.0, %v2251
        %v2253 = vpop.f32.mrb[0].mxu0
        %v2254 = vpop.f32.mrb[0].mxu0
        %v2255 = vadd.f32 0.0, %v2254
        %v2256 = vpop.f32.mrb[0].mxu0
        %2257 = vmatprep.mubr.bf16.mxu0 0
        %2258 = vmatmul.mubr.bf16.gmra.mrb[0].mxu0 %v1957
        %v2259 = vpop.f32.mrb[0].mxu0
        %v2260 = vadd.f32 0.0, %v2259
        %v2261 = vpop.f32.mrb[0].mxu0
        %v2262 = vpop.f32.mrb[0].mxu0
        %v2263 = vadd.f32 0.0, %v2262
        %v2264 = vpop.f32.mrb[0].mxu0
        %2265 = vmatprep.mubr.bf16.mxu0 0
        %2266 = vmatmul.mubr.bf16.gmra.mrb[0].mxu0 %v1960
        %v2267 = vpop.f32.mrb[0].mxu0
        %v2268 = vadd.f32 0.0, %v2267
        %v2269 = vpop.f32.mrb[0].mxu0
        %v2270 = vpop.f32.mrb[0].mxu0
        %v2271 = vadd.f32 0.0, %v2270
        %v2272 = vpop.f32.mrb[0].mxu0
        %2273 = vmatprep.mubr.bf16.mxu0 0
        %2274 = vmatmul.mubr.bf16.gmra.mrb[0].mxu0 %v1963
        %v2275 = vpop.f32.mrb[0].mxu0
        %v2276 = vadd.f32 0.0, %v2275
        %v2277 = vpop.f32.mrb[0].mxu0
        %v2278 = vpop.f32.mrb[0].mxu0
        %v2279 = vadd.f32 0.0, %v2278
        %v2280 = vpop.f32.mrb[0].mxu0
        %2281 = vmatprep.mubr.bf16.mxu0 0
        %2282 = vmatmul.mubr.bf16.gmra.mrb[0].mxu0 %v1966
        %v2283 = vpop.f32.mrb[0].mxu0
        %v2284 = vadd.f32 0.0, %v2283
        %v2285 = vpop.f32.mrb[0].mxu0
        %v2286 = vpop.f32.mrb[0].mxu0
        %v2287 = vadd.f32 0.0, %v2286
        %v2288 = vpop.f32.mrb[0].mxu0
        %2289 = vmatprep.mubr.bf16.mxu0 0
        %2290 = vmatmul.mubr.bf16.gmra.mrb[0].mxu0 %v1969
        %v2291 = vpop.f32.mrb[0].mxu0
        %v2292 = vadd.f32 0.0, %v2291
        %v2293 = vpop.f32.mrb[0].mxu0
        %v2294 = vpop.f32.mrb[0].mxu0
        %v2295 = vadd.f32 0.0, %v2294
        %v2296 = vpop.f32.mrb[0].mxu0
        %2297 = vmatprep.mubr.bf16.mxu0 0
        %2298 = vmatmul.mubr.bf16.gmra.mrb[0].mxu0 %v1972
        %v2299 = vpop.f32.mrb[0].mxu0
        %v2300 = vadd.f32 0.0, %v2299
        %v2301 = vpop.f32.mrb[0].mxu0
        %v2302 = vpop.f32.mrb[0].mxu0
        %v2303 = vadd.f32 0.0, %v2302
        %v2304 = vpop.f32.mrb[0].mxu0
        %2305 = vmatprep.mubr.bf16.mxu0 0
        %2306 = vmatmul.mubr.bf16.gmra.mrb[0].mxu0 %v1975
        %v2307 = vpop.f32.mrb[0].mxu0
        %v2308 = vadd.f32 0.0, %v2307
        %v2309 = vpop.f32.mrb[0].mxu0
        %v2310 = vpop.f32.mrb[0].mxu0
        %v2311 = vadd.f32 0.0, %v2310
        %v2312 = vpop.f32.mrb[0].mxu0
        %2313 = vmatprep.mubr.bf16.mxu0 0
        %2314 = vmatmul.mubr.bf16.gmra.mrb[0].mxu0 %v1978
        %v2315 = vpop.f32.mrb[0].mxu0
        %v2316 = vadd.f32 0.0, %v2315
        %v2317 = vpop.f32.mrb[0].mxu0
        %v2318 = vpop.f32.mrb[0].mxu0
        %v2319 = vadd.f32 0.0, %v2318
        %v2320 = vpop.f32.mrb[0].mxu0
        %2321 = vmatprep.mubr.bf16.mxu0 0
        %2322 = vmatmul.mubr.bf16.gmra.mrb[0].mxu0 %v1981
        %v2323 = vpop.f32.mrb[0].mxu0
        %v2324 = vadd.f32 0.0, %v2323
        %v2325 = vpop.f32.mrb[0].mxu0
        %v2326 = vpop.f32.mrb[0].mxu0
        %v2327 = vadd.f32 0.0, %v2326
        %v2328 = vpop.f32.mrb[0].mxu0
        %2329 = vmatprep.mubr.bf16.mxu0 0
        %2330 = vmatmul.mubr.bf16.gmra.mrb[0].mxu0 %v1984
        %v2331 = vpop.f32.mrb[0].mxu0
        %v2332 = vadd.f32 0.0, %v2331
        %v2333 = vpop.f32.mrb[0].mxu0
        %v2334 = vpop.f32.mrb[0].mxu0
        %v2335 = vadd.f32 0.0, %v2334
        %v2336 = vpop.f32.mrb[0].mxu0
        %2337 = vmatprep.mubr.bf16.mxu0 0
        %2338 = vmatmul.mubr.bf16.gmra.mrb[0].mxu0 %v1987
        %v2339 = vpop.f32.mrb[0].mxu0
        %v2340 = vadd.f32 0.0, %v2339
        %v2341 = vpop.f32.mrb[0].mxu0
        %v2342 = vpop.f32.mrb[0].mxu0
        %v2343 = vadd.f32 0.0, %v2342
        %v2344 = vpop.f32.mrb[0].mxu0
        %2345 = vmatprep.mubr.bf16.mxu0 0
        %2346 = vmatmul.mubr.bf16.gmra.mrb[0].mxu0 %v2188
        %v2347 = vpop.f32.mrb[0].mxu0
        %v2348 = vadd.f32 0.0, %v2347
        %v2349 = vpop.f32.mrb[0].mxu0
        %v2350 = vpop.f32.mrb[0].mxu0
        %v2351 = vadd.f32 0.0, %v2350
        %v2352 = vpop.f32.mrb[0].mxu0
        %2353 = vdwg.mxu0
        %v2354 = vadd.f32 %v2153, %v2228
        %v2355 = vadd.f32 %v2154, %v2231
        %v2356 = vadd.f32 %v2155, %v2236
        %v2357 = vadd.f32 %v2156, %v2239
        %v2358 = vadd.f32 %v2157, %v2244
        %v2359 = vadd.f32 %v2158, %v2247
        %v2360 = vadd.f32 %v2159, %v2252
        %v2361 = vadd.f32 %v2160, %v2255
        %v2362 = vadd.f32 %v2161, %v2260
        %v2363 = vadd.f32 %v2162, %v2263
        %v2364 = vadd.f32 %v2163, %v2268
        %v2365 = vadd.f32 %v2164, %v2271
        %v2366 = vadd.f32 %v2165, %v2276
        %v2367 = vadd.f32 %v2166, %v2279
        %v2368 = vadd.f32 %v2167, %v2284
        %v2369 = vadd.f32 %v2168, %v2287
        %v2370 = vadd.f32 %v2169, %v2292
        %v2371 = vadd.f32 %v2170, %v2295
        %v2372 = vadd.f32 %v2171, %v2300
        %v2373 = vadd.f32 %v2172, %v2303
        %v2374 = vadd.f32 %v2173, %v2308
        %v2375 = vadd.f32 %v2174, %v2311
        %v2376 = vadd.f32 %v2175, %v2316
        %v2377 = vadd.f32 %v2176, %v2319
        %v2378 = vadd.f32 %v2177, %v2324
        %v2379 = vadd.f32 %v2178, %v2327
        %v2380 = vadd.f32 %v2179, %v2332
        %v2381 = vadd.f32 %v2180, %v2335
        %v2382 = vadd.f32 %v2181, %v2340
        %v2383 = vadd.f32 %v2182, %v2343
        %v2384 = vadd.f32 %v2183, %v2348
        %v2385 = vadd.f32 %v2184, %v2351
        %s2386 = scalar_lea.vmem [#allocation7], 16
        %v2387 = vld [vmem:[%s2386] sm:$0x3]
        %v2389 = vsel %vm363, %v1938, 0
        %v2392 = vsel %vm584, %v2387, 0
        %2394 = vmatprep.subr.bf16.mxu0 0
        %2395 = vmatpush1.bf16.msra.mxu0 %v2392
        %2396 = vmatprep.subr.bf16.mxu0 0
        %2397 = vmatpush1.bf16.msra.mxu0 0
        %2398 = vmatprep.subr.bf16.mxu0 0
        %2399 = vmatpush1.bf16.msra.mxu0 0
        %2400 = vmatprep.subr.bf16.mxu0 0
        %2401 = vmatpush1.bf16.msra.mxu0 0
        %2402 = vmatprep.subr.bf16.mxu0 0
        %2403 = vmatpush1.bf16.msra.mxu0 0
        %2404 = vmatprep.subr.bf16.mxu0 0
        %2405 = vmatpush1.bf16.msra.mxu0 0
        %2406 = vmatprep.subr.bf16.mxu0 0
        %2407 = vmatpush1.bf16.msra.mxu0 0
        %2408 = vmatprep.subr.bf16.mxu0 0
        %2409 = vmatpush1.bf16.msra.mxu0 0
        %2410 = vmatprep.subr.bf16.mxu0 0
        %2411 = vmatpush1.bf16.msra.mxu0 0
        %2412 = vmatprep.subr.bf16.mxu0 0
        %2413 = vmatpush1.bf16.msra.mxu0 0
        %2414 = vmatprep.subr.bf16.mxu0 0
        %2415 = vmatpush1.bf16.msra.mxu0 0
        %2416 = vmatprep.subr.bf16.mxu0 0
        %2417 = vmatpush1.bf16.msra.mxu0 0
        %2418 = vmatprep.subr.bf16.mxu0 0
        %2419 = vmatpush1.bf16.msra.mxu0 0
        %2420 = vmatprep.subr.bf16.mxu0 0
        %2421 = vmatpush1.bf16.msra.mxu0 0
        %2422 = vmatprep.subr.bf16.mxu0 0
        %2423 = vmatpush1.bf16.msra.mxu0 0
        %2424 = vmatprep.subr.bf16.mxu0 0
        %2425 = vmatpush1.bf16.msra.mxu0 0
        %2426 = vmatprep.mubr.bf16.mxu0 0
        %2427 = vmatmul.mubr.bf16.gmra.mrb[0].mxu0 %v1948
        %v2428 = vpop.f32.mrb[0].mxu0
        %v2429 = vadd.f32 0.0, %v2428
        %v2430 = vpop.f32.mrb[0].mxu0
        %v2431 = vpop.f32.mrb[0].mxu0
        %v2432 = vadd.f32 0.0, %v2431
        %v2433 = vpop.f32.mrb[0].mxu0
        %2434 = vmatprep.mubr.bf16.mxu0 0
        %2435 = vmatmul.mubr.bf16.gmra.mrb[0].mxu0 %v1951
        %v2436 = vpop.f32.mrb[0].mxu0
        %v2437 = vadd.f32 0.0, %v2436
        %v2438 = vpop.f32.mrb[0].mxu0
        %v2439 = vpop.f32.mrb[0].mxu0
        %v2440 = vadd.f32 0.0, %v2439
        %v2441 = vpop.f32.mrb[0].mxu0
        %2442 = vmatprep.mubr.bf16.mxu0 0
        %2443 = vmatmul.mubr.bf16.gmra.mrb[0].mxu0 %v1954
        %v2444 = vpop.f32.mrb[0].mxu0
        %v2445 = vadd.f32 0.0, %v2444
        %v2446 = vpop.f32.mrb[0].mxu0
        %v2447 = vpop.f32.mrb[0].mxu0
        %v2448 = vadd.f32 0.0, %v2447
        %v2449 = vpop.f32.mrb[0].mxu0
        %2450 = vmatprep.mubr.bf16.mxu0 0
        %2451 = vmatmul.mubr.bf16.gmra.mrb[0].mxu0 %v1957
        %v2452 = vpop.f32.mrb[0].mxu0
        %v2453 = vadd.f32 0.0, %v2452
        %v2454 = vpop.f32.mrb[0].mxu0
        %v2455 = vpop.f32.mrb[0].mxu0
        %v2456 = vadd.f32 0.0, %v2455
        %v2457 = vpop.f32.mrb[0].mxu0
        %2458 = vmatprep.mubr.bf16.mxu0 0
        %2459 = vmatmul.mubr.bf16.gmra.mrb[0].mxu0 %v1960
        %v2460 = vpop.f32.mrb[0].mxu0
        %v2461 = vadd.f32 0.0, %v2460
        %v2462 = vpop.f32.mrb[0].mxu0
        %v2463 = vpop.f32.mrb[0].mxu0
        %v2464 = vadd.f32 0.0, %v2463
        %v2465 = vpop.f32.mrb[0].mxu0
        %2466 = vmatprep.mubr.bf16.mxu0 0
        %2467 = vmatmul.mubr.bf16.gmra.mrb[0].mxu0 %v1963
        %v2468 = vpop.f32.mrb[0].mxu0
        %v2469 = vadd.f32 0.0, %v2468
        %v2470 = vpop.f32.mrb[0].mxu0
        %v2471 = vpop.f32.mrb[0].mxu0
        %v2472 = vadd.f32 0.0, %v2471
        %v2473 = vpop.f32.mrb[0].mxu0
        %2474 = vmatprep.mubr.bf16.mxu0 0
        %2475 = vmatmul.mubr.bf16.gmra.mrb[0].mxu0 %v1966
        %v2476 = vpop.f32.mrb[0].mxu0
        %v2477 = vadd.f32 0.0, %v2476
        %v2478 = vpop.f32.mrb[0].mxu0
        %v2479 = vpop.f32.mrb[0].mxu0
        %v2480 = vadd.f32 0.0, %v2479
        %v2481 = vpop.f32.mrb[0].mxu0
        %2482 = vmatprep.mubr.bf16.mxu0 0
        %2483 = vmatmul.mubr.bf16.gmra.mrb[0].mxu0 %v1969
        %v2484 = vpop.f32.mrb[0].mxu0
        %v2485 = vadd.f32 0.0, %v2484
        %v2486 = vpop.f32.mrb[0].mxu0
        %v2487 = vpop.f32.mrb[0].mxu0
        %v2488 = vadd.f32 0.0, %v2487
        %v2489 = vpop.f32.mrb[0].mxu0
        %2490 = vmatprep.mubr.bf16.mxu0 0
        %2491 = vmatmul.mubr.bf16.gmra.mrb[0].mxu0 %v1972
        %v2492 = vpop.f32.mrb[0].mxu0
        %v2493 = vadd.f32 0.0, %v2492
        %v2494 = vpop.f32.mrb[0].mxu0
        %v2495 = vpop.f32.mrb[0].mxu0
        %v2496 = vadd.f32 0.0, %v2495
        %v2497 = vpop.f32.mrb[0].mxu0
        %2498 = vmatprep.mubr.bf16.mxu0 0
        %2499 = vmatmul.mubr.bf16.gmra.mrb[0].mxu0 %v1975
        %v2500 = vpop.f32.mrb[0].mxu0
        %v2501 = vadd.f32 0.0, %v2500
        %v2502 = vpop.f32.mrb[0].mxu0
        %v2503 = vpop.f32.mrb[0].mxu0
        %v2504 = vadd.f32 0.0, %v2503
        %v2505 = vpop.f32.mrb[0].mxu0
        %2506 = vmatprep.mubr.bf16.mxu0 0
        %2507 = vmatmul.mubr.bf16.gmra.mrb[0].mxu0 %v1978
        %v2508 = vpop.f32.mrb[0].mxu0
        %v2509 = vadd.f32 0.0, %v2508
        %v2510 = vpop.f32.mrb[0].mxu0
        %v2511 = vpop.f32.mrb[0].mxu0
        %v2512 = vadd.f32 0.0, %v2511
        %v2513 = vpop.f32.mrb[0].mxu0
        %2514 = vmatprep.mubr.bf16.mxu0 0
        %2515 = vmatmul.mubr.bf16.gmra.mrb[0].mxu0 %v1981
        %v2516 = vpop.f32.mrb[0].mxu0
        %v2517 = vadd.f32 0.0, %v2516
        %v2518 = vpop.f32.mrb[0].mxu0
        %v2519 = vpop.f32.mrb[0].mxu0
        %v2520 = vadd.f32 0.0, %v2519
        %v2521 = vpop.f32.mrb[0].mxu0
        %2522 = vmatprep.mubr.bf16.mxu0 0
        %2523 = vmatmul.mubr.bf16.gmra.mrb[0].mxu0 %v1984
        %v2524 = vpop.f32.mrb[0].mxu0
        %v2525 = vadd.f32 0.0, %v2524
        %v2526 = vpop.f32.mrb[0].mxu0
        %v2527 = vpop.f32.mrb[0].mxu0
        %v2528 = vadd.f32 0.0, %v2527
        %v2529 = vpop.f32.mrb[0].mxu0
        %2530 = vmatprep.mubr.bf16.mxu0 0
        %2531 = vmatmul.mubr.bf16.gmra.mrb[0].mxu0 %v1987
        %v2532 = vpop.f32.mrb[0].mxu0
        %v2533 = vadd.f32 0.0, %v2532
        %v2534 = vpop.f32.mrb[0].mxu0
        %v2535 = vpop.f32.mrb[0].mxu0
        %v2536 = vadd.f32 0.0, %v2535
        %v2537 = vpop.f32.mrb[0].mxu0
        %2538 = vmatprep.mubr.bf16.mxu0 0
        %2539 = vmatmul.mubr.bf16.gmra.mrb[0].mxu0 %v2188
        %v2540 = vpop.f32.mrb[0].mxu0
        %v2541 = vadd.f32 0.0, %v2540
        %v2542 = vpop.f32.mrb[0].mxu0
        %v2543 = vpop.f32.mrb[0].mxu0
        %v2544 = vadd.f32 0.0, %v2543
        %v2545 = vpop.f32.mrb[0].mxu0
        %2546 = vmatprep.mubr.bf16.mxu0 0
        %2547 = vmatmul.mubr.bf16.gmra.mrb[0].mxu0 %v2389
        %v2548 = vpop.f32.mrb[0].mxu0
        %v2549 = vadd.f32 0.0, %v2548
        %v2550 = vpop.f32.mrb[0].mxu0
        %v2551 = vpop.f32.mrb[0].mxu0
        %v2552 = vadd.f32 0.0, %v2551
        %v2553 = vpop.f32.mrb[0].mxu0
        %2554 = vdwg.mxu0
        %v2555 = vadd.f32 %v2354, %v2429
        %v2556 = vadd.f32 %v2355, %v2432
        %v2557 = vadd.f32 %v2356, %v2437
        %v2558 = vadd.f32 %v2357, %v2440
        %v2559 = vadd.f32 %v2358, %v2445
        %v2560 = vadd.f32 %v2359, %v2448
        %v2561 = vadd.f32 %v2360, %v2453
        %v2562 = vadd.f32 %v2361, %v2456
        %v2563 = vadd.f32 %v2362, %v2461
        %v2564 = vadd.f32 %v2363, %v2464
        %v2565 = vadd.f32 %v2364, %v2469
        %v2566 = vadd.f32 %v2365, %v2472
        %v2567 = vadd.f32 %v2366, %v2477
        %v2568 = vadd.f32 %v2367, %v2480
        %v2569 = vadd.f32 %v2368, %v2485
        %v2570 = vadd.f32 %v2369, %v2488
        %v2571 = vadd.f32 %v2370, %v2493
        %v2572 = vadd.f32 %v2371, %v2496
        %v2573 = vadd.f32 %v2372, %v2501
        %v2574 = vadd.f32 %v2373, %v2504
        %v2575 = vadd.f32 %v2374, %v2509
        %v2576 = vadd.f32 %v2375, %v2512
        %v2577 = vadd.f32 %v2376, %v2517
        %v2578 = vadd.f32 %v2377, %v2520
        %v2579 = vadd.f32 %v2378, %v2525
        %v2580 = vadd.f32 %v2379, %v2528
        %v2581 = vadd.f32 %v2380, %v2533
        %v2582 = vadd.f32 %v2381, %v2536
        %v2583 = vadd.f32 %v2382, %v2541
        %v2584 = vadd.f32 %v2383, %v2544
        %v2585 = vadd.f32 %v2384, %v2549
        %v2586 = vadd.f32 %v2385, %v2552
        %v2587 = vmax.f32 %v2555, 0.0
        %v2588 = vmax.f32 %v2556, 0.0
        %v2589 = vmax.f32 %v2557, 0.0
        %v2590 = vmax.f32 %v2558, 0.0
        %v2591 = vmax.f32 %v2559, 0.0
        %v2592 = vmax.f32 %v2560, 0.0
        %v2593 = vmax.f32 %v2561, 0.0
        %v2594 = vmax.f32 %v2562, 0.0
        %v2595 = vmax.f32 %v2563, 0.0
        %v2596 = vmax.f32 %v2564, 0.0
        %v2597 = vmax.f32 %v2565, 0.0
        %v2598 = vmax.f32 %v2566, 0.0
        %v2599 = vmax.f32 %v2567, 0.0
        %v2600 = vmax.f32 %v2568, 0.0
        %v2601 = vmax.f32 %v2569, 0.0
        %v2602 = vmax.f32 %v2570, 0.0
        %v2603 = vmax.f32 %v2571, 0.0
        %v2604 = vmax.f32 %v2572, 0.0
        %v2605 = vmax.f32 %v2573, 0.0
        %v2606 = vmax.f32 %v2574, 0.0
        %v2607 = vmax.f32 %v2575, 0.0
        %v2608 = vmax.f32 %v2576, 0.0
        %v2609 = vmax.f32 %v2577, 0.0
        %v2610 = vmax.f32 %v2578, 0.0
        %v2611 = vmax.f32 %v2579, 0.0
        %v2612 = vmax.f32 %v2580, 0.0
        %v2613 = vmax.f32 %v2581, 0.0
        %v2614 = vmax.f32 %v2582, 0.0
        %v2615 = vmax.f32 %v2583, 0.0
        %v2616 = vmax.f32 %v2584, 0.0
        %v2617 = vmax.f32 %v2585, 0.0
        %v2618 = vmax.f32 %v2586, 0.0
        %s2619 = scalar_lea.vmem [#allocation3], 24
        %vm2620 = vcmask 64512
        %2621 = vst.msk [vmem:[%s2619 + $0x1] sm:$0xff] %vm2620, %v2587
        %2622 = vst.msk [vmem:[%s2619 + $0x9] sm:$0xff] %vm2620, %v2588
        %2623 = vst.msk [vmem:[%s2619 + $0x19] sm:$0xff] %vm2620, %v2589
        %2624 = vst.msk [vmem:[%s2619 + $0x21] sm:$0xff] %vm2620, %v2590
        %2625 = vst.msk [vmem:[%s2619 + $0x31] sm:$0xff] %vm2620, %v2591
        %2626 = vst.msk [vmem:[%s2619 + $0x39] sm:$0xff] %vm2620, %v2592
        %2627 = vst.msk [vmem:[%s2619 + $0x49] sm:$0xff] %vm2620, %v2593
        %2628 = vst.msk [vmem:[%s2619 + $0x51] sm:$0xff] %vm2620, %v2594
        %2629 = vst.msk [vmem:[%s2619 + $0x61] sm:$0xff] %vm2620, %v2595
        %2630 = vst.msk [vmem:[%s2619 + $0x69] sm:$0xff] %vm2620, %v2596
        %2631 = vst.msk [vmem:[%s2619 + $0x79] sm:$0xff] %vm2620, %v2597
        %2632 = vst.msk [vmem:[%s2619 + $0x81] sm:$0xff] %vm2620, %v2598
        %2633 = vst.msk [vmem:[%s2619 + $0x91] sm:$0xff] %vm2620, %v2599
        %2634 = vst.msk [vmem:[%s2619 + $0x99] sm:$0xff] %vm2620, %v2600
        %2635 = vst.msk [vmem:[%s2619 + $0xa9] sm:$0xff] %vm2620, %v2601
        %2636 = vst.msk [vmem:[%s2619 + $0xb1] sm:$0xff] %vm2620, %v2602
        %2637 = vst.msk [vmem:[%s2619 + $0xc1] sm:$0xff] %vm2620, %v2603
        %2638 = vst.msk [vmem:[%s2619 + $0xc9] sm:$0xff] %vm2620, %v2604
        %2639 = vst.msk [vmem:[%s2619 + $0xd9] sm:$0xff] %vm2620, %v2605
        %2640 = vst.msk [vmem:[%s2619 + $0xe1] sm:$0xff] %vm2620, %v2606
        %2641 = vst.msk [vmem:[%s2619 + $0xf1] sm:$0xff] %vm2620, %v2607
        %2642 = vst.msk [vmem:[%s2619 + $0xf9] sm:$0xff] %vm2620, %v2608
        %2643 = vst.msk [vmem:[%s2619 + $0x109] sm:$0xff] %vm2620, %v2609
        %2644 = vst.msk [vmem:[%s2619 + $0x111] sm:$0xff] %vm2620, %v2610
        %2645 = vst.msk [vmem:[%s2619 + $0x121] sm:$0xff] %vm2620, %v2611
        %2646 = vst.msk [vmem:[%s2619 + $0x129] sm:$0xff] %vm2620, %v2612
        %2647 = vst.msk [vmem:[%s2619 + $0x139] sm:$0xff] %vm2620, %v2613
        %2648 = vst.msk [vmem:[%s2619 + $0x141] sm:$0xff] %vm2620, %v2614
        %2649 = vst.msk [vmem:[%s2619 + $0x151] sm:$0xff] %vm2620, %v2615
        %2650 = vst.msk [vmem:[%s2619 + $0x159] sm:$0xff] %vm2620, %v2616
        %2651 = vst.msk [vmem:[%s2619 + $0x169] sm:$0xff] %vm2620, %v2617
        %2652 = vst.msk [vmem:[%s2619 + $0x171] sm:$0xff] %vm2620, %v2618
        %2653 = vst.msk [vmem:[#allocation3 + $0x1] sm:$0xff] %vm2620, %v2617
        %2654 = vst.msk [vmem:[#allocation3 + $0x9] sm:$0xff] %vm2620, %v2618
        %s2655 = scalar_lea.vmem [#allocation3], 408
        %2656 = vst.msk [vmem:[%s2655 + $0x1] sm:$0xff] %vm2620, %v2587
        %2657 = vst.msk [vmem:[%s2655 + $0x9] sm:$0xff] %vm2620, %v2588
        %v2658 = vld [vmem:[#allocation3 + $0x10] sm:$0x1]
        %v2659 = vld [vmem:[#allocation3 + $0x28] sm:$0x1]
        %v2660 = vld [vmem:[#allocation3 + $0x40] sm:$0x1]
        %v2661 = vld [vmem:[#allocation3 + $0x58] sm:$0x1]
        %v2662 = vld [vmem:[#allocation3 + $0x70] sm:$0x1]
        %v2663 = vld [vmem:[#allocation3 + $0x88] sm:$0x1]
        %v2664 = vld [vmem:[#allocation3 + $0xa0] sm:$0x1]
        %v2665 = vld [vmem:[#allocation3 + $0xb8] sm:$0x1]
        %v2666 = vld [vmem:[#allocation3 + $0xd0] sm:$0x1]
        %v2667 = vld [vmem:[#allocation3 + $0xe8] sm:$0x1]
        %v2668 = vld [vmem:[#allocation3 + $0x100] sm:$0x1]
        %v2669 = vld [vmem:[#allocation3 + $0x118] sm:$0x1]
        %v2670 = vld [vmem:[#allocation3 + $0x130] sm:$0x1]
        %v2671 = vld [vmem:[#allocation3 + $0x148] sm:$0x1]
        %v2672 = vld [vmem:[#allocation3 + $0x160] sm:$0x1]
        %v2673 = vld [vmem:[#allocation3 + $0x178] sm:$0x1]
        %v2674 = vld [vmem:[#allocation3 + $0x190] sm:$0x1]
        %v2675 = vld [vmem:[#allocation3 + $0x1a8] sm:$0x1]
        %vm2676 = vcmask 57344
        %2677 = vst.msk [vmem:[#allocation3] sm:$0x1] %vm2676, %v2658
        %2678 = vst.msk [vmem:[#allocation3 + $0x18] sm:$0x1] %vm2676, %v2659
        %2679 = vst.msk [vmem:[#allocation3 + $0x30] sm:$0x1] %vm2676, %v2660
        %2680 = vst.msk [vmem:[#allocation3 + $0x48] sm:$0x1] %vm2676, %v2661
        %2681 = vst.msk [vmem:[#allocation3 + $0x60] sm:$0x1] %vm2676, %v2662
        %2682 = vst.msk [vmem:[#allocation3 + $0x78] sm:$0x1] %vm2676, %v2663
        %2683 = vst.msk [vmem:[#allocation3 + $0x90] sm:$0x1] %vm2676, %v2664
        %2684 = vst.msk [vmem:[#allocation3 + $0xa8] sm:$0x1] %vm2676, %v2665
        %2685 = vst.msk [vmem:[#allocation3 + $0xc0] sm:$0x1] %vm2676, %v2666
        %2686 = vst.msk [vmem:[#allocation3 + $0xd8] sm:$0x1] %vm2676, %v2667
        %2687 = vst.msk [vmem:[#allocation3 + $0xf0] sm:$0x1] %vm2676, %v2668
        %2688 = vst.msk [vmem:[#allocation3 + $0x108] sm:$0x1] %vm2676, %v2669
        %2689 = vst.msk [vmem:[#allocation3 + $0x120] sm:$0x1] %vm2676, %v2670
        %2690 = vst.msk [vmem:[#allocation3 + $0x138] sm:$0x1] %vm2676, %v2671
        %2691 = vst.msk [vmem:[#allocation3 + $0x150] sm:$0x1] %vm2676, %v2672
        %2692 = vst.msk [vmem:[#allocation3 + $0x168] sm:$0x1] %vm2676, %v2673
        %2693 = vst.msk [vmem:[#allocation3 + $0x180] sm:$0x1] %vm2676, %v2674
        %2694 = vst.msk [vmem:[#allocation3 + $0x198] sm:$0x1] %vm2676, %v2675
        %v2695 = vld [vmem:[#allocation3 + $0x1] sm:$0x1]
        %v2696 = vld [vmem:[#allocation3 + $0x19] sm:$0x1]
        %v2697 = vld [vmem:[#allocation3 + $0x31] sm:$0x1]
        %v2698 = vld [vmem:[#allocation3 + $0x49] sm:$0x1]
        %v2699 = vld [vmem:[#allocation3 + $0x61] sm:$0x1]
        %v2700 = vld [vmem:[#allocation3 + $0x79] sm:$0x1]
        %v2701 = vld [vmem:[#allocation3 + $0x91] sm:$0x1]
        %v2702 = vld [vmem:[#allocation3 + $0xa9] sm:$0x1]
        %v2703 = vld [vmem:[#allocation3 + $0xc1] sm:$0x1]
        %v2704 = vld [vmem:[#allocation3 + $0xd9] sm:$0x1]
        %v2705 = vld [vmem:[#allocation3 + $0xf1] sm:$0x1]
        %v2706 = vld [vmem:[#allocation3 + $0x109] sm:$0x1]
        %v2707 = vld [vmem:[#allocation3 + $0x121] sm:$0x1]
        %v2708 = vld [vmem:[#allocation3 + $0x139] sm:$0x1]
        %v2709 = vld [vmem:[#allocation3 + $0x151] sm:$0x1]
        %v2710 = vld [vmem:[#allocation3 + $0x169] sm:$0x1]
        %v2711 = vld [vmem:[#allocation3 + $0x181] sm:$0x1]
        %v2712 = vld [vmem:[#allocation3 + $0x199] sm:$0x1]
        %2713 = vst.msk [vmem:[#allocation3 + $0x11] sm:$0x1] %vm2676, %v2695
        %2714 = vst.msk [vmem:[#allocation3 + $0x29] sm:$0x1] %vm2676, %v2696
        %2715 = vst.msk [vmem:[#allocation3 + $0x41] sm:$0x1] %vm2676, %v2697
        %2716 = vst.msk [vmem:[#allocation3 + $0x59] sm:$0x1] %vm2676, %v2698
        %2717 = vst.msk [vmem:[#allocation3 + $0x71] sm:$0x1] %vm2676, %v2699
        %2718 = vst.msk [vmem:[#allocation3 + $0x89] sm:$0x1] %vm2676, %v2700
        %2719 = vst.msk [vmem:[#allocation3 + $0xa1] sm:$0x1] %vm2676, %v2701
        %2720 = vst.msk [vmem:[#allocation3 + $0xb9] sm:$0x1] %vm2676, %v2702
        %2721 = vst.msk [vmem:[#allocation3 + $0xd1] sm:$0x1] %vm2676, %v2703
        %2722 = vst.msk [vmem:[#allocation3 + $0xe9] sm:$0x1] %vm2676, %v2704
        %2723 = vst.msk [vmem:[#allocation3 + $0x101] sm:$0x1] %vm2676, %v2705
        %2724 = vst.msk [vmem:[#allocation3 + $0x119] sm:$0x1] %vm2676, %v2706
        %2725 = vst.msk [vmem:[#allocation3 + $0x131] sm:$0x1] %vm2676, %v2707
        %2726 = vst.msk [vmem:[#allocation3 + $0x149] sm:$0x1] %vm2676, %v2708
        %2727 = vst.msk [vmem:[#allocation3 + $0x161] sm:$0x1] %vm2676, %v2709
        %2728 = vst.msk [vmem:[#allocation3 + $0x179] sm:$0x1] %vm2676, %v2710
        %2729 = vst.msk [vmem:[#allocation3 + $0x191] sm:$0x1] %vm2676, %v2711
        %2730 = vst.msk [vmem:[#allocation3 + $0x1a9] sm:$0x1] %vm2676, %v2712
        %v2731 = vld [vmem:[#allocation12] sm:$0x1]
        %v2733 = vlaneseq
        %v2734 = vshrl.u32 %v2733, 7
        %v2735 = vsub.s32 0, %v2734
        %v2736 = vrot.slane %v2731, %v2735
        %v2738 = vld [vmem:[#allocation3] sm:$0xff]
        %v2739 = vld [vmem:[#allocation3 + $0x8] sm:$0xff]
        %v2740 = vld [vmem:[#allocation3 + $0x18] sm:$0xff]
        %v2741 = vld [vmem:[#allocation3 + $0x20] sm:$0xff]
        %v2742 = vld [vmem:[#allocation3 + $0x30] sm:$0xff]
        %v2743 = vld [vmem:[#allocation3 + $0x38] sm:$0xff]
        %v2744 = vld [vmem:[#allocation3 + $0x48] sm:$0xff]
        %v2745 = vld [vmem:[#allocation3 + $0x50] sm:$0xff]
        %v2746 = vld [vmem:[#allocation3 + $0x60] sm:$0xff]
        %v2747 = vld [vmem:[#allocation3 + $0x68] sm:$0xff]
        %v2748 = vld [vmem:[#allocation3 + $0x78] sm:$0xff]
        %v2749 = vld [vmem:[#allocation3 + $0x80] sm:$0xff]
        %v2750 = vld [vmem:[#allocation3 + $0x90] sm:$0xff]
        %v2751 = vld [vmem:[#allocation3 + $0x98] sm:$0xff]
        %v2752 = vld [vmem:[#allocation3 + $0xa8] sm:$0xff]
        %v2753 = vld [vmem:[#allocation3 + $0xb0] sm:$0xff]
        %v2754 = vld [vmem:[#allocation3 + $0xc0] sm:$0xff]
        %v2755 = vld [vmem:[#allocation3 + $0xc8] sm:$0xff]
        %v2756 = vld [vmem:[#allocation3 + $0xd8] sm:$0xff]
        %v2757 = vld [vmem:[#allocation3 + $0xe0] sm:$0xff]
        %v2758 = vld [vmem:[#allocation3 + $0xf0] sm:$0xff]
        %v2759 = vld [vmem:[#allocation3 + $0xf8] sm:$0xff]
        %v2760 = vld [vmem:[#allocation3 + $0x108] sm:$0xff]
        %v2761 = vld [vmem:[#allocation3 + $0x110] sm:$0xff]
        %v2762 = vld [vmem:[#allocation3 + $0x120] sm:$0xff]
        %v2763 = vld [vmem:[#allocation3 + $0x128] sm:$0xff]
        %v2764 = vld [vmem:[#allocation3 + $0x138] sm:$0xff]
        %v2765 = vld [vmem:[#allocation3 + $0x140] sm:$0xff]
        %v2766 = vld [vmem:[#allocation3 + $0x150] sm:$0xff]
        %v2767 = vld [vmem:[#allocation3 + $0x158] sm:$0xff]
        %v2768 = vld [vmem:[#allocation3 + $0x168] sm:$0xff]
        %v2769 = vld [vmem:[#allocation3 + $0x170] sm:$0xff]
        %v2770 = vld [vmem:[#allocation3 + $0x180] sm:$0xff]
        %v2771 = vld [vmem:[#allocation3 + $0x188] sm:$0xff]
        %v2772 = vld [vmem:[#allocation3 + $0x198] sm:$0xff]
        %v2773 = vld [vmem:[#allocation3 + $0x1a0] sm:$0xff]
        %v2774 = vpack.c.bf16 %v2739, %v2738
        %v2775 = vpack.c.bf16 %v2741, %v2740
        %v2776 = vpack.c.bf16 %v2743, %v2742
        %v2777 = vpack.c.bf16 %v2745, %v2744
        %v2778 = vpack.c.bf16 %v2747, %v2746
        %v2779 = vpack.c.bf16 %v2749, %v2748
        %v2780 = vpack.c.bf16 %v2751, %v2750
        %v2781 = vpack.c.bf16 %v2753, %v2752
        %v2782 = vpack.c.bf16 %v2755, %v2754
        %v2783 = vpack.c.bf16 %v2757, %v2756
        %v2784 = vpack.c.bf16 %v2759, %v2758
        %v2785 = vpack.c.bf16 %v2761, %v2760
        %v2786 = vpack.c.bf16 %v2763, %v2762
        %v2787 = vpack.c.bf16 %v2765, %v2764
        %v2788 = vpack.c.bf16 %v2767, %v2766
        %v2789 = vpack.c.bf16 %v2769, %v2768
        %v2790 = vpack.c.bf16 %v2771, %v2770
        %v2791 = vpack.c.bf16 %v2773, %v2772
        %v2792 = vld [vmem:[#allocation10] sm:$0xf]
        %v2794 = vsel %vm2620, %v2774, 0
        %v2797 = vsel %vm2620, %v2775, 0
        %v2800 = vsel %vm2620, %v2776, 0
        %v2803 = vsel %vm2620, %v2777, 0
        %v2806 = vsel %vm2620, %v2778, 0
        %v2809 = vsel %vm2620, %v2779, 0
        %v2812 = vsel %vm2620, %v2780, 0
        %v2815 = vsel %vm2620, %v2781, 0
        %v2818 = vsel %vm2620, %v2782, 0
        %v2821 = vsel %vm2620, %v2783, 0
        %v2824 = vsel %vm2620, %v2784, 0
        %v2827 = vsel %vm2620, %v2785, 0
        %v2830 = vsel %vm2620, %v2786, 0
        %v2833 = vsel %vm2620, %v2787, 0
        %v2836 = vsel %vm2620, %v2788, 0
        %v2839 = vsel %vm2620, %v2789, 0
        %vm2841 = vcmask 1043456
        %v2843 = vsel %vm2841, %v2792, 0
        %2845 = vmatprep.subr.bf16.mxu0 0
        %2846 = vmatpush1.bf16.msra.mxu0 %v2843
        %2847 = vmatprep.subr.bf16.mxu0 0
        %2848 = vmatpush1.bf16.msra.mxu0 0
        %2849 = vmatprep.subr.bf16.mxu0 0
        %2850 = vmatpush1.bf16.msra.mxu0 0
        %2851 = vmatprep.subr.bf16.mxu0 0
        %2852 = vmatpush1.bf16.msra.mxu0 0
        %2853 = vmatprep.subr.bf16.mxu0 0
        %2854 = vmatpush1.bf16.msra.mxu0 0
        %2855 = vmatprep.subr.bf16.mxu0 0
        %2856 = vmatpush1.bf16.msra.mxu0 0
        %2857 = vmatprep.subr.bf16.mxu0 0
        %2858 = vmatpush1.bf16.msra.mxu0 0
        %2859 = vmatprep.subr.bf16.mxu0 0
        %2860 = vmatpush1.bf16.msra.mxu0 0
        %2861 = vmatprep.subr.bf16.mxu0 0
        %2862 = vmatpush1.bf16.msra.mxu0 0
        %2863 = vmatprep.subr.bf16.mxu0 0
        %2864 = vmatpush1.bf16.msra.mxu0 0
        %2865 = vmatprep.subr.bf16.mxu0 0
        %2866 = vmatpush1.bf16.msra.mxu0 0
        %2867 = vmatprep.subr.bf16.mxu0 0
        %2868 = vmatpush1.bf16.msra.mxu0 0
        %2869 = vmatprep.subr.bf16.mxu0 0
        %2870 = vmatpush1.bf16.msra.mxu0 0
        %2871 = vmatprep.subr.bf16.mxu0 0
        %2872 = vmatpush1.bf16.msra.mxu0 0
        %2873 = vmatprep.subr.bf16.mxu0 0
        %2874 = vmatpush1.bf16.msra.mxu0 0
        %2875 = vmatprep.subr.bf16.mxu0 0
        %2876 = vmatpush1.bf16.msra.mxu0 0
        %2877 = vmatprep.mubr.bf16.mxu0 0
        %2878 = vmatmul.mubr.bf16.gmra.mrb[0].mxu0 %v2794
        %v2879 = vpop.f32.mrb[0].mxu0
        %v2880 = vadd.f32 0.0, %v2879
        %v2881 = vpop.f32.mrb[0].mxu0
        %v2882 = vpop.f32.mrb[0].mxu0
        %v2883 = vadd.f32 0.0, %v2882
        %v2884 = vpop.f32.mrb[0].mxu0
        %2885 = vmatprep.mubr.bf16.mxu0 0
        %2886 = vmatmul.mubr.bf16.gmra.mrb[0].mxu0 %v2797
        %v2887 = vpop.f32.mrb[0].mxu0
        %v2888 = vadd.f32 0.0, %v2887
        %v2889 = vpop.f32.mrb[0].mxu0
        %v2890 = vpop.f32.mrb[0].mxu0
        %v2891 = vadd.f32 0.0, %v2890
        %v2892 = vpop.f32.mrb[0].mxu0
        %2893 = vmatprep.mubr.bf16.mxu0 0
        %2894 = vmatmul.mubr.bf16.gmra.mrb[0].mxu0 %v2800
        %v2895 = vpop.f32.mrb[0].mxu0
        %v2896 = vadd.f32 0.0, %v2895
        %v2897 = vpop.f32.mrb[0].mxu0
        %v2898 = vpop.f32.mrb[0].mxu0
        %v2899 = vadd.f32 0.0, %v2898
        %v2900 = vpop.f32.mrb[0].mxu0
        %2901 = vmatprep.mubr.bf16.mxu0 0
        %2902 = vmatmul.mubr.bf16.gmra.mrb[0].mxu0 %v2803
        %v2903 = vpop.f32.mrb[0].mxu0
        %v2904 = vadd.f32 0.0, %v2903
        %v2905 = vpop.f32.mrb[0].mxu0
        %v2906 = vpop.f32.mrb[0].mxu0
        %v2907 = vadd.f32 0.0, %v2906
        %v2908 = vpop.f32.mrb[0].mxu0
        %2909 = vmatprep.mubr.bf16.mxu0 0
        %2910 = vmatmul.mubr.bf16.gmra.mrb[0].mxu0 %v2806
        %v2911 = vpop.f32.mrb[0].mxu0
        %v2912 = vadd.f32 0.0, %v2911
        %v2913 = vpop.f32.mrb[0].mxu0
        %v2914 = vpop.f32.mrb[0].mxu0
        %v2915 = vadd.f32 0.0, %v2914
        %v2916 = vpop.f32.mrb[0].mxu0
        %2917 = vmatprep.mubr.bf16.mxu0 0
        %2918 = vmatmul.mubr.bf16.gmra.mrb[0].mxu0 %v2809
        %v2919 = vpop.f32.mrb[0].mxu0
        %v2920 = vadd.f32 0.0, %v2919
        %v2921 = vpop.f32.mrb[0].mxu0
        %v2922 = vpop.f32.mrb[0].mxu0
        %v2923 = vadd.f32 0.0, %v2922
        %v2924 = vpop.f32.mrb[0].mxu0
        %2925 = vmatprep.mubr.bf16.mxu0 0
        %2926 = vmatmul.mubr.bf16.gmra.mrb[0].mxu0 %v2812
        %v2927 = vpop.f32.mrb[0].mxu0
        %v2928 = vadd.f32 0.0, %v2927
        %v2929 = vpop.f32.mrb[0].mxu0
        %v2930 = vpop.f32.mrb[0].mxu0
        %v2931 = vadd.f32 0.0, %v2930
        %v2932 = vpop.f32.mrb[0].mxu0
        %2933 = vmatprep.mubr.bf16.mxu0 0
        %2934 = vmatmul.mubr.bf16.gmra.mrb[0].mxu0 %v2815
        %v2935 = vpop.f32.mrb[0].mxu0
        %v2936 = vadd.f32 0.0, %v2935
        %v2937 = vpop.f32.mrb[0].mxu0
        %v2938 = vpop.f32.mrb[0].mxu0
        %v2939 = vadd.f32 0.0, %v2938
        %v2940 = vpop.f32.mrb[0].mxu0
        %2941 = vmatprep.mubr.bf16.mxu0 0
        %2942 = vmatmul.mubr.bf16.gmra.mrb[0].mxu0 %v2818
        %v2943 = vpop.f32.mrb[0].mxu0
        %v2944 = vadd.f32 0.0, %v2943
        %v2945 = vpop.f32.mrb[0].mxu0
        %v2946 = vpop.f32.mrb[0].mxu0
        %v2947 = vadd.f32 0.0, %v2946
        %v2948 = vpop.f32.mrb[0].mxu0
        %2949 = vmatprep.mubr.bf16.mxu0 0
        %2950 = vmatmul.mubr.bf16.gmra.mrb[0].mxu0 %v2821
        %v2951 = vpop.f32.mrb[0].mxu0
        %v2952 = vadd.f32 0.0, %v2951
        %v2953 = vpop.f32.mrb[0].mxu0
        %v2954 = vpop.f32.mrb[0].mxu0
        %v2955 = vadd.f32 0.0, %v2954
        %v2956 = vpop.f32.mrb[0].mxu0
        %2957 = vmatprep.mubr.bf16.mxu0 0
        %2958 = vmatmul.mubr.bf16.gmra.mrb[0].mxu0 %v2824
        %v2959 = vpop.f32.mrb[0].mxu0
        %v2960 = vadd.f32 0.0, %v2959
        %v2961 = vpop.f32.mrb[0].mxu0
        %v2962 = vpop.f32.mrb[0].mxu0
        %v2963 = vadd.f32 0.0, %v2962
        %v2964 = vpop.f32.mrb[0].mxu0
        %2965 = vmatprep.mubr.bf16.mxu0 0
        %2966 = vmatmul.mubr.bf16.gmra.mrb[0].mxu0 %v2827
        %v2967 = vpop.f32.mrb[0].mxu0
        %v2968 = vadd.f32 0.0, %v2967
        %v2969 = vpop.f32.mrb[0].mxu0
        %v2970 = vpop.f32.mrb[0].mxu0
        %v2971 = vadd.f32 0.0, %v2970
        %v2972 = vpop.f32.mrb[0].mxu0
        %2973 = vmatprep.mubr.bf16.mxu0 0
        %2974 = vmatmul.mubr.bf16.gmra.mrb[0].mxu0 %v2830
        %v2975 = vpop.f32.mrb[0].mxu0
        %v2976 = vadd.f32 0.0, %v2975
        %v2977 = vpop.f32.mrb[0].mxu0
        %v2978 = vpop.f32.mrb[0].mxu0
        %v2979 = vadd.f32 0.0, %v2978
        %v2980 = vpop.f32.mrb[0].mxu0
        %2981 = vmatprep.mubr.bf16.mxu0 0
        %2982 = vmatmul.mubr.bf16.gmra.mrb[0].mxu0 %v2833
        %v2983 = vpop.f32.mrb[0].mxu0
        %v2984 = vadd.f32 0.0, %v2983
        %v2985 = vpop.f32.mrb[0].mxu0
        %v2986 = vpop.f32.mrb[0].mxu0
        %v2987 = vadd.f32 0.0, %v2986
        %v2988 = vpop.f32.mrb[0].mxu0
        %2989 = vmatprep.mubr.bf16.mxu0 0
        %2990 = vmatmul.mubr.bf16.gmra.mrb[0].mxu0 %v2836
        %v2991 = vpop.f32.mrb[0].mxu0
        %v2992 = vadd.f32 0.0, %v2991
        %v2993 = vpop.f32.mrb[0].mxu0
        %v2994 = vpop.f32.mrb[0].mxu0
        %v2995 = vadd.f32 0.0, %v2994
        %v2996 = vpop.f32.mrb[0].mxu0
        %2997 = vmatprep.mubr.bf16.mxu0 0
        %2998 = vmatmul.mubr.bf16.gmra.mrb[0].mxu0 %v2839
        %v2999 = vpop.f32.mrb[0].mxu0
        %v3000 = vadd.f32 0.0, %v2999
        %v3001 = vpop.f32.mrb[0].mxu0
        %v3002 = vpop.f32.mrb[0].mxu0
        %v3003 = vadd.f32 0.0, %v3002
        %v3004 = vpop.f32.mrb[0].mxu0
        %3005 = vdwg.mxu0
        %v3006 = vadd.f32 %v2736, %v2880
        %v3007 = vadd.f32 %v2736, %v2883
        %v3008 = vadd.f32 %v2736, %v2888
        %v3009 = vadd.f32 %v2736, %v2891
        %v3010 = vadd.f32 %v2736, %v2896
        %v3011 = vadd.f32 %v2736, %v2899
        %v3012 = vadd.f32 %v2736, %v2904
        %v3013 = vadd.f32 %v2736, %v2907
        %v3014 = vadd.f32 %v2736, %v2912
        %v3015 = vadd.f32 %v2736, %v2915
        %v3016 = vadd.f32 %v2736, %v2920
        %v3017 = vadd.f32 %v2736, %v2923
        %v3018 = vadd.f32 %v2736, %v2928
        %v3019 = vadd.f32 %v2736, %v2931
        %v3020 = vadd.f32 %v2736, %v2936
        %v3021 = vadd.f32 %v2736, %v2939
        %v3022 = vadd.f32 %v2736, %v2944
        %v3023 = vadd.f32 %v2736, %v2947
        %v3024 = vadd.f32 %v2736, %v2952
        %v3025 = vadd.f32 %v2736, %v2955
        %v3026 = vadd.f32 %v2736, %v2960
        %v3027 = vadd.f32 %v2736, %v2963
        %v3028 = vadd.f32 %v2736, %v2968
        %v3029 = vadd.f32 %v2736, %v2971
        %v3030 = vadd.f32 %v2736, %v2976
        %v3031 = vadd.f32 %v2736, %v2979
        %v3032 = vadd.f32 %v2736, %v2984
        %v3033 = vadd.f32 %v2736, %v2987
        %v3034 = vadd.f32 %v2736, %v2992
        %v3035 = vadd.f32 %v2736, %v2995
        %v3036 = vadd.f32 %v2736, %v3000
        %v3037 = vadd.f32 %v2736, %v3003
        %s3038 = scalar_lea.vmem [#allocation10], 12
        %v3039 = vld [vmem:[%s3038] sm:$0xf]
        %v3041 = vsel %vm2620, %v2790, 0
        %v3044 = vsel %vm2841, %v3039, 0
        %3046 = vmatprep.subr.bf16.mxu0 0
        %3047 = vmatpush1.bf16.msra.mxu0 %v3044
        %3048 = vmatprep.subr.bf16.mxu0 0
        %3049 = vmatpush1.bf16.msra.mxu0 0
        %3050 = vmatprep.subr.bf16.mxu0 0
        %3051 = vmatpush1.bf16.msra.mxu0 0
        %3052 = vmatprep.subr.bf16.mxu0 0
        %3053 = vmatpush1.bf16.msra.mxu0 0
        %3054 = vmatprep.subr.bf16.mxu0 0
        %3055 = vmatpush1.bf16.msra.mxu0 0
        %3056 = vmatprep.subr.bf16.mxu0 0
        %3057 = vmatpush1.bf16.msra.mxu0 0
        %3058 = vmatprep.subr.bf16.mxu0 0
        %3059 = vmatpush1.bf16.msra.mxu0 0
        %3060 = vmatprep.subr.bf16.mxu0 0
        %3061 = vmatpush1.bf16.msra.mxu0 0
        %3062 = vmatprep.subr.bf16.mxu0 0
        %3063 = vmatpush1.bf16.msra.mxu0 0
        %3064 = vmatprep.subr.bf16.mxu0 0
        %3065 = vmatpush1.bf16.msra.mxu0 0
        %3066 = vmatprep.subr.bf16.mxu0 0
        %3067 = vmatpush1.bf16.msra.mxu0 0
        %3068 = vmatprep.subr.bf16.mxu0 0
        %3069 = vmatpush1.bf16.msra.mxu0 0
        %3070 = vmatprep.subr.bf16.mxu0 0
        %3071 = vmatpush1.bf16.msra.mxu0 0
        %3072 = vmatprep.subr.bf16.mxu0 0
        %3073 = vmatpush1.bf16.msra.mxu0 0
        %3074 = vmatprep.subr.bf16.mxu0 0
        %3075 = vmatpush1.bf16.msra.mxu0 0
        %3076 = vmatprep.subr.bf16.mxu0 0
        %3077 = vmatpush1.bf16.msra.mxu0 0
        %3078 = vmatprep.mubr.bf16.mxu0 0
        %3079 = vmatmul.mubr.bf16.gmra.mrb[0].mxu0 %v2797
        %v3080 = vpop.f32.mrb[0].mxu0
        %v3081 = vadd.f32 0.0, %v3080
        %v3082 = vpop.f32.mrb[0].mxu0
        %v3083 = vpop.f32.mrb[0].mxu0
        %v3084 = vadd.f32 0.0, %v3083
        %v3085 = vpop.f32.mrb[0].mxu0
        %3086 = vmatprep.mubr.bf16.mxu0 0
        %3087 = vmatmul.mubr.bf16.gmra.mrb[0].mxu0 %v2800
        %v3088 = vpop.f32.mrb[0].mxu0
        %v3089 = vadd.f32 0.0, %v3088
        %v3090 = vpop.f32.mrb[0].mxu0
        %v3091 = vpop.f32.mrb[0].mxu0
        %v3092 = vadd.f32 0.0, %v3091
        %v3093 = vpop.f32.mrb[0].mxu0
        %3094 = vmatprep.mubr.bf16.mxu0 0
        %3095 = vmatmul.mubr.bf16.gmra.mrb[0].mxu0 %v2803
        %v3096 = vpop.f32.mrb[0].mxu0
        %v3097 = vadd.f32 0.0, %v3096
        %v3098 = vpop.f32.mrb[0].mxu0
        %v3099 = vpop.f32.mrb[0].mxu0
        %v3100 = vadd.f32 0.0, %v3099
        %v3101 = vpop.f32.mrb[0].mxu0
        %3102 = vmatprep.mubr.bf16.mxu0 0
        %3103 = vmatmul.mubr.bf16.gmra.mrb[0].mxu0 %v2806
        %v3104 = vpop.f32.mrb[0].mxu0
        %v3105 = vadd.f32 0.0, %v3104
        %v3106 = vpop.f32.mrb[0].mxu0
        %v3107 = vpop.f32.mrb[0].mxu0
        %v3108 = vadd.f32 0.0, %v3107
        %v3109 = vpop.f32.mrb[0].mxu0
        %3110 = vmatprep.mubr.bf16.mxu0 0
        %3111 = vmatmul.mubr.bf16.gmra.mrb[0].mxu0 %v2809
        %v3112 = vpop.f32.mrb[0].mxu0
        %v3113 = vadd.f32 0.0, %v3112
        %v3114 = vpop.f32.mrb[0].mxu0
        %v3115 = vpop.f32.mrb[0].mxu0
        %v3116 = vadd.f32 0.0, %v3115
        %v3117 = vpop.f32.mrb[0].mxu0
        %3118 = vmatprep.mubr.bf16.mxu0 0
        %3119 = vmatmul.mubr.bf16.gmra.mrb[0].mxu0 %v2812
        %v3120 = vpop.f32.mrb[0].mxu0
        %v3121 = vadd.f32 0.0, %v3120
        %v3122 = vpop.f32.mrb[0].mxu0
        %v3123 = vpop.f32.mrb[0].mxu0
        %v3124 = vadd.f32 0.0, %v3123
        %v3125 = vpop.f32.mrb[0].mxu0
        %3126 = vmatprep.mubr.bf16.mxu0 0
        %3127 = vmatmul.mubr.bf16.gmra.mrb[0].mxu0 %v2815
        %v3128 = vpop.f32.mrb[0].mxu0
        %v3129 = vadd.f32 0.0, %v3128
        %v3130 = vpop.f32.mrb[0].mxu0
        %v3131 = vpop.f32.mrb[0].mxu0
        %v3132 = vadd.f32 0.0, %v3131
        %v3133 = vpop.f32.mrb[0].mxu0
        %3134 = vmatprep.mubr.bf16.mxu0 0
        %3135 = vmatmul.mubr.bf16.gmra.mrb[0].mxu0 %v2818
        %v3136 = vpop.f32.mrb[0].mxu0
        %v3137 = vadd.f32 0.0, %v3136
        %v3138 = vpop.f32.mrb[0].mxu0
        %v3139 = vpop.f32.mrb[0].mxu0
        %v3140 = vadd.f32 0.0, %v3139
        %v3141 = vpop.f32.mrb[0].mxu0
        %3142 = vmatprep.mubr.bf16.mxu0 0
        %3143 = vmatmul.mubr.bf16.gmra.mrb[0].mxu0 %v2821
        %v3144 = vpop.f32.mrb[0].mxu0
        %v3145 = vadd.f32 0.0, %v3144
        %v3146 = vpop.f32.mrb[0].mxu0
        %v3147 = vpop.f32.mrb[0].mxu0
        %v3148 = vadd.f32 0.0, %v3147
        %v3149 = vpop.f32.mrb[0].mxu0
        %3150 = vmatprep.mubr.bf16.mxu0 0
        %3151 = vmatmul.mubr.bf16.gmra.mrb[0].mxu0 %v2824
        %v3152 = vpop.f32.mrb[0].mxu0
        %v3153 = vadd.f32 0.0, %v3152
        %v3154 = vpop.f32.mrb[0].mxu0
        %v3155 = vpop.f32.mrb[0].mxu0
        %v3156 = vadd.f32 0.0, %v3155
        %v3157 = vpop.f32.mrb[0].mxu0
        %3158 = vmatprep.mubr.bf16.mxu0 0
        %3159 = vmatmul.mubr.bf16.gmra.mrb[0].mxu0 %v2827
        %v3160 = vpop.f32.mrb[0].mxu0
        %v3161 = vadd.f32 0.0, %v3160
        %v3162 = vpop.f32.mrb[0].mxu0
        %v3163 = vpop.f32.mrb[0].mxu0
        %v3164 = vadd.f32 0.0, %v3163
        %v3165 = vpop.f32.mrb[0].mxu0
        %3166 = vmatprep.mubr.bf16.mxu0 0
        %3167 = vmatmul.mubr.bf16.gmra.mrb[0].mxu0 %v2830
        %v3168 = vpop.f32.mrb[0].mxu0
        %v3169 = vadd.f32 0.0, %v3168
        %v3170 = vpop.f32.mrb[0].mxu0
        %v3171 = vpop.f32.mrb[0].mxu0
        %v3172 = vadd.f32 0.0, %v3171
        %v3173 = vpop.f32.mrb[0].mxu0
        %3174 = vmatprep.mubr.bf16.mxu0 0
        %3175 = vmatmul.mubr.bf16.gmra.mrb[0].mxu0 %v2833
        %v3176 = vpop.f32.mrb[0].mxu0
        %v3177 = vadd.f32 0.0, %v3176
        %v3178 = vpop.f32.mrb[0].mxu0
        %v3179 = vpop.f32.mrb[0].mxu0
        %v3180 = vadd.f32 0.0, %v3179
        %v3181 = vpop.f32.mrb[0].mxu0
        %3182 = vmatprep.mubr.bf16.mxu0 0
        %3183 = vmatmul.mubr.bf16.gmra.mrb[0].mxu0 %v2836
        %v3184 = vpop.f32.mrb[0].mxu0
        %v3185 = vadd.f32 0.0, %v3184
        %v3186 = vpop.f32.mrb[0].mxu0
        %v3187 = vpop.f32.mrb[0].mxu0
        %v3188 = vadd.f32 0.0, %v3187
        %v3189 = vpop.f32.mrb[0].mxu0
        %3190 = vmatprep.mubr.bf16.mxu0 0
        %3191 = vmatmul.mubr.bf16.gmra.mrb[0].mxu0 %v2839
        %v3192 = vpop.f32.mrb[0].mxu0
        %v3193 = vadd.f32 0.0, %v3192
        %v3194 = vpop.f32.mrb[0].mxu0
        %v3195 = vpop.f32.mrb[0].mxu0
        %v3196 = vadd.f32 0.0, %v3195
        %v3197 = vpop.f32.mrb[0].mxu0
        %3198 = vmatprep.mubr.bf16.mxu0 0
        %3199 = vmatmul.mubr.bf16.gmra.mrb[0].mxu0 %v3041
        %v3200 = vpop.f32.mrb[0].mxu0
        %v3201 = vadd.f32 0.0, %v3200
        %v3202 = vpop.f32.mrb[0].mxu0
        %v3203 = vpop.f32.mrb[0].mxu0
        %v3204 = vadd.f32 0.0, %v3203
        %v3205 = vpop.f32.mrb[0].mxu0
        %3206 = vdwg.mxu0
        %v3207 = vadd.f32 %v3006, %v3081
        %v3208 = vadd.f32 %v3007, %v3084
        %v3209 = vadd.f32 %v3008, %v3089
        %v3210 = vadd.f32 %v3009, %v3092
        %v3211 = vadd.f32 %v3010, %v3097
        %v3212 = vadd.f32 %v3011, %v3100
        %v3213 = vadd.f32 %v3012, %v3105
        %v3214 = vadd.f32 %v3013, %v3108
        %v3215 = vadd.f32 %v3014, %v3113
        %v3216 = vadd.f32 %v3015, %v3116
        %v3217 = vadd.f32 %v3016, %v3121
        %v3218 = vadd.f32 %v3017, %v3124
        %v3219 = vadd.f32 %v3018, %v3129
        %v3220 = vadd.f32 %v3019, %v3132
        %v3221 = vadd.f32 %v3020, %v3137
        %v3222 = vadd.f32 %v3021, %v3140
        %v3223 = vadd.f32 %v3022, %v3145
        %v3224 = vadd.f32 %v3023, %v3148
        %v3225 = vadd.f32 %v3024, %v3153
        %v3226 = vadd.f32 %v3025, %v3156
        %v3227 = vadd.f32 %v3026, %v3161
        %v3228 = vadd.f32 %v3027, %v3164
        %v3229 = vadd.f32 %v3028, %v3169
        %v3230 = vadd.f32 %v3029, %v3172
        %v3231 = vadd.f32 %v3030, %v3177
        %v3232 = vadd.f32 %v3031, %v3180
        %v3233 = vadd.f32 %v3032, %v3185
        %v3234 = vadd.f32 %v3033, %v3188
        %v3235 = vadd.f32 %v3034, %v3193
        %v3236 = vadd.f32 %v3035, %v3196
        %v3237 = vadd.f32 %v3036, %v3201
        %v3238 = vadd.f32 %v3037, %v3204
        %s3239 = scalar_lea.vmem [#allocation10], 24
        %v3240 = vld [vmem:[%s3239] sm:$0xf]
        %v3242 = vsel %vm2620, %v2791, 0
        %v3245 = vsel %vm2841, %v3240, 0
        %3247 = vmatprep.subr.bf16.mxu0 0
        %3248 = vmatpush1.bf16.msra.mxu0 %v3245
        %3249 = vmatprep.subr.bf16.mxu0 0
        %3250 = vmatpush1.bf16.msra.mxu0 0
        %3251 = vmatprep.subr.bf16.mxu0 0
        %3252 = vmatpush1.bf16.msra.mxu0 0
        %3253 = vmatprep.subr.bf16.mxu0 0
        %3254 = vmatpush1.bf16.msra.mxu0 0
        %3255 = vmatprep.subr.bf16.mxu0 0
        %3256 = vmatpush1.bf16.msra.mxu0 0
        %3257 = vmatprep.subr.bf16.mxu0 0
        %3258 = vmatpush1.bf16.msra.mxu0 0
        %3259 = vmatprep.subr.bf16.mxu0 0
        %3260 = vmatpush1.bf16.msra.mxu0 0
        %3261 = vmatprep.subr.bf16.mxu0 0
        %3262 = vmatpush1.bf16.msra.mxu0 0
        %3263 = vmatprep.subr.bf16.mxu0 0
        %3264 = vmatpush1.bf16.msra.mxu0 0
        %3265 = vmatprep.subr.bf16.mxu0 0
        %3266 = vmatpush1.bf16.msra.mxu0 0
        %3267 = vmatprep.subr.bf16.mxu0 0
        %3268 = vmatpush1.bf16.msra.mxu0 0
        %3269 = vmatprep.subr.bf16.mxu0 0
        %3270 = vmatpush1.bf16.msra.mxu0 0
        %3271 = vmatprep.subr.bf16.mxu0 0
        %3272 = vmatpush1.bf16.msra.mxu0 0
        %3273 = vmatprep.subr.bf16.mxu0 0
        %3274 = vmatpush1.bf16.msra.mxu0 0
        %3275 = vmatprep.subr.bf16.mxu0 0
        %3276 = vmatpush1.bf16.msra.mxu0 0
        %3277 = vmatprep.subr.bf16.mxu0 0
        %3278 = vmatpush1.bf16.msra.mxu0 0
        %3279 = vmatprep.mubr.bf16.mxu0 0
        %3280 = vmatmul.mubr.bf16.gmra.mrb[0].mxu0 %v2800
        %v3281 = vpop.f32.mrb[0].mxu0
        %v3282 = vadd.f32 0.0, %v3281
        %v3283 = vpop.f32.mrb[0].mxu0
        %v3284 = vpop.f32.mrb[0].mxu0
        %v3285 = vadd.f32 0.0, %v3284
        %v3286 = vpop.f32.mrb[0].mxu0
        %3287 = vmatprep.mubr.bf16.mxu0 0
        %3288 = vmatmul.mubr.bf16.gmra.mrb[0].mxu0 %v2803
        %v3289 = vpop.f32.mrb[0].mxu0
        %v3290 = vadd.f32 0.0, %v3289
        %v3291 = vpop.f32.mrb[0].mxu0
        %v3292 = vpop.f32.mrb[0].mxu0
        %v3293 = vadd.f32 0.0, %v3292
        %v3294 = vpop.f32.mrb[0].mxu0
        %3295 = vmatprep.mubr.bf16.mxu0 0
        %3296 = vmatmul.mubr.bf16.gmra.mrb[0].mxu0 %v2806
        %v3297 = vpop.f32.mrb[0].mxu0
        %v3298 = vadd.f32 0.0, %v3297
        %v3299 = vpop.f32.mrb[0].mxu0
        %v3300 = vpop.f32.mrb[0].mxu0
        %v3301 = vadd.f32 0.0, %v3300
        %v3302 = vpop.f32.mrb[0].mxu0
        %3303 = vmatprep.mubr.bf16.mxu0 0
        %3304 = vmatmul.mubr.bf16.gmra.mrb[0].mxu0 %v2809
        %v3305 = vpop.f32.mrb[0].mxu0
        %v3306 = vadd.f32 0.0, %v3305
        %v3307 = vpop.f32.mrb[0].mxu0
        %v3308 = vpop.f32.mrb[0].mxu0
        %v3309 = vadd.f32 0.0, %v3308
        %v3310 = vpop.f32.mrb[0].mxu0
        %3311 = vmatprep.mubr.bf16.mxu0 0
        %3312 = vmatmul.mubr.bf16.gmra.mrb[0].mxu0 %v2812
        %v3313 = vpop.f32.mrb[0].mxu0
        %v3314 = vadd.f32 0.0, %v3313
        %v3315 = vpop.f32.mrb[0].mxu0
        %v3316 = vpop.f32.mrb[0].mxu0
        %v3317 = vadd.f32 0.0, %v3316
        %v3318 = vpop.f32.mrb[0].mxu0
        %3319 = vmatprep.mubr.bf16.mxu0 0
        %3320 = vmatmul.mubr.bf16.gmra.mrb[0].mxu0 %v2815
        %v3321 = vpop.f32.mrb[0].mxu0
        %v3322 = vadd.f32 0.0, %v3321
        %v3323 = vpop.f32.mrb[0].mxu0
        %v3324 = vpop.f32.mrb[0].mxu0
        %v3325 = vadd.f32 0.0, %v3324
        %v3326 = vpop.f32.mrb[0].mxu0
        %3327 = vmatprep.mubr.bf16.mxu0 0
        %3328 = vmatmul.mubr.bf16.gmra.mrb[0].mxu0 %v2818
        %v3329 = vpop.f32.mrb[0].mxu0
        %v3330 = vadd.f32 0.0, %v3329
        %v3331 = vpop.f32.mrb[0].mxu0
        %v3332 = vpop.f32.mrb[0].mxu0
        %v3333 = vadd.f32 0.0, %v3332
        %v3334 = vpop.f32.mrb[0].mxu0
        %3335 = vmatprep.mubr.bf16.mxu0 0
        %3336 = vmatmul.mubr.bf16.gmra.mrb[0].mxu0 %v2821
        %v3337 = vpop.f32.mrb[0].mxu0
        %v3338 = vadd.f32 0.0, %v3337
        %v3339 = vpop.f32.mrb[0].mxu0
        %v3340 = vpop.f32.mrb[0].mxu0
        %v3341 = vadd.f32 0.0, %v3340
        %v3342 = vpop.f32.mrb[0].mxu0
        %3343 = vmatprep.mubr.bf16.mxu0 0
        %3344 = vmatmul.mubr.bf16.gmra.mrb[0].mxu0 %v2824
        %v3345 = vpop.f32.mrb[0].mxu0
        %v3346 = vadd.f32 0.0, %v3345
        %v3347 = vpop.f32.mrb[0].mxu0
        %v3348 = vpop.f32.mrb[0].mxu0
        %v3349 = vadd.f32 0.0, %v3348
        %v3350 = vpop.f32.mrb[0].mxu0
        %3351 = vmatprep.mubr.bf16.mxu0 0
        %3352 = vmatmul.mubr.bf16.gmra.mrb[0].mxu0 %v2827
        %v3353 = vpop.f32.mrb[0].mxu0
        %v3354 = vadd.f32 0.0, %v3353
        %v3355 = vpop.f32.mrb[0].mxu0
        %v3356 = vpop.f32.mrb[0].mxu0
        %v3357 = vadd.f32 0.0, %v3356
        %v3358 = vpop.f32.mrb[0].mxu0
        %3359 = vmatprep.mubr.bf16.mxu0 0
        %3360 = vmatmul.mubr.bf16.gmra.mrb[0].mxu0 %v2830
        %v3361 = vpop.f32.mrb[0].mxu0
        %v3362 = vadd.f32 0.0, %v3361
        %v3363 = vpop.f32.mrb[0].mxu0
        %v3364 = vpop.f32.mrb[0].mxu0
        %v3365 = vadd.f32 0.0, %v3364
        %v3366 = vpop.f32.mrb[0].mxu0
        %3367 = vmatprep.mubr.bf16.mxu0 0
        %3368 = vmatmul.mubr.bf16.gmra.mrb[0].mxu0 %v2833
        %v3369 = vpop.f32.mrb[0].mxu0
        %v3370 = vadd.f32 0.0, %v3369
        %v3371 = vpop.f32.mrb[0].mxu0
        %v3372 = vpop.f32.mrb[0].mxu0
        %v3373 = vadd.f32 0.0, %v3372
        %v3374 = vpop.f32.mrb[0].mxu0
        %3375 = vmatprep.mubr.bf16.mxu0 0
        %3376 = vmatmul.mubr.bf16.gmra.mrb[0].mxu0 %v2836
        %v3377 = vpop.f32.mrb[0].mxu0
        %v3378 = vadd.f32 0.0, %v3377
        %v3379 = vpop.f32.mrb[0].mxu0
        %v3380 = vpop.f32.mrb[0].mxu0
        %v3381 = vadd.f32 0.0, %v3380
        %v3382 = vpop.f32.mrb[0].mxu0
        %3383 = vmatprep.mubr.bf16.mxu0 0
        %3384 = vmatmul.mubr.bf16.gmra.mrb[0].mxu0 %v2839
        %v3385 = vpop.f32.mrb[0].mxu0
        %v3386 = vadd.f32 0.0, %v3385
        %v3387 = vpop.f32.mrb[0].mxu0
        %v3388 = vpop.f32.mrb[0].mxu0
        %v3389 = vadd.f32 0.0, %v3388
        %v3390 = vpop.f32.mrb[0].mxu0
        %3391 = vmatprep.mubr.bf16.mxu0 0
        %3392 = vmatmul.mubr.bf16.gmra.mrb[0].mxu0 %v3041
        %v3393 = vpop.f32.mrb[0].mxu0
        %v3394 = vadd.f32 0.0, %v3393
        %v3395 = vpop.f32.mrb[0].mxu0
        %v3396 = vpop.f32.mrb[0].mxu0
        %v3397 = vadd.f32 0.0, %v3396
        %v3398 = vpop.f32.mrb[0].mxu0
        %3399 = vmatprep.mubr.bf16.mxu0 0
        %3400 = vmatmul.mubr.bf16.gmra.mrb[0].mxu0 %v3242
        %v3401 = vpop.f32.mrb[0].mxu0
        %v3402 = vadd.f32 0.0, %v3401
        %v3403 = vpop.f32.mrb[0].mxu0
        %v3404 = vpop.f32.mrb[0].mxu0
        %v3405 = vadd.f32 0.0, %v3404
        %v3406 = vpop.f32.mrb[0].mxu0
        %3407 = vdwg.mxu0
        %v3408 = vadd.f32 %v3207, %v3282
        %v3409 = vadd.f32 %v3208, %v3285
        %v3410 = vadd.f32 %v3209, %v3290
        %v3411 = vadd.f32 %v3210, %v3293
        %v3412 = vadd.f32 %v3211, %v3298
        %v3413 = vadd.f32 %v3212, %v3301
        %v3414 = vadd.f32 %v3213, %v3306
        %v3415 = vadd.f32 %v3214, %v3309
        %v3416 = vadd.f32 %v3215, %v3314
        %v3417 = vadd.f32 %v3216, %v3317
        %v3418 = vadd.f32 %v3217, %v3322
        %v3419 = vadd.f32 %v3218, %v3325
        %v3420 = vadd.f32 %v3219, %v3330
        %v3421 = vadd.f32 %v3220, %v3333
        %v3422 = vadd.f32 %v3221, %v3338
        %v3423 = vadd.f32 %v3222, %v3341
        %v3424 = vadd.f32 %v3223, %v3346
        %v3425 = vadd.f32 %v3224, %v3349
        %v3426 = vadd.f32 %v3225, %v3354
        %v3427 = vadd.f32 %v3226, %v3357
        %v3428 = vadd.f32 %v3227, %v3362
        %v3429 = vadd.f32 %v3228, %v3365
        %v3430 = vadd.f32 %v3229, %v3370
        %v3431 = vadd.f32 %v3230, %v3373
        %v3432 = vadd.f32 %v3231, %v3378
        %v3433 = vadd.f32 %v3232, %v3381
        %v3434 = vadd.f32 %v3233, %v3386
        %v3435 = vadd.f32 %v3234, %v3389
        %v3436 = vadd.f32 %v3235, %v3394
        %v3437 = vadd.f32 %v3236, %v3397
        %v3438 = vadd.f32 %v3237, %v3402
        %v3439 = vadd.f32 %v3238, %v3405
        %v3440 = vld [vmem:[#allocation3 + $0x1] sm:$0xff]
        %v3441 = vld [vmem:[#allocation3 + $0x9] sm:$0xff]
        %v3442 = vld [vmem:[#allocation3 + $0x19] sm:$0xff]
        %v3443 = vld [vmem:[#allocation3 + $0x21] sm:$0xff]
        %v3444 = vld [vmem:[#allocation3 + $0x31] sm:$0xff]
        %v3445 = vld [vmem:[#allocation3 + $0x39] sm:$0xff]
        %v3446 = vld [vmem:[#allocation3 + $0x49] sm:$0xff]
        %v3447 = vld [vmem:[#allocation3 + $0x51] sm:$0xff]
        %v3448 = vld [vmem:[#allocation3 + $0x61] sm:$0xff]
        %v3449 = vld [vmem:[#allocation3 + $0x69] sm:$0xff]
        %v3450 = vld [vmem:[#allocation3 + $0x79] sm:$0xff]
        %v3451 = vld [vmem:[#allocation3 + $0x81] sm:$0xff]
        %v3452 = vld [vmem:[#allocation3 + $0x91] sm:$0xff]
        %v3453 = vld [vmem:[#allocation3 + $0x99] sm:$0xff]
        %v3454 = vld [vmem:[#allocation3 + $0xa9] sm:$0xff]
        %v3455 = vld [vmem:[#allocation3 + $0xb1] sm:$0xff]
        %v3456 = vld [vmem:[#allocation3 + $0xc1] sm:$0xff]
        %v3457 = vld [vmem:[#allocation3 + $0xc9] sm:$0xff]
        %v3458 = vld [vmem:[#allocation3 + $0xd9] sm:$0xff]
        %v3459 = vld [vmem:[#allocation3 + $0xe1] sm:$0xff]
        %v3460 = vld [vmem:[#allocation3 + $0xf1] sm:$0xff]
        %v3461 = vld [vmem:[#allocation3 + $0xf9] sm:$0xff]
        %v3462 = vld [vmem:[#allocation3 + $0x109] sm:$0xff]
        %v3463 = vld [vmem:[#allocation3 + $0x111] sm:$0xff]
        %v3464 = vld [vmem:[#allocation3 + $0x121] sm:$0xff]
        %v3465 = vld [vmem:[#allocation3 + $0x129] sm:$0xff]
        %v3466 = vld [vmem:[#allocation3 + $0x139] sm:$0xff]
        %v3467 = vld [vmem:[#allocation3 + $0x141] sm:$0xff]
        %v3468 = vld [vmem:[#allocation3 + $0x151] sm:$0xff]
        %v3469 = vld [vmem:[#allocation3 + $0x159] sm:$0xff]
        %v3470 = vld [vmem:[#allocation3 + $0x169] sm:$0xff]
        %v3471 = vld [vmem:[#allocation3 + $0x171] sm:$0xff]
        %v3472 = vld [vmem:[#allocation3 + $0x181] sm:$0xff]
        %v3473 = vld [vmem:[#allocation3 + $0x189] sm:$0xff]
        %v3474 = vld [vmem:[#allocation3 + $0x199] sm:$0xff]
        %v3475 = vld [vmem:[#allocation3 + $0x1a1] sm:$0xff]
        %v3476 = vpack.c.bf16 %v3441, %v3440
        %v3477 = vpack.c.bf16 %v3443, %v3442
        %v3478 = vpack.c.bf16 %v3445, %v3444
        %v3479 = vpack.c.bf16 %v3447, %v3446
        %v3480 = vpack.c.bf16 %v3449, %v3448
        %v3481 = vpack.c.bf16 %v3451, %v3450
        %v3482 = vpack.c.bf16 %v3453, %v3452
        %v3483 = vpack.c.bf16 %v3455, %v3454
        %v3484 = vpack.c.bf16 %v3457, %v3456
        %v3485 = vpack.c.bf16 %v3459, %v3458
        %v3486 = vpack.c.bf16 %v3461, %v3460
        %v3487 = vpack.c.bf16 %v3463, %v3462
        %v3488 = vpack.c.bf16 %v3465, %v3464
        %v3489 = vpack.c.bf16 %v3467, %v3466
        %v3490 = vpack.c.bf16 %v3469, %v3468
        %v3491 = vpack.c.bf16 %v3471, %v3470
        %v3492 = vpack.c.bf16 %v3473, %v3472
        %v3493 = vpack.c.bf16 %v3475, %v3474
        %s3494 = scalar_lea.vmem [#allocation10], 4
        %v3495 = vld [vmem:[%s3494] sm:$0xf]
        %v3497 = vsel %vm2620, %v3476, 0
        %v3500 = vsel %vm2620, %v3477, 0
        %v3503 = vsel %vm2620, %v3478, 0
        %v3506 = vsel %vm2620, %v3479, 0
        %v3509 = vsel %vm2620, %v3480, 0
        %v3512 = vsel %vm2620, %v3481, 0
        %v3515 = vsel %vm2620, %v3482, 0
        %v3518 = vsel %vm2620, %v3483, 0
        %v3521 = vsel %vm2620, %v3484, 0
        %v3524 = vsel %vm2620, %v3485, 0
        %v3527 = vsel %vm2620, %v3486, 0
        %v3530 = vsel %vm2620, %v3487, 0
        %v3533 = vsel %vm2620, %v3488, 0
        %v3536 = vsel %vm2620, %v3489, 0
        %v3539 = vsel %vm2620, %v3490, 0
        %v3542 = vsel %vm2620, %v3491, 0
        %v3545 = vsel %vm2841, %v3495, 0
        %3547 = vmatprep.subr.bf16.mxu0 0
        %3548 = vmatpush1.bf16.msra.mxu0 %v3545
        %3549 = vmatprep.subr.bf16.mxu0 0
        %3550 = vmatpush1.bf16.msra.mxu0 0
        %3551 = vmatprep.subr.bf16.mxu0 0
        %3552 = vmatpush1.bf16.msra.mxu0 0
        %3553 = vmatprep.subr.bf16.mxu0 0
        %3554 = vmatpush1.bf16.msra.mxu0 0
        %3555 = vmatprep.subr.bf16.mxu0 0
        %3556 = vmatpush1.bf16.msra.mxu0 0
        %3557 = vmatprep.subr.bf16.mxu0 0
        %3558 = vmatpush1.bf16.msra.mxu0 0
        %3559 = vmatprep.subr.bf16.mxu0 0
        %3560 = vmatpush1.bf16.msra.mxu0 0
        %3561 = vmatprep.subr.bf16.mxu0 0
        %3562 = vmatpush1.bf16.msra.mxu0 0
        %3563 = vmatprep.subr.bf16.mxu0 0
        %3564 = vmatpush1.bf16.msra.mxu0 0
        %3565 = vmatprep.subr.bf16.mxu0 0
        %3566 = vmatpush1.bf16.msra.mxu0 0
        %3567 = vmatprep.subr.bf16.mxu0 0
        %3568 = vmatpush1.bf16.msra.mxu0 0
        %3569 = vmatprep.subr.bf16.mxu0 0
        %3570 = vmatpush1.bf16.msra.mxu0 0
        %3571 = vmatprep.subr.bf16.mxu0 0
        %3572 = vmatpush1.bf16.msra.mxu0 0
        %3573 = vmatprep.subr.bf16.mxu0 0
        %3574 = vmatpush1.bf16.msra.mxu0 0
        %3575 = vmatprep.subr.bf16.mxu0 0
        %3576 = vmatpush1.bf16.msra.mxu0 0
        %3577 = vmatprep.subr.bf16.mxu0 0
        %3578 = vmatpush1.bf16.msra.mxu0 0
        %3579 = vmatprep.mubr.bf16.mxu0 0
        %3580 = vmatmul.mubr.bf16.gmra.mrb[0].mxu0 %v3497
        %v3581 = vpop.f32.mrb[0].mxu0
        %v3582 = vadd.f32 0.0, %v3581
        %v3583 = vpop.f32.mrb[0].mxu0
        %v3584 = vpop.f32.mrb[0].mxu0
        %v3585 = vadd.f32 0.0, %v3584
        %v3586 = vpop.f32.mrb[0].mxu0
        %3587 = vmatprep.mubr.bf16.mxu0 0
        %3588 = vmatmul.mubr.bf16.gmra.mrb[0].mxu0 %v3500
        %v3589 = vpop.f32.mrb[0].mxu0
        %v3590 = vadd.f32 0.0, %v3589
        %v3591 = vpop.f32.mrb[0].mxu0
        %v3592 = vpop.f32.mrb[0].mxu0
        %v3593 = vadd.f32 0.0, %v3592
        %v3594 = vpop.f32.mrb[0].mxu0
        %3595 = vmatprep.mubr.bf16.mxu0 0
        %3596 = vmatmul.mubr.bf16.gmra.mrb[0].mxu0 %v3503
        %v3597 = vpop.f32.mrb[0].mxu0
        %v3598 = vadd.f32 0.0, %v3597
        %v3599 = vpop.f32.mrb[0].mxu0
        %v3600 = vpop.f32.mrb[0].mxu0
        %v3601 = vadd.f32 0.0, %v3600
        %v3602 = vpop.f32.mrb[0].mxu0
        %3603 = vmatprep.mubr.bf16.mxu0 0
        %3604 = vmatmul.mubr.bf16.gmra.mrb[0].mxu0 %v3506
        %v3605 = vpop.f32.mrb[0].mxu0
        %v3606 = vadd.f32 0.0, %v3605
        %v3607 = vpop.f32.mrb[0].mxu0
        %v3608 = vpop.f32.mrb[0].mxu0
        %v3609 = vadd.f32 0.0, %v3608
        %v3610 = vpop.f32.mrb[0].mxu0
        %3611 = vmatprep.mubr.bf16.mxu0 0
        %3612 = vmatmul.mubr.bf16.gmra.mrb[0].mxu0 %v3509
        %v3613 = vpop.f32.mrb[0].mxu0
        %v3614 = vadd.f32 0.0, %v3613
        %v3615 = vpop.f32.mrb[0].mxu0
        %v3616 = vpop.f32.mrb[0].mxu0
        %v3617 = vadd.f32 0.0, %v3616
        %v3618 = vpop.f32.mrb[0].mxu0
        %3619 = vmatprep.mubr.bf16.mxu0 0
        %3620 = vmatmul.mubr.bf16.gmra.mrb[0].mxu0 %v3512
        %v3621 = vpop.f32.mrb[0].mxu0
        %v3622 = vadd.f32 0.0, %v3621
        %v3623 = vpop.f32.mrb[0].mxu0
        %v3624 = vpop.f32.mrb[0].mxu0
        %v3625 = vadd.f32 0.0, %v3624
        %v3626 = vpop.f32.mrb[0].mxu0
        %3627 = vmatprep.mubr.bf16.mxu0 0
        %3628 = vmatmul.mubr.bf16.gmra.mrb[0].mxu0 %v3515
        %v3629 = vpop.f32.mrb[0].mxu0
        %v3630 = vadd.f32 0.0, %v3629
        %v3631 = vpop.f32.mrb[0].mxu0
        %v3632 = vpop.f32.mrb[0].mxu0
        %v3633 = vadd.f32 0.0, %v3632
        %v3634 = vpop.f32.mrb[0].mxu0
        %3635 = vmatprep.mubr.bf16.mxu0 0
        %3636 = vmatmul.mubr.bf16.gmra.mrb[0].mxu0 %v3518
        %v3637 = vpop.f32.mrb[0].mxu0
        %v3638 = vadd.f32 0.0, %v3637
        %v3639 = vpop.f32.mrb[0].mxu0
        %v3640 = vpop.f32.mrb[0].mxu0
        %v3641 = vadd.f32 0.0, %v3640
        %v3642 = vpop.f32.mrb[0].mxu0
        %3643 = vmatprep.mubr.bf16.mxu0 0
        %3644 = vmatmul.mubr.bf16.gmra.mrb[0].mxu0 %v3521
        %v3645 = vpop.f32.mrb[0].mxu0
        %v3646 = vadd.f32 0.0, %v3645
        %v3647 = vpop.f32.mrb[0].mxu0
        %v3648 = vpop.f32.mrb[0].mxu0
        %v3649 = vadd.f32 0.0, %v3648
        %v3650 = vpop.f32.mrb[0].mxu0
        %3651 = vmatprep.mubr.bf16.mxu0 0
        %3652 = vmatmul.mubr.bf16.gmra.mrb[0].mxu0 %v3524
        %v3653 = vpop.f32.mrb[0].mxu0
        %v3654 = vadd.f32 0.0, %v3653
        %v3655 = vpop.f32.mrb[0].mxu0
        %v3656 = vpop.f32.mrb[0].mxu0
        %v3657 = vadd.f32 0.0, %v3656
        %v3658 = vpop.f32.mrb[0].mxu0
        %3659 = vmatprep.mubr.bf16.mxu0 0
        %3660 = vmatmul.mubr.bf16.gmra.mrb[0].mxu0 %v3527
        %v3661 = vpop.f32.mrb[0].mxu0
        %v3662 = vadd.f32 0.0, %v3661
        %v3663 = vpop.f32.mrb[0].mxu0
        %v3664 = vpop.f32.mrb[0].mxu0
        %v3665 = vadd.f32 0.0, %v3664
        %v3666 = vpop.f32.mrb[0].mxu0
        %3667 = vmatprep.mubr.bf16.mxu0 0
        %3668 = vmatmul.mubr.bf16.gmra.mrb[0].mxu0 %v3530
        %v3669 = vpop.f32.mrb[0].mxu0
        %v3670 = vadd.f32 0.0, %v3669
        %v3671 = vpop.f32.mrb[0].mxu0
        %v3672 = vpop.f32.mrb[0].mxu0
        %v3673 = vadd.f32 0.0, %v3672
        %v3674 = vpop.f32.mrb[0].mxu0
        %3675 = vmatprep.mubr.bf16.mxu0 0
        %3676 = vmatmul.mubr.bf16.gmra.mrb[0].mxu0 %v3533
        %v3677 = vpop.f32.mrb[0].mxu0
        %v3678 = vadd.f32 0.0, %v3677
        %v3679 = vpop.f32.mrb[0].mxu0
        %v3680 = vpop.f32.mrb[0].mxu0
        %v3681 = vadd.f32 0.0, %v3680
        %v3682 = vpop.f32.mrb[0].mxu0
        %3683 = vmatprep.mubr.bf16.mxu0 0
        %3684 = vmatmul.mubr.bf16.gmra.mrb[0].mxu0 %v3536
        %v3685 = vpop.f32.mrb[0].mxu0
        %v3686 = vadd.f32 0.0, %v3685
        %v3687 = vpop.f32.mrb[0].mxu0
        %v3688 = vpop.f32.mrb[0].mxu0
        %v3689 = vadd.f32 0.0, %v3688
        %v3690 = vpop.f32.mrb[0].mxu0
        %3691 = vmatprep.mubr.bf16.mxu0 0
        %3692 = vmatmul.mubr.bf16.gmra.mrb[0].mxu0 %v3539
        %v3693 = vpop.f32.mrb[0].mxu0
        %v3694 = vadd.f32 0.0, %v3693
        %v3695 = vpop.f32.mrb[0].mxu0
        %v3696 = vpop.f32.mrb[0].mxu0
        %v3697 = vadd.f32 0.0, %v3696
        %v3698 = vpop.f32.mrb[0].mxu0
        %3699 = vmatprep.mubr.bf16.mxu0 0
        %3700 = vmatmul.mubr.bf16.gmra.mrb[0].mxu0 %v3542
        %v3701 = vpop.f32.mrb[0].mxu0
        %v3702 = vadd.f32 0.0, %v3701
        %v3703 = vpop.f32.mrb[0].mxu0
        %v3704 = vpop.f32.mrb[0].mxu0
        %v3705 = vadd.f32 0.0, %v3704
        %v3706 = vpop.f32.mrb[0].mxu0
        %3707 = vdwg.mxu0
        %v3708 = vadd.f32 %v3408, %v3582
        %v3709 = vadd.f32 %v3409, %v3585
        %v3710 = vadd.f32 %v3410, %v3590
        %v3711 = vadd.f32 %v3411, %v3593
        %v3712 = vadd.f32 %v3412, %v3598
        %v3713 = vadd.f32 %v3413, %v3601
        %v3714 = vadd.f32 %v3414, %v3606
        %v3715 = vadd.f32 %v3415, %v3609
        %v3716 = vadd.f32 %v3416, %v3614
        %v3717 = vadd.f32 %v3417, %v3617
        %v3718 = vadd.f32 %v3418, %v3622
        %v3719 = vadd.f32 %v3419, %v3625
        %v3720 = vadd.f32 %v3420, %v3630
        %v3721 = vadd.f32 %v3421, %v3633
        %v3722 = vadd.f32 %v3422, %v3638
        %v3723 = vadd.f32 %v3423, %v3641
        %v3724 = vadd.f32 %v3424, %v3646
        %v3725 = vadd.f32 %v3425, %v3649
        %v3726 = vadd.f32 %v3426, %v3654
        %v3727 = vadd.f32 %v3427, %v3657
        %v3728 = vadd.f32 %v3428, %v3662
        %v3729 = vadd.f32 %v3429, %v3665
        %v3730 = vadd.f32 %v3430, %v3670
        %v3731 = vadd.f32 %v3431, %v3673
        %v3732 = vadd.f32 %v3432, %v3678
        %v3733 = vadd.f32 %v3433, %v3681
        %v3734 = vadd.f32 %v3434, %v3686
        %v3735 = vadd.f32 %v3435, %v3689
        %v3736 = vadd.f32 %v3436, %v3694
        %v3737 = vadd.f32 %v3437, %v3697
        %v3738 = vadd.f32 %v3438, %v3702
        %v3739 = vadd.f32 %v3439, %v3705
        %s3740 = scalar_lea.vmem [#allocation10], 16
        %v3741 = vld [vmem:[%s3740] sm:$0xf]
        %v3743 = vsel %vm2620, %v3492, 0
        %v3746 = vsel %vm2841, %v3741, 0
        %3748 = vmatprep.subr.bf16.mxu0 0
        %3749 = vmatpush1.bf16.msra.mxu0 %v3746
        %3750 = vmatprep.subr.bf16.mxu0 0
        %3751 = vmatpush1.bf16.msra.mxu0 0
        %3752 = vmatprep.subr.bf16.mxu0 0
        %3753 = vmatpush1.bf16.msra.mxu0 0
        %3754 = vmatprep.subr.bf16.mxu0 0
        %3755 = vmatpush1.bf16.msra.mxu0 0
        %3756 = vmatprep.subr.bf16.mxu0 0
        %3757 = vmatpush1.bf16.msra.mxu0 0
        %3758 = vmatprep.subr.bf16.mxu0 0
        %3759 = vmatpush1.bf16.msra.mxu0 0
        %3760 = vmatprep.subr.bf16.mxu0 0
        %3761 = vmatpush1.bf16.msra.mxu0 0
        %3762 = vmatprep.subr.bf16.mxu0 0
        %3763 = vmatpush1.bf16.msra.mxu0 0
        %3764 = vmatprep.subr.bf16.mxu0 0
        %3765 = vmatpush1.bf16.msra.mxu0 0
        %3766 = vmatprep.subr.bf16.mxu0 0
        %3767 = vmatpush1.bf16.msra.mxu0 0
        %3768 = vmatprep.subr.bf16.mxu0 0
        %3769 = vmatpush1.bf16.msra.mxu0 0
        %3770 = vmatprep.subr.bf16.mxu0 0
        %3771 = vmatpush1.bf16.msra.mxu0 0
        %3772 = vmatprep.subr.bf16.mxu0 0
        %3773 = vmatpush1.bf16.msra.mxu0 0
        %3774 = vmatprep.subr.bf16.mxu0 0
        %3775 = vmatpush1.bf16.msra.mxu0 0
        %3776 = vmatprep.subr.bf16.mxu0 0
        %3777 = vmatpush1.bf16.msra.mxu0 0
        %3778 = vmatprep.subr.bf16.mxu0 0
        %3779 = vmatpush1.bf16.msra.mxu0 0
        %3780 = vmatprep.mubr.bf16.mxu0 0
        %3781 = vmatmul.mubr.bf16.gmra.mrb[0].mxu0 %v3500
        %v3782 = vpop.f32.mrb[0].mxu0
        %v3783 = vadd.f32 0.0, %v3782
        %v3784 = vpop.f32.mrb[0].mxu0
        %v3785 = vpop.f32.mrb[0].mxu0
        %v3786 = vadd.f32 0.0, %v3785
        %v3787 = vpop.f32.mrb[0].mxu0
        %3788 = vmatprep.mubr.bf16.mxu0 0
        %3789 = vmatmul.mubr.bf16.gmra.mrb[0].mxu0 %v3503
        %v3790 = vpop.f32.mrb[0].mxu0
        %v3791 = vadd.f32 0.0, %v3790
        %v3792 = vpop.f32.mrb[0].mxu0
        %v3793 = vpop.f32.mrb[0].mxu0
        %v3794 = vadd.f32 0.0, %v3793
        %v3795 = vpop.f32.mrb[0].mxu0
        %3796 = vmatprep.mubr.bf16.mxu0 0
        %3797 = vmatmul.mubr.bf16.gmra.mrb[0].mxu0 %v3506
        %v3798 = vpop.f32.mrb[0].mxu0
        %v3799 = vadd.f32 0.0, %v3798
        %v3800 = vpop.f32.mrb[0].mxu0
        %v3801 = vpop.f32.mrb[0].mxu0
        %v3802 = vadd.f32 0.0, %v3801
        %v3803 = vpop.f32.mrb[0].mxu0
        %3804 = vmatprep.mubr.bf16.mxu0 0
        %3805 = vmatmul.mubr.bf16.gmra.mrb[0].mxu0 %v3509
        %v3806 = vpop.f32.mrb[0].mxu0
        %v3807 = vadd.f32 0.0, %v3806
        %v3808 = vpop.f32.mrb[0].mxu0
        %v3809 = vpop.f32.mrb[0].mxu0
        %v3810 = vadd.f32 0.0, %v3809
        %v3811 = vpop.f32.mrb[0].mxu0
        %3812 = vmatprep.mubr.bf16.mxu0 0
        %3813 = vmatmul.mubr.bf16.gmra.mrb[0].mxu0 %v3512
        %v3814 = vpop.f32.mrb[0].mxu0
        %v3815 = vadd.f32 0.0, %v3814
        %v3816 = vpop.f32.mrb[0].mxu0
        %v3817 = vpop.f32.mrb[0].mxu0
        %v3818 = vadd.f32 0.0, %v3817
        %v3819 = vpop.f32.mrb[0].mxu0
        %3820 = vmatprep.mubr.bf16.mxu0 0
        %3821 = vmatmul.mubr.bf16.gmra.mrb[0].mxu0 %v3515
        %v3822 = vpop.f32.mrb[0].mxu0
        %v3823 = vadd.f32 0.0, %v3822
        %v3824 = vpop.f32.mrb[0].mxu0
        %v3825 = vpop.f32.mrb[0].mxu0
        %v3826 = vadd.f32 0.0, %v3825
        %v3827 = vpop.f32.mrb[0].mxu0
        %3828 = vmatprep.mubr.bf16.mxu0 0
        %3829 = vmatmul.mubr.bf16.gmra.mrb[0].mxu0 %v3518
        %v3830 = vpop.f32.mrb[0].mxu0
        %v3831 = vadd.f32 0.0, %v3830
        %v3832 = vpop.f32.mrb[0].mxu0
        %v3833 = vpop.f32.mrb[0].mxu0
        %v3834 = vadd.f32 0.0, %v3833
        %v3835 = vpop.f32.mrb[0].mxu0
        %3836 = vmatprep.mubr.bf16.mxu0 0
        %3837 = vmatmul.mubr.bf16.gmra.mrb[0].mxu0 %v3521
        %v3838 = vpop.f32.mrb[0].mxu0
        %v3839 = vadd.f32 0.0, %v3838
        %v3840 = vpop.f32.mrb[0].mxu0
        %v3841 = vpop.f32.mrb[0].mxu0
        %v3842 = vadd.f32 0.0, %v3841
        %v3843 = vpop.f32.mrb[0].mxu0
        %3844 = vmatprep.mubr.bf16.mxu0 0
        %3845 = vmatmul.mubr.bf16.gmra.mrb[0].mxu0 %v3524
        %v3846 = vpop.f32.mrb[0].mxu0
        %v3847 = vadd.f32 0.0, %v3846
        %v3848 = vpop.f32.mrb[0].mxu0
        %v3849 = vpop.f32.mrb[0].mxu0
        %v3850 = vadd.f32 0.0, %v3849
        %v3851 = vpop.f32.mrb[0].mxu0
        %3852 = vmatprep.mubr.bf16.mxu0 0
        %3853 = vmatmul.mubr.bf16.gmra.mrb[0].mxu0 %v3527
        %v3854 = vpop.f32.mrb[0].mxu0
        %v3855 = vadd.f32 0.0, %v3854
        %v3856 = vpop.f32.mrb[0].mxu0
        %v3857 = vpop.f32.mrb[0].mxu0
        %v3858 = vadd.f32 0.0, %v3857
        %v3859 = vpop.f32.mrb[0].mxu0
        %3860 = vmatprep.mubr.bf16.mxu0 0
        %3861 = vmatmul.mubr.bf16.gmra.mrb[0].mxu0 %v3530
        %v3862 = vpop.f32.mrb[0].mxu0
        %v3863 = vadd.f32 0.0, %v3862
        %v3864 = vpop.f32.mrb[0].mxu0
        %v3865 = vpop.f32.mrb[0].mxu0
        %v3866 = vadd.f32 0.0, %v3865
        %v3867 = vpop.f32.mrb[0].mxu0
        %3868 = vmatprep.mubr.bf16.mxu0 0
        %3869 = vmatmul.mubr.bf16.gmra.mrb[0].mxu0 %v3533
        %v3870 = vpop.f32.mrb[0].mxu0
        %v3871 = vadd.f32 0.0, %v3870
        %v3872 = vpop.f32.mrb[0].mxu0
        %v3873 = vpop.f32.mrb[0].mxu0
        %v3874 = vadd.f32 0.0, %v3873
        %v3875 = vpop.f32.mrb[0].mxu0
        %3876 = vmatprep.mubr.bf16.mxu0 0
        %3877 = vmatmul.mubr.bf16.gmra.mrb[0].mxu0 %v3536
        %v3878 = vpop.f32.mrb[0].mxu0
        %v3879 = vadd.f32 0.0, %v3878
        %v3880 = vpop.f32.mrb[0].mxu0
        %v3881 = vpop.f32.mrb[0].mxu0
        %v3882 = vadd.f32 0.0, %v3881
        %v3883 = vpop.f32.mrb[0].mxu0
        %3884 = vmatprep.mubr.bf16.mxu0 0
        %3885 = vmatmul.mubr.bf16.gmra.mrb[0].mxu0 %v3539
        %v3886 = vpop.f32.mrb[0].mxu0
        %v3887 = vadd.f32 0.0, %v3886
        %v3888 = vpop.f32.mrb[0].mxu0
        %v3889 = vpop.f32.mrb[0].mxu0
        %v3890 = vadd.f32 0.0, %v3889
        %v3891 = vpop.f32.mrb[0].mxu0
        %3892 = vmatprep.mubr.bf16.mxu0 0
        %3893 = vmatmul.mubr.bf16.gmra.mrb[0].mxu0 %v3542
        %v3894 = vpop.f32.mrb[0].mxu0
        %v3895 = vadd.f32 0.0, %v3894
        %v3896 = vpop.f32.mrb[0].mxu0
        %v3897 = vpop.f32.mrb[0].mxu0
        %v3898 = vadd.f32 0.0, %v3897
        %v3899 = vpop.f32.mrb[0].mxu0
        %3900 = vmatprep.mubr.bf16.mxu0 0
        %3901 = vmatmul.mubr.bf16.gmra.mrb[0].mxu0 %v3743
        %v3902 = vpop.f32.mrb[0].mxu0
        %v3903 = vadd.f32 0.0, %v3902
        %v3904 = vpop.f32.mrb[0].mxu0
        %v3905 = vpop.f32.mrb[0].mxu0
        %v3906 = vadd.f32 0.0, %v3905
        %v3907 = vpop.f32.mrb[0].mxu0
        %3908 = vdwg.mxu0
        %v3909 = vadd.f32 %v3708, %v3783
        %v3910 = vadd.f32 %v3709, %v3786
        %v3911 = vadd.f32 %v3710, %v3791
        %v3912 = vadd.f32 %v3711, %v3794
        %v3913 = vadd.f32 %v3712, %v3799
        %v3914 = vadd.f32 %v3713, %v3802
        %v3915 = vadd.f32 %v3714, %v3807
        %v3916 = vadd.f32 %v3715, %v3810
        %v3917 = vadd.f32 %v3716, %v3815
        %v3918 = vadd.f32 %v3717, %v3818
        %v3919 = vadd.f32 %v3718, %v3823
        %v3920 = vadd.f32 %v3719, %v3826
        %v3921 = vadd.f32 %v3720, %v3831
        %v3922 = vadd.f32 %v3721, %v3834
        %v3923 = vadd.f32 %v3722, %v3839
        %v3924 = vadd.f32 %v3723, %v3842
        %v3925 = vadd.f32 %v3724, %v3847
        %v3926 = vadd.f32 %v3725, %v3850
        %v3927 = vadd.f32 %v3726, %v3855
        %v3928 = vadd.f32 %v3727, %v3858
        %v3929 = vadd.f32 %v3728, %v3863
        %v3930 = vadd.f32 %v3729, %v3866
        %v3931 = vadd.f32 %v3730, %v3871
        %v3932 = vadd.f32 %v3731, %v3874
        %v3933 = vadd.f32 %v3732, %v3879
        %v3934 = vadd.f32 %v3733, %v3882
        %v3935 = vadd.f32 %v3734, %v3887
        %v3936 = vadd.f32 %v3735, %v3890
        %v3937 = vadd.f32 %v3736, %v3895
        %v3938 = vadd.f32 %v3737, %v3898
        %v3939 = vadd.f32 %v3738, %v3903
        %v3940 = vadd.f32 %v3739, %v3906
        %s3941 = scalar_lea.vmem [#allocation10], 28
        %v3942 = vld [vmem:[%s3941] sm:$0xf]
        %v3944 = vsel %vm2620, %v3493, 0
        %v3947 = vsel %vm2841, %v3942, 0
        %3949 = vmatprep.subr.bf16.mxu0 0
        %3950 = vmatpush1.bf16.msra.mxu0 %v3947
        %3951 = vmatprep.subr.bf16.mxu0 0
        %3952 = vmatpush1.bf16.msra.mxu0 0
        %3953 = vmatprep.subr.bf16.mxu0 0
        %3954 = vmatpush1.bf16.msra.mxu0 0
        %3955 = vmatprep.subr.bf16.mxu0 0
        %3956 = vmatpush1.bf16.msra.mxu0 0
        %3957 = vmatprep.subr.bf16.mxu0 0
        %3958 = vmatpush1.bf16.msra.mxu0 0
        %3959 = vmatprep.subr.bf16.mxu0 0
        %3960 = vmatpush1.bf16.msra.mxu0 0
        %3961 = vmatprep.subr.bf16.mxu0 0
        %3962 = vmatpush1.bf16.msra.mxu0 0
        %3963 = vmatprep.subr.bf16.mxu0 0
        %3964 = vmatpush1.bf16.msra.mxu0 0
        %3965 = vmatprep.subr.bf16.mxu0 0
        %3966 = vmatpush1.bf16.msra.mxu0 0
        %3967 = vmatprep.subr.bf16.mxu0 0
        %3968 = vmatpush1.bf16.msra.mxu0 0
        %3969 = vmatprep.subr.bf16.mxu0 0
        %3970 = vmatpush1.bf16.msra.mxu0 0
        %3971 = vmatprep.subr.bf16.mxu0 0
        %3972 = vmatpush1.bf16.msra.mxu0 0
        %3973 = vmatprep.subr.bf16.mxu0 0
        %3974 = vmatpush1.bf16.msra.mxu0 0
        %3975 = vmatprep.subr.bf16.mxu0 0
        %3976 = vmatpush1.bf16.msra.mxu0 0
        %3977 = vmatprep.subr.bf16.mxu0 0
        %3978 = vmatpush1.bf16.msra.mxu0 0
        %3979 = vmatprep.subr.bf16.mxu0 0
        %3980 = vmatpush1.bf16.msra.mxu0 0
        %3981 = vmatprep.mubr.bf16.mxu0 0
        %3982 = vmatmul.mubr.bf16.gmra.mrb[0].mxu0 %v3503
        %v3983 = vpop.f32.mrb[0].mxu0
        %v3984 = vadd.f32 0.0, %v3983
        %v3985 = vpop.f32.mrb[0].mxu0
        %v3986 = vpop.f32.mrb[0].mxu0
        %v3987 = vadd.f32 0.0, %v3986
        %v3988 = vpop.f32.mrb[0].mxu0
        %3989 = vmatprep.mubr.bf16.mxu0 0
        %3990 = vmatmul.mubr.bf16.gmra.mrb[0].mxu0 %v3506
        %v3991 = vpop.f32.mrb[0].mxu0
        %v3992 = vadd.f32 0.0, %v3991
        %v3993 = vpop.f32.mrb[0].mxu0
        %v3994 = vpop.f32.mrb[0].mxu0
        %v3995 = vadd.f32 0.0, %v3994
        %v3996 = vpop.f32.mrb[0].mxu0
        %3997 = vmatprep.mubr.bf16.mxu0 0
        %3998 = vmatmul.mubr.bf16.gmra.mrb[0].mxu0 %v3509
        %v3999 = vpop.f32.mrb[0].mxu0
        %v4000 = vadd.f32 0.0, %v3999
        %v4001 = vpop.f32.mrb[0].mxu0
        %v4002 = vpop.f32.mrb[0].mxu0
        %v4003 = vadd.f32 0.0, %v4002
        %v4004 = vpop.f32.mrb[0].mxu0
        %4005 = vmatprep.mubr.bf16.mxu0 0
        %4006 = vmatmul.mubr.bf16.gmra.mrb[0].mxu0 %v3512
        %v4007 = vpop.f32.mrb[0].mxu0
        %v4008 = vadd.f32 0.0, %v4007
        %v4009 = vpop.f32.mrb[0].mxu0
        %v4010 = vpop.f32.mrb[0].mxu0
        %v4011 = vadd.f32 0.0, %v4010
        %v4012 = vpop.f32.mrb[0].mxu0
        %4013 = vmatprep.mubr.bf16.mxu0 0
        %4014 = vmatmul.mubr.bf16.gmra.mrb[0].mxu0 %v3515
        %v4015 = vpop.f32.mrb[0].mxu0
        %v4016 = vadd.f32 0.0, %v4015
        %v4017 = vpop.f32.mrb[0].mxu0
        %v4018 = vpop.f32.mrb[0].mxu0
        %v4019 = vadd.f32 0.0, %v4018
        %v4020 = vpop.f32.mrb[0].mxu0
        %4021 = vmatprep.mubr.bf16.mxu0 0
        %4022 = vmatmul.mubr.bf16.gmra.mrb[0].mxu0 %v3518
        %v4023 = vpop.f32.mrb[0].mxu0
        %v4024 = vadd.f32 0.0, %v4023
        %v4025 = vpop.f32.mrb[0].mxu0
        %v4026 = vpop.f32.mrb[0].mxu0
        %v4027 = vadd.f32 0.0, %v4026
        %v4028 = vpop.f32.mrb[0].mxu0
        %4029 = vmatprep.mubr.bf16.mxu0 0
        %4030 = vmatmul.mubr.bf16.gmra.mrb[0].mxu0 %v3521
        %v4031 = vpop.f32.mrb[0].mxu0
        %v4032 = vadd.f32 0.0, %v4031
        %v4033 = vpop.f32.mrb[0].mxu0
        %v4034 = vpop.f32.mrb[0].mxu0
        %v4035 = vadd.f32 0.0, %v4034
        %v4036 = vpop.f32.mrb[0].mxu0
        %4037 = vmatprep.mubr.bf16.mxu0 0
        %4038 = vmatmul.mubr.bf16.gmra.mrb[0].mxu0 %v3524
        %v4039 = vpop.f32.mrb[0].mxu0
        %v4040 = vadd.f32 0.0, %v4039
        %v4041 = vpop.f32.mrb[0].mxu0
        %v4042 = vpop.f32.mrb[0].mxu0
        %v4043 = vadd.f32 0.0, %v4042
        %v4044 = vpop.f32.mrb[0].mxu0
        %4045 = vmatprep.mubr.bf16.mxu0 0
        %4046 = vmatmul.mubr.bf16.gmra.mrb[0].mxu0 %v3527
        %v4047 = vpop.f32.mrb[0].mxu0
        %v4048 = vadd.f32 0.0, %v4047
        %v4049 = vpop.f32.mrb[0].mxu0
        %v4050 = vpop.f32.mrb[0].mxu0
        %v4051 = vadd.f32 0.0, %v4050
        %v4052 = vpop.f32.mrb[0].mxu0
        %4053 = vmatprep.mubr.bf16.mxu0 0
        %4054 = vmatmul.mubr.bf16.gmra.mrb[0].mxu0 %v3530
        %v4055 = vpop.f32.mrb[0].mxu0
        %v4056 = vadd.f32 0.0, %v4055
        %v4057 = vpop.f32.mrb[0].mxu0
        %v4058 = vpop.f32.mrb[0].mxu0
        %v4059 = vadd.f32 0.0, %v4058
        %v4060 = vpop.f32.mrb[0].mxu0
        %4061 = vmatprep.mubr.bf16.mxu0 0
        %4062 = vmatmul.mubr.bf16.gmra.mrb[0].mxu0 %v3533
        %v4063 = vpop.f32.mrb[0].mxu0
        %v4064 = vadd.f32 0.0, %v4063
        %v4065 = vpop.f32.mrb[0].mxu0
        %v4066 = vpop.f32.mrb[0].mxu0
        %v4067 = vadd.f32 0.0, %v4066
        %v4068 = vpop.f32.mrb[0].mxu0
        %4069 = vmatprep.mubr.bf16.mxu0 0
        %4070 = vmatmul.mubr.bf16.gmra.mrb[0].mxu0 %v3536
        %v4071 = vpop.f32.mrb[0].mxu0
        %v4072 = vadd.f32 0.0, %v4071
        %v4073 = vpop.f32.mrb[0].mxu0
        %v4074 = vpop.f32.mrb[0].mxu0
        %v4075 = vadd.f32 0.0, %v4074
        %v4076 = vpop.f32.mrb[0].mxu0
        %4077 = vmatprep.mubr.bf16.mxu0 0
        %4078 = vmatmul.mubr.bf16.gmra.mrb[0].mxu0 %v3539
        %v4079 = vpop.f32.mrb[0].mxu0
        %v4080 = vadd.f32 0.0, %v4079
        %v4081 = vpop.f32.mrb[0].mxu0
        %v4082 = vpop.f32.mrb[0].mxu0
        %v4083 = vadd.f32 0.0, %v4082
        %v4084 = vpop.f32.mrb[0].mxu0
        %4085 = vmatprep.mubr.bf16.mxu0 0
        %4086 = vmatmul.mubr.bf16.gmra.mrb[0].mxu0 %v3542
        %v4087 = vpop.f32.mrb[0].mxu0
        %v4088 = vadd.f32 0.0, %v4087
        %v4089 = vpop.f32.mrb[0].mxu0
        %v4090 = vpop.f32.mrb[0].mxu0
        %v4091 = vadd.f32 0.0, %v4090
        %v4092 = vpop.f32.mrb[0].mxu0
        %4093 = vmatprep.mubr.bf16.mxu0 0
        %4094 = vmatmul.mubr.bf16.gmra.mrb[0].mxu0 %v3743
        %v4095 = vpop.f32.mrb[0].mxu0
        %v4096 = vadd.f32 0.0, %v4095
        %v4097 = vpop.f32.mrb[0].mxu0
        %v4098 = vpop.f32.mrb[0].mxu0
        %v4099 = vadd.f32 0.0, %v4098
        %v4100 = vpop.f32.mrb[0].mxu0
        %4101 = vmatprep.mubr.bf16.mxu0 0
        %4102 = vmatmul.mubr.bf16.gmra.mrb[0].mxu0 %v3944
        %v4103 = vpop.f32.mrb[0].mxu0
        %v4104 = vadd.f32 0.0, %v4103
        %v4105 = vpop.f32.mrb[0].mxu0
        %v4106 = vpop.f32.mrb[0].mxu0
        %v4107 = vadd.f32 0.0, %v4106
        %v4108 = vpop.f32.mrb[0].mxu0
        %4109 = vdwg.mxu0
        %v4110 = vadd.f32 %v3909, %v3984
        %v4111 = vadd.f32 %v3910, %v3987
        %v4112 = vadd.f32 %v3911, %v3992
        %v4113 = vadd.f32 %v3912, %v3995
        %v4114 = vadd.f32 %v3913, %v4000
        %v4115 = vadd.f32 %v3914, %v4003
        %v4116 = vadd.f32 %v3915, %v4008
        %v4117 = vadd.f32 %v3916, %v4011
        %v4118 = vadd.f32 %v3917, %v4016
        %v4119 = vadd.f32 %v3918, %v4019
        %v4120 = vadd.f32 %v3919, %v4024
        %v4121 = vadd.f32 %v3920, %v4027
        %v4122 = vadd.f32 %v3921, %v4032
        %v4123 = vadd.f32 %v3922, %v4035
        %v4124 = vadd.f32 %v3923, %v4040
        %v4125 = vadd.f32 %v3924, %v4043
        %v4126 = vadd.f32 %v3925, %v4048
        %v4127 = vadd.f32 %v3926, %v4051
        %v4128 = vadd.f32 %v3927, %v4056
        %v4129 = vadd.f32 %v3928, %v4059
        %v4130 = vadd.f32 %v3929, %v4064
        %v4131 = vadd.f32 %v3930, %v4067
        %v4132 = vadd.f32 %v3931, %v4072
        %v4133 = vadd.f32 %v3932, %v4075
        %v4134 = vadd.f32 %v3933, %v4080
        %v4135 = vadd.f32 %v3934, %v4083
        %v4136 = vadd.f32 %v3935, %v4088
        %v4137 = vadd.f32 %v3936, %v4091
        %v4138 = vadd.f32 %v3937, %v4096
        %v4139 = vadd.f32 %v3938, %v4099
        %v4140 = vadd.f32 %v3939, %v4104
        %v4141 = vadd.f32 %v3940, %v4107
        %v4142 = vld [vmem:[#allocation3 + $0x2] sm:$0xff]
        %v4143 = vld [vmem:[#allocation3 + $0xa] sm:$0xff]
        %v4144 = vld [vmem:[#allocation3 + $0x1a] sm:$0xff]
        %v4145 = vld [vmem:[#allocation3 + $0x22] sm:$0xff]
        %v4146 = vld [vmem:[#allocation3 + $0x32] sm:$0xff]
        %v4147 = vld [vmem:[#allocation3 + $0x3a] sm:$0xff]
        %v4148 = vld [vmem:[#allocation3 + $0x4a] sm:$0xff]
        %v4149 = vld [vmem:[#allocation3 + $0x52] sm:$0xff]
        %v4150 = vld [vmem:[#allocation3 + $0x62] sm:$0xff]
        %v4151 = vld [vmem:[#allocation3 + $0x6a] sm:$0xff]
        %v4152 = vld [vmem:[#allocation3 + $0x7a] sm:$0xff]
        %v4153 = vld [vmem:[#allocation3 + $0x82] sm:$0xff]
        %v4154 = vld [vmem:[#allocation3 + $0x92] sm:$0xff]
        %v4155 = vld [vmem:[#allocation3 + $0x9a] sm:$0xff]
        %v4156 = vld [vmem:[#allocation3 + $0xaa] sm:$0xff]
        %v4157 = vld [vmem:[#allocation3 + $0xb2] sm:$0xff]
        %v4158 = vld [vmem:[#allocation3 + $0xc2] sm:$0xff]
        %v4159 = vld [vmem:[#allocation3 + $0xca] sm:$0xff]
        %v4160 = vld [vmem:[#allocation3 + $0xda] sm:$0xff]
        %v4161 = vld [vmem:[#allocation3 + $0xe2] sm:$0xff]
        %v4162 = vld [vmem:[#allocation3 + $0xf2] sm:$0xff]
        %v4163 = vld [vmem:[#allocation3 + $0xfa] sm:$0xff]
        %v4164 = vld [vmem:[#allocation3 + $0x10a] sm:$0xff]
        %v4165 = vld [vmem:[#allocation3 + $0x112] sm:$0xff]
        %v4166 = vld [vmem:[#allocation3 + $0x122] sm:$0xff]
        %v4167 = vld [vmem:[#allocation3 + $0x12a] sm:$0xff]
        %v4168 = vld [vmem:[#allocation3 + $0x13a] sm:$0xff]
        %v4169 = vld [vmem:[#allocation3 + $0x142] sm:$0xff]
        %v4170 = vld [vmem:[#allocation3 + $0x152] sm:$0xff]
        %v4171 = vld [vmem:[#allocation3 + $0x15a] sm:$0xff]
        %v4172 = vld [vmem:[#allocation3 + $0x16a] sm:$0xff]
        %v4173 = vld [vmem:[#allocation3 + $0x172] sm:$0xff]
        %v4174 = vld [vmem:[#allocation3 + $0x182] sm:$0xff]
        %v4175 = vld [vmem:[#allocation3 + $0x18a] sm:$0xff]
        %v4176 = vld [vmem:[#allocation3 + $0x19a] sm:$0xff]
        %v4177 = vld [vmem:[#allocation3 + $0x1a2] sm:$0xff]
        %v4178 = vpack.c.bf16 %v4143, %v4142
        %v4179 = vpack.c.bf16 %v4145, %v4144
        %v4180 = vpack.c.bf16 %v4147, %v4146
        %v4181 = vpack.c.bf16 %v4149, %v4148
        %v4182 = vpack.c.bf16 %v4151, %v4150
        %v4183 = vpack.c.bf16 %v4153, %v4152
        %v4184 = vpack.c.bf16 %v4155, %v4154
        %v4185 = vpack.c.bf16 %v4157, %v4156
        %v4186 = vpack.c.bf16 %v4159, %v4158
        %v4187 = vpack.c.bf16 %v4161, %v4160
        %v4188 = vpack.c.bf16 %v4163, %v4162
        %v4189 = vpack.c.bf16 %v4165, %v4164
        %v4190 = vpack.c.bf16 %v4167, %v4166
        %v4191 = vpack.c.bf16 %v4169, %v4168
        %v4192 = vpack.c.bf16 %v4171, %v4170
        %v4193 = vpack.c.bf16 %v4173, %v4172
        %v4194 = vpack.c.bf16 %v4175, %v4174
        %v4195 = vpack.c.bf16 %v4177, %v4176
        %s4196 = scalar_lea.vmem [#allocation10], 8
        %v4197 = vld [vmem:[%s4196] sm:$0xf]
        %v4199 = vsel %vm2620, %v4178, 0
        %v4202 = vsel %vm2620, %v4179, 0
        %v4205 = vsel %vm2620, %v4180, 0
        %v4208 = vsel %vm2620, %v4181, 0
        %v4211 = vsel %vm2620, %v4182, 0
        %v4214 = vsel %vm2620, %v4183, 0
        %v4217 = vsel %vm2620, %v4184, 0
        %v4220 = vsel %vm2620, %v4185, 0
        %v4223 = vsel %vm2620, %v4186, 0
        %v4226 = vsel %vm2620, %v4187, 0
        %v4229 = vsel %vm2620, %v4188, 0
        %v4232 = vsel %vm2620, %v4189, 0
        %v4235 = vsel %vm2620, %v4190, 0
        %v4238 = vsel %vm2620, %v4191, 0
        %v4241 = vsel %vm2620, %v4192, 0
        %v4244 = vsel %vm2620, %v4193, 0
        %v4247 = vsel %vm2841, %v4197, 0
        %4249 = vmatprep.subr.bf16.mxu0 0
        %4250 = vmatpush1.bf16.msra.mxu0 %v4247
        %4251 = vmatprep.subr.bf16.mxu0 0
        %4252 = vmatpush1.bf16.msra.mxu0 0
        %4253 = vmatprep.subr.bf16.mxu0 0
        %4254 = vmatpush1.bf16.msra.mxu0 0
        %4255 = vmatprep.subr.bf16.mxu0 0
        %4256 = vmatpush1.bf16.msra.mxu0 0
        %4257 = vmatprep.subr.bf16.mxu0 0
        %4258 = vmatpush1.bf16.msra.mxu0 0
        %4259 = vmatprep.subr.bf16.mxu0 0
        %4260 = vmatpush1.bf16.msra.mxu0 0
        %4261 = vmatprep.subr.bf16.mxu0 0
        %4262 = vmatpush1.bf16.msra.mxu0 0
        %4263 = vmatprep.subr.bf16.mxu0 0
        %4264 = vmatpush1.bf16.msra.mxu0 0
        %4265 = vmatprep.subr.bf16.mxu0 0
        %4266 = vmatpush1.bf16.msra.mxu0 0
        %4267 = vmatprep.subr.bf16.mxu0 0
        %4268 = vmatpush1.bf16.msra.mxu0 0
        %4269 = vmatprep.subr.bf16.mxu0 0
        %4270 = vmatpush1.bf16.msra.mxu0 0
        %4271 = vmatprep.subr.bf16.mxu0 0
        %4272 = vmatpush1.bf16.msra.mxu0 0
        %4273 = vmatprep.subr.bf16.mxu0 0
        %4274 = vmatpush1.bf16.msra.mxu0 0
        %4275 = vmatprep.subr.bf16.mxu0 0
        %4276 = vmatpush1.bf16.msra.mxu0 0
        %4277 = vmatprep.subr.bf16.mxu0 0
        %4278 = vmatpush1.bf16.msra.mxu0 0
        %4279 = vmatprep.subr.bf16.mxu0 0
        %4280 = vmatpush1.bf16.msra.mxu0 0
        %4281 = vmatprep.mubr.bf16.mxu0 0
        %4282 = vmatmul.mubr.bf16.gmra.mrb[0].mxu0 %v4199
        %v4283 = vpop.f32.mrb[0].mxu0
        %v4284 = vadd.f32 0.0, %v4283
        %v4285 = vpop.f32.mrb[0].mxu0
        %v4286 = vpop.f32.mrb[0].mxu0
        %v4287 = vadd.f32 0.0, %v4286
        %v4288 = vpop.f32.mrb[0].mxu0
        %4289 = vmatprep.mubr.bf16.mxu0 0
        %4290 = vmatmul.mubr.bf16.gmra.mrb[0].mxu0 %v4202
        %v4291 = vpop.f32.mrb[0].mxu0
        %v4292 = vadd.f32 0.0, %v4291
        %v4293 = vpop.f32.mrb[0].mxu0
        %v4294 = vpop.f32.mrb[0].mxu0
        %v4295 = vadd.f32 0.0, %v4294
        %v4296 = vpop.f32.mrb[0].mxu0
        %4297 = vmatprep.mubr.bf16.mxu0 0
        %4298 = vmatmul.mubr.bf16.gmra.mrb[0].mxu0 %v4205
        %v4299 = vpop.f32.mrb[0].mxu0
        %v4300 = vadd.f32 0.0, %v4299
        %v4301 = vpop.f32.mrb[0].mxu0
        %v4302 = vpop.f32.mrb[0].mxu0
        %v4303 = vadd.f32 0.0, %v4302
        %v4304 = vpop.f32.mrb[0].mxu0
        %4305 = vmatprep.mubr.bf16.mxu0 0
        %4306 = vmatmul.mubr.bf16.gmra.mrb[0].mxu0 %v4208
        %v4307 = vpop.f32.mrb[0].mxu0
        %v4308 = vadd.f32 0.0, %v4307
        %v4309 = vpop.f32.mrb[0].mxu0
        %v4310 = vpop.f32.mrb[0].mxu0
        %v4311 = vadd.f32 0.0, %v4310
        %v4312 = vpop.f32.mrb[0].mxu0
        %4313 = vmatprep.mubr.bf16.mxu0 0
        %4314 = vmatmul.mubr.bf16.gmra.mrb[0].mxu0 %v4211
        %v4315 = vpop.f32.mrb[0].mxu0
        %v4316 = vadd.f32 0.0, %v4315
        %v4317 = vpop.f32.mrb[0].mxu0
        %v4318 = vpop.f32.mrb[0].mxu0
        %v4319 = vadd.f32 0.0, %v4318
        %v4320 = vpop.f32.mrb[0].mxu0
        %4321 = vmatprep.mubr.bf16.mxu0 0
        %4322 = vmatmul.mubr.bf16.gmra.mrb[0].mxu0 %v4214
        %v4323 = vpop.f32.mrb[0].mxu0
        %v4324 = vadd.f32 0.0, %v4323
        %v4325 = vpop.f32.mrb[0].mxu0
        %v4326 = vpop.f32.mrb[0].mxu0
        %v4327 = vadd.f32 0.0, %v4326
        %v4328 = vpop.f32.mrb[0].mxu0
        %4329 = vmatprep.mubr.bf16.mxu0 0
        %4330 = vmatmul.mubr.bf16.gmra.mrb[0].mxu0 %v4217
        %v4331 = vpop.f32.mrb[0].mxu0
        %v4332 = vadd.f32 0.0, %v4331
        %v4333 = vpop.f32.mrb[0].mxu0
        %v4334 = vpop.f32.mrb[0].mxu0
        %v4335 = vadd.f32 0.0, %v4334
        %v4336 = vpop.f32.mrb[0].mxu0
        %4337 = vmatprep.mubr.bf16.mxu0 0
        %4338 = vmatmul.mubr.bf16.gmra.mrb[0].mxu0 %v4220
        %v4339 = vpop.f32.mrb[0].mxu0
        %v4340 = vadd.f32 0.0, %v4339
        %v4341 = vpop.f32.mrb[0].mxu0
        %v4342 = vpop.f32.mrb[0].mxu0
        %v4343 = vadd.f32 0.0, %v4342
        %v4344 = vpop.f32.mrb[0].mxu0
        %4345 = vmatprep.mubr.bf16.mxu0 0
        %4346 = vmatmul.mubr.bf16.gmra.mrb[0].mxu0 %v4223
        %v4347 = vpop.f32.mrb[0].mxu0
        %v4348 = vadd.f32 0.0, %v4347
        %v4349 = vpop.f32.mrb[0].mxu0
        %v4350 = vpop.f32.mrb[0].mxu0
        %v4351 = vadd.f32 0.0, %v4350
        %v4352 = vpop.f32.mrb[0].mxu0
        %4353 = vmatprep.mubr.bf16.mxu0 0
        %4354 = vmatmul.mubr.bf16.gmra.mrb[0].mxu0 %v4226
        %v4355 = vpop.f32.mrb[0].mxu0
        %v4356 = vadd.f32 0.0, %v4355
        %v4357 = vpop.f32.mrb[0].mxu0
        %v4358 = vpop.f32.mrb[0].mxu0
        %v4359 = vadd.f32 0.0, %v4358
        %v4360 = vpop.f32.mrb[0].mxu0
        %4361 = vmatprep.mubr.bf16.mxu0 0
        %4362 = vmatmul.mubr.bf16.gmra.mrb[0].mxu0 %v4229
        %v4363 = vpop.f32.mrb[0].mxu0
        %v4364 = vadd.f32 0.0, %v4363
        %v4365 = vpop.f32.mrb[0].mxu0
        %v4366 = vpop.f32.mrb[0].mxu0
        %v4367 = vadd.f32 0.0, %v4366
        %v4368 = vpop.f32.mrb[0].mxu0
        %4369 = vmatprep.mubr.bf16.mxu0 0
        %4370 = vmatmul.mubr.bf16.gmra.mrb[0].mxu0 %v4232
        %v4371 = vpop.f32.mrb[0].mxu0
        %v4372 = vadd.f32 0.0, %v4371
        %v4373 = vpop.f32.mrb[0].mxu0
        %v4374 = vpop.f32.mrb[0].mxu0
        %v4375 = vadd.f32 0.0, %v4374
        %v4376 = vpop.f32.mrb[0].mxu0
        %4377 = vmatprep.mubr.bf16.mxu0 0
        %4378 = vmatmul.mubr.bf16.gmra.mrb[0].mxu0 %v4235
        %v4379 = vpop.f32.mrb[0].mxu0
        %v4380 = vadd.f32 0.0, %v4379
        %v4381 = vpop.f32.mrb[0].mxu0
        %v4382 = vpop.f32.mrb[0].mxu0
        %v4383 = vadd.f32 0.0, %v4382
        %v4384 = vpop.f32.mrb[0].mxu0
        %4385 = vmatprep.mubr.bf16.mxu0 0
        %4386 = vmatmul.mubr.bf16.gmra.mrb[0].mxu0 %v4238
        %v4387 = vpop.f32.mrb[0].mxu0
        %v4388 = vadd.f32 0.0, %v4387
        %v4389 = vpop.f32.mrb[0].mxu0
        %v4390 = vpop.f32.mrb[0].mxu0
        %v4391 = vadd.f32 0.0, %v4390
        %v4392 = vpop.f32.mrb[0].mxu0
        %4393 = vmatprep.mubr.bf16.mxu0 0
        %4394 = vmatmul.mubr.bf16.gmra.mrb[0].mxu0 %v4241
        %v4395 = vpop.f32.mrb[0].mxu0
        %v4396 = vadd.f32 0.0, %v4395
        %v4397 = vpop.f32.mrb[0].mxu0
        %v4398 = vpop.f32.mrb[0].mxu0
        %v4399 = vadd.f32 0.0, %v4398
        %v4400 = vpop.f32.mrb[0].mxu0
        %4401 = vmatprep.mubr.bf16.mxu0 0
        %4402 = vmatmul.mubr.bf16.gmra.mrb[0].mxu0 %v4244
        %v4403 = vpop.f32.mrb[0].mxu0
        %v4404 = vadd.f32 0.0, %v4403
        %v4405 = vpop.f32.mrb[0].mxu0
        %v4406 = vpop.f32.mrb[0].mxu0
        %v4407 = vadd.f32 0.0, %v4406
        %v4408 = vpop.f32.mrb[0].mxu0
        %4409 = vdwg.mxu0
        %v4410 = vadd.f32 %v4110, %v4284
        %v4411 = vadd.f32 %v4111, %v4287
        %v4412 = vadd.f32 %v4112, %v4292
        %v4413 = vadd.f32 %v4113, %v4295
        %v4414 = vadd.f32 %v4114, %v4300
        %v4415 = vadd.f32 %v4115, %v4303
        %v4416 = vadd.f32 %v4116, %v4308
        %v4417 = vadd.f32 %v4117, %v4311
        %v4418 = vadd.f32 %v4118, %v4316
        %v4419 = vadd.f32 %v4119, %v4319
        %v4420 = vadd.f32 %v4120, %v4324
        %v4421 = vadd.f32 %v4121, %v4327
        %v4422 = vadd.f32 %v4122, %v4332
        %v4423 = vadd.f32 %v4123, %v4335
        %v4424 = vadd.f32 %v4124, %v4340
        %v4425 = vadd.f32 %v4125, %v4343
        %v4426 = vadd.f32 %v4126, %v4348
        %v4427 = vadd.f32 %v4127, %v4351
        %v4428 = vadd.f32 %v4128, %v4356
        %v4429 = vadd.f32 %v4129, %v4359
        %v4430 = vadd.f32 %v4130, %v4364
        %v4431 = vadd.f32 %v4131, %v4367
        %v4432 = vadd.f32 %v4132, %v4372
        %v4433 = vadd.f32 %v4133, %v4375
        %v4434 = vadd.f32 %v4134, %v4380
        %v4435 = vadd.f32 %v4135, %v4383
        %v4436 = vadd.f32 %v4136, %v4388
        %v4437 = vadd.f32 %v4137, %v4391
        %v4438 = vadd.f32 %v4138, %v4396
        %v4439 = vadd.f32 %v4139, %v4399
        %v4440 = vadd.f32 %v4140, %v4404
        %v4441 = vadd.f32 %v4141, %v4407
        %s4442 = scalar_lea.vmem [#allocation10], 20
        %v4443 = vld [vmem:[%s4442] sm:$0xf]
        %v4445 = vsel %vm2620, %v4194, 0
        %v4448 = vsel %vm2841, %v4443, 0
        %4450 = vmatprep.subr.bf16.mxu0 0
        %4451 = vmatpush1.bf16.msra.mxu0 %v4448
        %4452 = vmatprep.subr.bf16.mxu0 0
        %4453 = vmatpush1.bf16.msra.mxu0 0
        %4454 = vmatprep.subr.bf16.mxu0 0
        %4455 = vmatpush1.bf16.msra.mxu0 0
        %4456 = vmatprep.subr.bf16.mxu0 0
        %4457 = vmatpush1.bf16.msra.mxu0 0
        %4458 = vmatprep.subr.bf16.mxu0 0
        %4459 = vmatpush1.bf16.msra.mxu0 0
        %4460 = vmatprep.subr.bf16.mxu0 0
        %4461 = vmatpush1.bf16.msra.mxu0 0
        %4462 = vmatprep.subr.bf16.mxu0 0
        %4463 = vmatpush1.bf16.msra.mxu0 0
        %4464 = vmatprep.subr.bf16.mxu0 0
        %4465 = vmatpush1.bf16.msra.mxu0 0
        %4466 = vmatprep.subr.bf16.mxu0 0
        %4467 = vmatpush1.bf16.msra.mxu0 0
        %4468 = vmatprep.subr.bf16.mxu0 0
        %4469 = vmatpush1.bf16.msra.mxu0 0
        %4470 = vmatprep.subr.bf16.mxu0 0
        %4471 = vmatpush1.bf16.msra.mxu0 0
        %4472 = vmatprep.subr.bf16.mxu0 0
        %4473 = vmatpush1.bf16.msra.mxu0 0
        %4474 = vmatprep.subr.bf16.mxu0 0
        %4475 = vmatpush1.bf16.msra.mxu0 0
        %4476 = vmatprep.subr.bf16.mxu0 0
        %4477 = vmatpush1.bf16.msra.mxu0 0
        %4478 = vmatprep.subr.bf16.mxu0 0
        %4479 = vmatpush1.bf16.msra.mxu0 0
        %4480 = vmatprep.subr.bf16.mxu0 0
        %4481 = vmatpush1.bf16.msra.mxu0 0
        %4482 = vmatprep.mubr.bf16.mxu0 0
        %4483 = vmatmul.mubr.bf16.gmra.mrb[0].mxu0 %v4202
        %v4484 = vpop.f32.mrb[0].mxu0
        %v4485 = vadd.f32 0.0, %v4484
        %v4486 = vpop.f32.mrb[0].mxu0
        %v4487 = vpop.f32.mrb[0].mxu0
        %v4488 = vadd.f32 0.0, %v4487
        %v4489 = vpop.f32.mrb[0].mxu0
        %4490 = vmatprep.mubr.bf16.mxu0 0
        %4491 = vmatmul.mubr.bf16.gmra.mrb[0].mxu0 %v4205
        %v4492 = vpop.f32.mrb[0].mxu0
        %v4493 = vadd.f32 0.0, %v4492
        %v4494 = vpop.f32.mrb[0].mxu0
        %v4495 = vpop.f32.mrb[0].mxu0
        %v4496 = vadd.f32 0.0, %v4495
        %v4497 = vpop.f32.mrb[0].mxu0
        %4498 = vmatprep.mubr.bf16.mxu0 0
        %4499 = vmatmul.mubr.bf16.gmra.mrb[0].mxu0 %v4208
        %v4500 = vpop.f32.mrb[0].mxu0
        %v4501 = vadd.f32 0.0, %v4500
        %v4502 = vpop.f32.mrb[0].mxu0
        %v4503 = vpop.f32.mrb[0].mxu0
        %v4504 = vadd.f32 0.0, %v4503
        %v4505 = vpop.f32.mrb[0].mxu0
        %4506 = vmatprep.mubr.bf16.mxu0 0
        %4507 = vmatmul.mubr.bf16.gmra.mrb[0].mxu0 %v4211
        %v4508 = vpop.f32.mrb[0].mxu0
        %v4509 = vadd.f32 0.0, %v4508
        %v4510 = vpop.f32.mrb[0].mxu0
        %v4511 = vpop.f32.mrb[0].mxu0
        %v4512 = vadd.f32 0.0, %v4511
        %v4513 = vpop.f32.mrb[0].mxu0
        %4514 = vmatprep.mubr.bf16.mxu0 0
        %4515 = vmatmul.mubr.bf16.gmra.mrb[0].mxu0 %v4214
        %v4516 = vpop.f32.mrb[0].mxu0
        %v4517 = vadd.f32 0.0, %v4516
        %v4518 = vpop.f32.mrb[0].mxu0
        %v4519 = vpop.f32.mrb[0].mxu0
        %v4520 = vadd.f32 0.0, %v4519
        %v4521 = vpop.f32.mrb[0].mxu0
        %4522 = vmatprep.mubr.bf16.mxu0 0
        %4523 = vmatmul.mubr.bf16.gmra.mrb[0].mxu0 %v4217
        %v4524 = vpop.f32.mrb[0].mxu0
        %v4525 = vadd.f32 0.0, %v4524
        %v4526 = vpop.f32.mrb[0].mxu0
        %v4527 = vpop.f32.mrb[0].mxu0
        %v4528 = vadd.f32 0.0, %v4527
        %v4529 = vpop.f32.mrb[0].mxu0
        %4530 = vmatprep.mubr.bf16.mxu0 0
        %4531 = vmatmul.mubr.bf16.gmra.mrb[0].mxu0 %v4220
        %v4532 = vpop.f32.mrb[0].mxu0
        %v4533 = vadd.f32 0.0, %v4532
        %v4534 = vpop.f32.mrb[0].mxu0
        %v4535 = vpop.f32.mrb[0].mxu0
        %v4536 = vadd.f32 0.0, %v4535
        %v4537 = vpop.f32.mrb[0].mxu0
        %4538 = vmatprep.mubr.bf16.mxu0 0
        %4539 = vmatmul.mubr.bf16.gmra.mrb[0].mxu0 %v4223
        %v4540 = vpop.f32.mrb[0].mxu0
        %v4541 = vadd.f32 0.0, %v4540
        %v4542 = vpop.f32.mrb[0].mxu0
        %v4543 = vpop.f32.mrb[0].mxu0
        %v4544 = vadd.f32 0.0, %v4543
        %v4545 = vpop.f32.mrb[0].mxu0
        %4546 = vmatprep.mubr.bf16.mxu0 0
        %4547 = vmatmul.mubr.bf16.gmra.mrb[0].mxu0 %v4226
        %v4548 = vpop.f32.mrb[0].mxu0
        %v4549 = vadd.f32 0.0, %v4548
        %v4550 = vpop.f32.mrb[0].mxu0
        %v4551 = vpop.f32.mrb[0].mxu0
        %v4552 = vadd.f32 0.0, %v4551
        %v4553 = vpop.f32.mrb[0].mxu0
        %4554 = vmatprep.mubr.bf16.mxu0 0
        %4555 = vmatmul.mubr.bf16.gmra.mrb[0].mxu0 %v4229
        %v4556 = vpop.f32.mrb[0].mxu0
        %v4557 = vadd.f32 0.0, %v4556
        %v4558 = vpop.f32.mrb[0].mxu0
        %v4559 = vpop.f32.mrb[0].mxu0
        %v4560 = vadd.f32 0.0, %v4559
        %v4561 = vpop.f32.mrb[0].mxu0
        %4562 = vmatprep.mubr.bf16.mxu0 0
        %4563 = vmatmul.mubr.bf16.gmra.mrb[0].mxu0 %v4232
        %v4564 = vpop.f32.mrb[0].mxu0
        %v4565 = vadd.f32 0.0, %v4564
        %v4566 = vpop.f32.mrb[0].mxu0
        %v4567 = vpop.f32.mrb[0].mxu0
        %v4568 = vadd.f32 0.0, %v4567
        %v4569 = vpop.f32.mrb[0].mxu0
        %4570 = vmatprep.mubr.bf16.mxu0 0
        %4571 = vmatmul.mubr.bf16.gmra.mrb[0].mxu0 %v4235
        %v4572 = vpop.f32.mrb[0].mxu0
        %v4573 = vadd.f32 0.0, %v4572
        %v4574 = vpop.f32.mrb[0].mxu0
        %v4575 = vpop.f32.mrb[0].mxu0
        %v4576 = vadd.f32 0.0, %v4575
        %v4577 = vpop.f32.mrb[0].mxu0
        %4578 = vmatprep.mubr.bf16.mxu0 0
        %4579 = vmatmul.mubr.bf16.gmra.mrb[0].mxu0 %v4238
        %v4580 = vpop.f32.mrb[0].mxu0
        %v4581 = vadd.f32 0.0, %v4580
        %v4582 = vpop.f32.mrb[0].mxu0
        %v4583 = vpop.f32.mrb[0].mxu0
        %v4584 = vadd.f32 0.0, %v4583
        %v4585 = vpop.f32.mrb[0].mxu0
        %4586 = vmatprep.mubr.bf16.mxu0 0
        %4587 = vmatmul.mubr.bf16.gmra.mrb[0].mxu0 %v4241
        %v4588 = vpop.f32.mrb[0].mxu0
        %v4589 = vadd.f32 0.0, %v4588
        %v4590 = vpop.f32.mrb[0].mxu0
        %v4591 = vpop.f32.mrb[0].mxu0
        %v4592 = vadd.f32 0.0, %v4591
        %v4593 = vpop.f32.mrb[0].mxu0
        %4594 = vmatprep.mubr.bf16.mxu0 0
        %4595 = vmatmul.mubr.bf16.gmra.mrb[0].mxu0 %v4244
        %v4596 = vpop.f32.mrb[0].mxu0
        %v4597 = vadd.f32 0.0, %v4596
        %v4598 = vpop.f32.mrb[0].mxu0
        %v4599 = vpop.f32.mrb[0].mxu0
        %v4600 = vadd.f32 0.0, %v4599
        %v4601 = vpop.f32.mrb[0].mxu0
        %4602 = vmatprep.mubr.bf16.mxu0 0
        %4603 = vmatmul.mubr.bf16.gmra.mrb[0].mxu0 %v4445
        %v4604 = vpop.f32.mrb[0].mxu0
        %v4605 = vadd.f32 0.0, %v4604
        %v4606 = vpop.f32.mrb[0].mxu0
        %v4607 = vpop.f32.mrb[0].mxu0
        %v4608 = vadd.f32 0.0, %v4607
        %v4609 = vpop.f32.mrb[0].mxu0
        %4610 = vdwg.mxu0
        %v4611 = vadd.f32 %v4410, %v4485
        %v4612 = vadd.f32 %v4411, %v4488
        %v4613 = vadd.f32 %v4412, %v4493
        %v4614 = vadd.f32 %v4413, %v4496
        %v4615 = vadd.f32 %v4414, %v4501
        %v4616 = vadd.f32 %v4415, %v4504
        %v4617 = vadd.f32 %v4416, %v4509
        %v4618 = vadd.f32 %v4417, %v4512
        %v4619 = vadd.f32 %v4418, %v4517
        %v4620 = vadd.f32 %v4419, %v4520
        %v4621 = vadd.f32 %v4420, %v4525
        %v4622 = vadd.f32 %v4421, %v4528
        %v4623 = vadd.f32 %v4422, %v4533
        %v4624 = vadd.f32 %v4423, %v4536
        %v4625 = vadd.f32 %v4424, %v4541
        %v4626 = vadd.f32 %v4425, %v4544
        %v4627 = vadd.f32 %v4426, %v4549
        %v4628 = vadd.f32 %v4427, %v4552
        %v4629 = vadd.f32 %v4428, %v4557
        %v4630 = vadd.f32 %v4429, %v4560
        %v4631 = vadd.f32 %v4430, %v4565
        %v4632 = vadd.f32 %v4431, %v4568
        %v4633 = vadd.f32 %v4432, %v4573
        %v4634 = vadd.f32 %v4433, %v4576
        %v4635 = vadd.f32 %v4434, %v4581
        %v4636 = vadd.f32 %v4435, %v4584
        %v4637 = vadd.f32 %v4436, %v4589
        %v4638 = vadd.f32 %v4437, %v4592
        %v4639 = vadd.f32 %v4438, %v4597
        %v4640 = vadd.f32 %v4439, %v4600
        %v4641 = vadd.f32 %v4440, %v4605
        %v4642 = vadd.f32 %v4441, %v4608
        %s4643 = scalar_lea.vmem [#allocation10], 32
        %v4644 = vld [vmem:[%s4643] sm:$0xf]
        %v4646 = vsel %vm2620, %v4195, 0
        %v4649 = vsel %vm2841, %v4644, 0
        %4651 = vmatprep.subr.bf16.mxu0 0
        %4652 = vmatpush1.bf16.msra.mxu0 %v4649
        %4653 = vmatprep.subr.bf16.mxu0 0
        %4654 = vmatpush1.bf16.msra.mxu0 0
        %4655 = vmatprep.subr.bf16.mxu0 0
        %4656 = vmatpush1.bf16.msra.mxu0 0
        %4657 = vmatprep.subr.bf16.mxu0 0
        %4658 = vmatpush1.bf16.msra.mxu0 0
        %4659 = vmatprep.subr.bf16.mxu0 0
        %4660 = vmatpush1.bf16.msra.mxu0 0
        %4661 = vmatprep.subr.bf16.mxu0 0
        %4662 = vmatpush1.bf16.msra.mxu0 0
        %4663 = vmatprep.subr.bf16.mxu0 0
        %4664 = vmatpush1.bf16.msra.mxu0 0
        %4665 = vmatprep.subr.bf16.mxu0 0
        %4666 = vmatpush1.bf16.msra.mxu0 0
        %4667 = vmatprep.subr.bf16.mxu0 0
        %4668 = vmatpush1.bf16.msra.mxu0 0
        %4669 = vmatprep.subr.bf16.mxu0 0
        %4670 = vmatpush1.bf16.msra.mxu0 0
        %4671 = vmatprep.subr.bf16.mxu0 0
        %4672 = vmatpush1.bf16.msra.mxu0 0
        %4673 = vmatprep.subr.bf16.mxu0 0
        %4674 = vmatpush1.bf16.msra.mxu0 0
        %4675 = vmatprep.subr.bf16.mxu0 0
        %4676 = vmatpush1.bf16.msra.mxu0 0
        %4677 = vmatprep.subr.bf16.mxu0 0
        %4678 = vmatpush1.bf16.msra.mxu0 0
        %4679 = vmatprep.subr.bf16.mxu0 0
        %4680 = vmatpush1.bf16.msra.mxu0 0
        %4681 = vmatprep.subr.bf16.mxu0 0
        %4682 = vmatpush1.bf16.msra.mxu0 0
        %4683 = vmatprep.mubr.bf16.mxu0 0
        %4684 = vmatmul.mubr.bf16.gmra.mrb[0].mxu0 %v4205
        %v4685 = vpop.f32.mrb[0].mxu0
        %v4686 = vadd.f32 0.0, %v4685
        %v4687 = vpop.f32.mrb[0].mxu0
        %v4688 = vpop.f32.mrb[0].mxu0
        %v4689 = vadd.f32 0.0, %v4688
        %v4690 = vpop.f32.mrb[0].mxu0
        %4691 = vmatprep.mubr.bf16.mxu0 0
        %4692 = vmatmul.mubr.bf16.gmra.mrb[0].mxu0 %v4208
        %v4693 = vpop.f32.mrb[0].mxu0
        %v4694 = vadd.f32 0.0, %v4693
        %v4695 = vpop.f32.mrb[0].mxu0
        %v4696 = vpop.f32.mrb[0].mxu0
        %v4697 = vadd.f32 0.0, %v4696
        %v4698 = vpop.f32.mrb[0].mxu0
        %4699 = vmatprep.mubr.bf16.mxu0 0
        %4700 = vmatmul.mubr.bf16.gmra.mrb[0].mxu0 %v4211
        %v4701 = vpop.f32.mrb[0].mxu0
        %v4702 = vadd.f32 0.0, %v4701
        %v4703 = vpop.f32.mrb[0].mxu0
        %v4704 = vpop.f32.mrb[0].mxu0
        %v4705 = vadd.f32 0.0, %v4704
        %v4706 = vpop.f32.mrb[0].mxu0
        %4707 = vmatprep.mubr.bf16.mxu0 0
        %4708 = vmatmul.mubr.bf16.gmra.mrb[0].mxu0 %v4214
        %v4709 = vpop.f32.mrb[0].mxu0
        %v4710 = vadd.f32 0.0, %v4709
        %v4711 = vpop.f32.mrb[0].mxu0
        %v4712 = vpop.f32.mrb[0].mxu0
        %v4713 = vadd.f32 0.0, %v4712
        %v4714 = vpop.f32.mrb[0].mxu0
        %4715 = vmatprep.mubr.bf16.mxu0 0
        %4716 = vmatmul.mubr.bf16.gmra.mrb[0].mxu0 %v4217
        %v4717 = vpop.f32.mrb[0].mxu0
        %v4718 = vadd.f32 0.0, %v4717
        %v4719 = vpop.f32.mrb[0].mxu0
        %v4720 = vpop.f32.mrb[0].mxu0
        %v4721 = vadd.f32 0.0, %v4720
        %v4722 = vpop.f32.mrb[0].mxu0
        %4723 = vmatprep.mubr.bf16.mxu0 0
        %4724 = vmatmul.mubr.bf16.gmra.mrb[0].mxu0 %v4220
        %v4725 = vpop.f32.mrb[0].mxu0
        %v4726 = vadd.f32 0.0, %v4725
        %v4727 = vpop.f32.mrb[0].mxu0
        %v4728 = vpop.f32.mrb[0].mxu0
        %v4729 = vadd.f32 0.0, %v4728
        %v4730 = vpop.f32.mrb[0].mxu0
        %4731 = vmatprep.mubr.bf16.mxu0 0
        %4732 = vmatmul.mubr.bf16.gmra.mrb[0].mxu0 %v4223
        %v4733 = vpop.f32.mrb[0].mxu0
        %v4734 = vadd.f32 0.0, %v4733
        %v4735 = vpop.f32.mrb[0].mxu0
        %v4736 = vpop.f32.mrb[0].mxu0
        %v4737 = vadd.f32 0.0, %v4736
        %v4738 = vpop.f32.mrb[0].mxu0
        %4739 = vmatprep.mubr.bf16.mxu0 0
        %4740 = vmatmul.mubr.bf16.gmra.mrb[0].mxu0 %v4226
        %v4741 = vpop.f32.mrb[0].mxu0
        %v4742 = vadd.f32 0.0, %v4741
        %v4743 = vpop.f32.mrb[0].mxu0
        %v4744 = vpop.f32.mrb[0].mxu0
        %v4745 = vadd.f32 0.0, %v4744
        %v4746 = vpop.f32.mrb[0].mxu0
        %4747 = vmatprep.mubr.bf16.mxu0 0
        %4748 = vmatmul.mubr.bf16.gmra.mrb[0].mxu0 %v4229
        %v4749 = vpop.f32.mrb[0].mxu0
        %v4750 = vadd.f32 0.0, %v4749
        %v4751 = vpop.f32.mrb[0].mxu0
        %v4752 = vpop.f32.mrb[0].mxu0
        %v4753 = vadd.f32 0.0, %v4752
        %v4754 = vpop.f32.mrb[0].mxu0
        %4755 = vmatprep.mubr.bf16.mxu0 0
        %4756 = vmatmul.mubr.bf16.gmra.mrb[0].mxu0 %v4232
        %v4757 = vpop.f32.mrb[0].mxu0
        %v4758 = vadd.f32 0.0, %v4757
        %v4759 = vpop.f32.mrb[0].mxu0
        %v4760 = vpop.f32.mrb[0].mxu0
        %v4761 = vadd.f32 0.0, %v4760
        %v4762 = vpop.f32.mrb[0].mxu0
        %4763 = vmatprep.mubr.bf16.mxu0 0
        %4764 = vmatmul.mubr.bf16.gmra.mrb[0].mxu0 %v4235
        %v4765 = vpop.f32.mrb[0].mxu0
        %v4766 = vadd.f32 0.0, %v4765
        %v4767 = vpop.f32.mrb[0].mxu0
        %v4768 = vpop.f32.mrb[0].mxu0
        %v4769 = vadd.f32 0.0, %v4768
        %v4770 = vpop.f32.mrb[0].mxu0
        %4771 = vmatprep.mubr.bf16.mxu0 0
        %4772 = vmatmul.mubr.bf16.gmra.mrb[0].mxu0 %v4238
        %v4773 = vpop.f32.mrb[0].mxu0
        %v4774 = vadd.f32 0.0, %v4773
        %v4775 = vpop.f32.mrb[0].mxu0
        %v4776 = vpop.f32.mrb[0].mxu0
        %v4777 = vadd.f32 0.0, %v4776
        %v4778 = vpop.f32.mrb[0].mxu0
        %4779 = vmatprep.mubr.bf16.mxu0 0
        %4780 = vmatmul.mubr.bf16.gmra.mrb[0].mxu0 %v4241
        %v4781 = vpop.f32.mrb[0].mxu0
        %v4782 = vadd.f32 0.0, %v4781
        %v4783 = vpop.f32.mrb[0].mxu0
        %v4784 = vpop.f32.mrb[0].mxu0
        %v4785 = vadd.f32 0.0, %v4784
        %v4786 = vpop.f32.mrb[0].mxu0
        %4787 = vmatprep.mubr.bf16.mxu0 0
        %4788 = vmatmul.mubr.bf16.gmra.mrb[0].mxu0 %v4244
        %v4789 = vpop.f32.mrb[0].mxu0
        %v4790 = vadd.f32 0.0, %v4789
        %v4791 = vpop.f32.mrb[0].mxu0
        %v4792 = vpop.f32.mrb[0].mxu0
        %v4793 = vadd.f32 0.0, %v4792
        %v4794 = vpop.f32.mrb[0].mxu0
        %4795 = vmatprep.mubr.bf16.mxu0 0
        %4796 = vmatmul.mubr.bf16.gmra.mrb[0].mxu0 %v4445
        %v4797 = vpop.f32.mrb[0].mxu0
        %v4798 = vadd.f32 0.0, %v4797
        %v4799 = vpop.f32.mrb[0].mxu0
        %v4800 = vpop.f32.mrb[0].mxu0
        %v4801 = vadd.f32 0.0, %v4800
        %v4802 = vpop.f32.mrb[0].mxu0
        %4803 = vmatprep.mubr.bf16.mxu0 0
        %4804 = vmatmul.mubr.bf16.gmra.mrb[0].mxu0 %v4646
        %v4805 = vpop.f32.mrb[0].mxu0
        %v4806 = vadd.f32 0.0, %v4805
        %v4807 = vpop.f32.mrb[0].mxu0
        %v4808 = vpop.f32.mrb[0].mxu0
        %v4809 = vadd.f32 0.0, %v4808
        %v4810 = vpop.f32.mrb[0].mxu0
        %4811 = vdwg.mxu0
        %v4812 = vadd.f32 %v4611, %v4686
        %v4813 = vadd.f32 %v4612, %v4689
        %v4814 = vadd.f32 %v4613, %v4694
        %v4815 = vadd.f32 %v4614, %v4697
        %v4816 = vadd.f32 %v4615, %v4702
        %v4817 = vadd.f32 %v4616, %v4705
        %v4818 = vadd.f32 %v4617, %v4710
        %v4819 = vadd.f32 %v4618, %v4713
        %v4820 = vadd.f32 %v4619, %v4718
        %v4821 = vadd.f32 %v4620, %v4721
        %v4822 = vadd.f32 %v4621, %v4726
        %v4823 = vadd.f32 %v4622, %v4729
        %v4824 = vadd.f32 %v4623, %v4734
        %v4825 = vadd.f32 %v4624, %v4737
        %v4826 = vadd.f32 %v4625, %v4742
        %v4827 = vadd.f32 %v4626, %v4745
        %v4828 = vadd.f32 %v4627, %v4750
        %v4829 = vadd.f32 %v4628, %v4753
        %v4830 = vadd.f32 %v4629, %v4758
        %v4831 = vadd.f32 %v4630, %v4761
        %v4832 = vadd.f32 %v4631, %v4766
        %v4833 = vadd.f32 %v4632, %v4769
        %v4834 = vadd.f32 %v4633, %v4774
        %v4835 = vadd.f32 %v4634, %v4777
        %v4836 = vadd.f32 %v4635, %v4782
        %v4837 = vadd.f32 %v4636, %v4785
        %v4838 = vadd.f32 %v4637, %v4790
        %v4839 = vadd.f32 %v4638, %v4793
        %v4840 = vadd.f32 %v4639, %v4798
        %v4841 = vadd.f32 %v4640, %v4801
        %v4842 = vadd.f32 %v4641, %v4806
        %v4843 = vadd.f32 %v4642, %v4809
        %v4844 = vmax.f32 %v4812, 0.0
        %v4845 = vmax.f32 %v4813, 0.0
        %v4846 = vmax.f32 %v4814, 0.0
        %v4847 = vmax.f32 %v4815, 0.0
        %v4848 = vmax.f32 %v4816, 0.0
        %v4849 = vmax.f32 %v4817, 0.0
        %v4850 = vmax.f32 %v4818, 0.0
        %v4851 = vmax.f32 %v4819, 0.0
        %v4852 = vmax.f32 %v4820, 0.0
        %v4853 = vmax.f32 %v4821, 0.0
        %v4854 = vmax.f32 %v4822, 0.0
        %v4855 = vmax.f32 %v4823, 0.0
        %v4856 = vmax.f32 %v4824, 0.0
        %v4857 = vmax.f32 %v4825, 0.0
        %v4858 = vmax.f32 %v4826, 0.0
        %v4859 = vmax.f32 %v4827, 0.0
        %v4860 = vmax.f32 %v4828, 0.0
        %v4861 = vmax.f32 %v4829, 0.0
        %v4862 = vmax.f32 %v4830, 0.0
        %v4863 = vmax.f32 %v4831, 0.0
        %v4864 = vmax.f32 %v4832, 0.0
        %v4865 = vmax.f32 %v4833, 0.0
        %v4866 = vmax.f32 %v4834, 0.0
        %v4867 = vmax.f32 %v4835, 0.0
        %v4868 = vmax.f32 %v4836, 0.0
        %v4869 = vmax.f32 %v4837, 0.0
        %v4870 = vmax.f32 %v4838, 0.0
        %v4871 = vmax.f32 %v4839, 0.0
        %v4872 = vmax.f32 %v4840, 0.0
        %v4873 = vmax.f32 %v4841, 0.0
        %v4874 = vmax.f32 %v4842, 0.0
        %v4875 = vmax.f32 %v4843, 0.0
        %4876 = vst.msk [vmem:[%s296] sm:$0xff] %vm2620, %v4844
        %4877 = vst.msk [vmem:[%s296 + $0x8] sm:$0xff] %vm2620, %v4845
        %4878 = vst.msk [vmem:[%s296 + $0x10] sm:$0xff] %vm2620, %v4846
        %4879 = vst.msk [vmem:[%s296 + $0x18] sm:$0xff] %vm2620, %v4847
        %4880 = vst.msk [vmem:[%s296 + $0x20] sm:$0xff] %vm2620, %v4848
        %4881 = vst.msk [vmem:[%s296 + $0x28] sm:$0xff] %vm2620, %v4849
        %4882 = vst.msk [vmem:[%s296 + $0x30] sm:$0xff] %vm2620, %v4850
        %4883 = vst.msk [vmem:[%s296 + $0x38] sm:$0xff] %vm2620, %v4851
        %4884 = vst.msk [vmem:[%s296 + $0x40] sm:$0xff] %vm2620, %v4852
        %4885 = vst.msk [vmem:[%s296 + $0x48] sm:$0xff] %vm2620, %v4853
        %4886 = vst.msk [vmem:[%s296 + $0x50] sm:$0xff] %vm2620, %v4854
        %4887 = vst.msk [vmem:[%s296 + $0x58] sm:$0xff] %vm2620, %v4855
        %4888 = vst.msk [vmem:[%s296 + $0x60] sm:$0xff] %vm2620, %v4856
        %4889 = vst.msk [vmem:[%s296 + $0x68] sm:$0xff] %vm2620, %v4857
        %4890 = vst.msk [vmem:[%s296 + $0x70] sm:$0xff] %vm2620, %v4858
        %4891 = vst.msk [vmem:[%s296 + $0x78] sm:$0xff] %vm2620, %v4859
        %4892 = vst.msk [vmem:[%s296 + $0x80] sm:$0xff] %vm2620, %v4860
        %4893 = vst.msk [vmem:[%s296 + $0x88] sm:$0xff] %vm2620, %v4861
        %4894 = vst.msk [vmem:[%s296 + $0x90] sm:$0xff] %vm2620, %v4862
        %4895 = vst.msk [vmem:[%s296 + $0x98] sm:$0xff] %vm2620, %v4863
        %4896 = vst.msk [vmem:[%s296 + $0xa0] sm:$0xff] %vm2620, %v4864
        %4897 = vst.msk [vmem:[%s296 + $0xa8] sm:$0xff] %vm2620, %v4865
        %4898 = vst.msk [vmem:[%s296 + $0xb0] sm:$0xff] %vm2620, %v4866
        %4899 = vst.msk [vmem:[%s296 + $0xb8] sm:$0xff] %vm2620, %v4867
        %4900 = vst.msk [vmem:[%s296 + $0xc0] sm:$0xff] %vm2620, %v4868
        %4901 = vst.msk [vmem:[%s296 + $0xc8] sm:$0xff] %vm2620, %v4869
        %4902 = vst.msk [vmem:[%s296 + $0xd0] sm:$0xff] %vm2620, %v4870
        %4903 = vst.msk [vmem:[%s296 + $0xd8] sm:$0xff] %vm2620, %v4871
        %4904 = vst.msk [vmem:[%s296 + $0xe0] sm:$0xff] %vm2620, %v4872
        %4905 = vst.msk [vmem:[%s296 + $0xe8] sm:$0xff] %vm2620, %v4873
        %4906 = vst.msk [vmem:[%s296 + $0xf0] sm:$0xff] %vm2620, %v4874
        %4907 = vst.msk [vmem:[%s296 + $0xf8] sm:$0xff] %vm2620, %v4875
        %s4908 = sand.u32 %s142, 1
        %s4909 = scalar_lea.sflag [#allocation6], %s4908
        %s4910 = sand.u32 %s142, 1
        %s4911 = smul.addr %s4910, 256
        %s4912 = scalar_lea.vmem [#allocation13], %s4911
        // Predicated region
        $region61: #{tpu_custom_call.1} parent=39 // pred_check
          %p4913 = pneg %p152
        $region62: #{tpu_custom_call.1} parent=39 // pred_check_branch
          %4915 = sbr.rel (%p4913) target = $region64
        $region63: #{tpu_custom_call.1} parent=39 // pred_region
          %s4917 = ssub.s32 4096, 4096
          %4918 = vsyncadd %s4909, %s4917
          %s4919 = smul.addr %s24, 32
          %s4920 = smul.addr %s4919, 128
          %s4921 = scalar_lea.hbm %s5, %s4920
          %s4922 = sshll.u32 %s4912, 4
          %s4923 = int_to_ptr.vmem [resolvable:$true] %s4922
          %4928 = dma.vmem_to_hbm [thread:$0]  %s4923, 4096, %s4921, %s4909, 128, 128, 8
        $region64: #{tpu_custom_call.1} parent=39 // pred_fallthru
          _
      $region40: #{tpu_custom_call.1} parent=5 // pred_fallthru
        _
      %p4929 = scmp.le.s32.totalorder 2, %s19
      // Predicated region
      $region65: #{tpu_custom_call.1} parent=5 // pred_check
        %p4930 = pneg %p4929
      $region66: #{tpu_custom_call.1} parent=5 // pred_check_branch
        %4932 = sbr.rel (%p4930) target = $region68
      $region67: #{tpu_custom_call.1} parent=5 // pred_region
        %s4933 = ssub.s32 %s19, 2
        // Predicated region
        $region69: #{tpu_custom_call.1} parent=67 // pred_check
          %p4934 = pneg %p158
        $region70: #{tpu_custom_call.1} parent=67 // pred_check_branch
          %4936 = sbr.rel (%p4934) target = $region72
        $region71: #{tpu_custom_call.1} parent=67 // pred_region
          %s4937 = sand.u32 %s143, 1
          %s4938 = scalar_lea.sflag [#allocation6], %s4937
          %s4939 = sand.u32 %s143, 1
          %s4940 = smul.addr %s4939, 256
          %s4941 = scalar_lea.vmem [#allocation13], %s4940
          %4942 = dma.done %s4938, 4096
        $region72: #{tpu_custom_call.1} parent=67 // pred_fallthru
          _
      $region68: #{tpu_custom_call.1} parent=5 // pred_fallthru
        _
    $region6: #{tpu_custom_call.1} parent=1 // loop_footer
      %s23 = sadd.s32 1, %s19
    $region7: #{tpu_custom_call.1} parent=1 // loop_footer_branch
      %18 = sbr.rel target = $region3
    $region8: #{tpu_custom_call.1} parent=1 // loop_exit
      _
    %4943 = vsyncpa [#allocation5], 1
    %s4944 = scalar_lea.sflag [#allocation5], 1
    %4945 = vsyncpa %s4944, 1
    %4946 = vsyncpa [#allocation8], 1
    %4947 = vsyncpa [#allocation11], 1
    %4948 = vsyncpa [#allocation6], 1
    %s4949 = scalar_lea.sflag [#allocation6], 1
    %4950 = vsyncpa %s4949, 1

</llo_original>
